<compile_context>
chip_gen: v5e
topology: v5e:2x2
jax: 0.10.0
libtpu: 0.0.40
codegen_flags: <defaults>
</compile_context>

<pallas_src>
import functools

import jax
import jax.numpy as jnp
from jax.experimental import pallas as pl
from jax.experimental.pallas import tpu as pltpu

EPS = 1e-5


# ---------------------------------------------------------------------------
# Fused kernel: pad + conv1 + IN + ReLU + pad + conv2 + IN + residual
# ---------------------------------------------------------------------------
def _resnet_block_kernel(x_ref, w1_ref, w2_ref, o_ref, pad_ref, slab_ref,
                         *, H, W, C, d, matmul_dtype):
    """One batch element per grid step.  Lane-dense (C, H*W) orientation.

    x_ref  : (1, C, H*W) f32   NCHW-flat input (H*W on lanes)
    w1_ref : (C, 9*C)          stage-1 weights, column = (kh*3+kw)*C + cin
    w2_ref : (C, 9*C)          stage-2 weights
    o_ref  : (1, C, H*W) f32   NCHW-flat output
    pad_ref : VMEM (C, H+2d, W+2d) f32 — reflect-pad scratch, reused by both stages
    slab_ref: VMEM (9*C, H*W) matmul_dtype — im2col slab, reused by both stages
    """
    HW = H * W
    Hp = H + 2 * d

    x2 = x_ref[0]                        # (C, HW) f32, lane-dense
    x3 = x2.reshape(C, H, W)             # one relayout for the spatial pads

    # ---- ReflectionPad2d(d) of x, in-kernel (no wrapper jnp.pad HBM copy) ----
    pad_ref[:, d:d + H, d:d + W] = x3
    for j in range(d):                                        # top / bottom rows
        pad_ref[:, d - 1 - j:d - j, d:d + W] = x3[:, j + 1:j + 2, :]
        pad_ref[:, d + H + j:d + H + j + 1, d:d + W] = x3[:, H - 2 - j:H - 1 - j, :]
    for j in range(d):                                        # left / right cols (+corners)
        pad_ref[:, 0:Hp, d - 1 - j:d - j] = pad_ref[:, 0:Hp, d + 1 + j:d + 2 + j]
        pad_ref[:, 0:Hp, d + W + j:d + W + j + 1] = \
            pad_ref[:, 0:Hp, d + W - 2 - j:d + W - 1 - j]

    # ---- stage-1 im2col slab (9C, HW): cast to matmul dtype exactly once ----
    for kh in range(3):
        for kw in range(3):
            tap = kh * 3 + kw
            sl = pad_ref[:, kh * d:kh * d + H, kw * d:kw * d + W]      # (C, H, W)
            slab_ref[tap * C:(tap + 1) * C, :] = sl.reshape(C, HW).astype(matmul_dtype)

    # ---- stage-1 conv = ONE MXU matmul, K = 9C contraction, f32 accumulate ----
    y = jnp.dot(w1_ref[...], slab_ref[...], preferred_element_type=jnp.float32)

    # ---- InstanceNorm (two-pass centered variance, f32) + ReLU ----
    mean = jnp.mean(y, axis=1, keepdims=True)
    yc = y - mean
    var = jnp.mean(yc * yc, axis=1, keepdims=True)
    h1 = jnp.maximum(yc * jax.lax.rsqrt(var + EPS), 0.0)               # (C, HW)

    # ---- ReflectionPad2d(1) of h1 (reuse pad_ref's top-left (C, H+2, W+2)) ----
    h1_3 = h1.reshape(C, H, W)
    pad_ref[:, 1:H + 1, 1:W + 1] = h1_3
    pad_ref[:, 0:1, 1:W + 1] = h1_3[:, 1:2, :]
    pad_ref[:, H + 1:H + 2, 1:W + 1] = h1_3[:, H - 2:H - 1, :]
    pad_ref[:, 0:H + 2, 0:1] = pad_ref[:, 0:H + 2, 2:3]
    pad_ref[:, 0:H + 2, W + 1:W + 2] = pad_ref[:, 0:H + 2, W - 1:W]

    # ---- stage-2 im2col slab (reuse slab_ref) ----
    for kh in range(3):
        for kw in range(3):
            tap = kh * 3 + kw
            sl = pad_ref[:, kh:kh + H, kw:kw + W]                      # (C, H, W)
            slab_ref[tap * C:(tap + 1) * C, :] = sl.reshape(C, HW).astype(matmul_dtype)

    # ---- stage-2 conv + InstanceNorm ----
    y2 = jnp.dot(w2_ref[...], slab_ref[...], preferred_element_type=jnp.float32)
    mean2 = jnp.mean(y2, axis=1, keepdims=True)
    y2c = y2 - mean2
    var2 = jnp.mean(y2c * y2c, axis=1, keepdims=True)
    y2n = y2c * jax.lax.rsqrt(var2 + EPS)                              # (C, HW)

    # ---- residual add + lane-dense store, directly in NCHW-flat layout ----
    o_ref[0] = (x2 + y2n).astype(o_ref.dtype)


# ---------------------------------------------------------------------------
# Wrapper
# ---------------------------------------------------------------------------
def _round_up(x, m):
    return -(-x // m) * m


def _padded_vmem_bytes(shape, dtype):
    """Bytes of a VMEM buffer after (sublane, lane) tile padding."""
    it = jnp.dtype(dtype).itemsize
    s = list(shape)
    s[-1] = _round_up(s[-1], 128)
    if len(s) >= 2:
        s[-2] = _round_up(s[-2], 8 * max(1, 4 // it))
    n = 1
    for v in s:
        n *= v
    return n * it


@functools.partial(jax.jit, static_argnames=("dilation", "matmul_dtype"))
def resnet_block_forward(x_nchw, w1, b1, w2, b2, dilation=1,
                         matmul_dtype=jnp.float32):
    """ResnetBlock forward.  x_nchw: (B,C,H,W); w*: (C,C,3,3) OIHW; b*: (C,).

    b1/b2 are accepted for interface parity with the PyTorch module but are not
    fed to the kernel: InstanceNorm2d(affine=False) subtracts the per-channel
    mean, which exactly cancels any per-channel constant bias.
    """
    del b1, b2
    B, C, H, W = x_nchw.shape
    HW = H * W
    d = int(dilation)
    Hp, Wp = H + 2 * d, W + 2 * d

    # NCHW -> NCHW-flat: a free, contiguous reshape (no transpose, no pad).
    x_flat = x_nchw.reshape(B, C, HW).astype(jnp.float32)

    # OIHW -> (Cout, KH, KW, Cin) -> (Cout, 9*Cin): column = (kh*3+kw)*C + cin.
    w1_f = jnp.transpose(w1, (0, 2, 3, 1)).reshape(C, 9 * C).astype(matmul_dtype)
    w2_f = jnp.transpose(w2, (0, 2, 3, 1)).reshape(C, 9 * C).astype(matmul_dtype)

    # VMEM budget from (sublane, lane)-padded shapes, capped below physical VMEM.
    est = (
        2 * _padded_vmem_bytes((1, C, HW), jnp.float32)          # input  (double buffered)
        + 2 * _padded_vmem_bytes((1, C, HW), jnp.float32)        # output (double buffered)
        + 2 * 2 * _padded_vmem_bytes((C, 9 * C), matmul_dtype)   # both weight slabs
        + _padded_vmem_bytes((C, Hp, Wp), jnp.float32)           # reflect-pad scratch
        + _padded_vmem_bytes((9 * C, HW), matmul_dtype)          # im2col scratch
        + 8 * _padded_vmem_bytes((C, HW), jnp.float32)           # live intermediates
    )
    try:
        phys = int(pltpu.get_tpu_info().vmem_capacity_bytes)
    except Exception:
        phys = 64 * 1024 * 1024                                  # v7x per-core floor
    vmem_limit = int(min(3 * phys // 4, max(16 * 1024 * 1024, 2 * est)))

    kernel = functools.partial(_resnet_block_kernel, H=H, W=W, C=C, d=d,
                               matmul_dtype=matmul_dtype)

    out = pl.pallas_call(
        kernel,
        out_shape=jax.ShapeDtypeStruct((B, C, HW), jnp.float32),
        grid=(B,),
        in_specs=[
            pl.BlockSpec((1, C, HW), lambda b: (b, 0, 0)),
            pl.BlockSpec((C, 9 * C), lambda b: (0, 0)),
            pl.BlockSpec((C, 9 * C), lambda b: (0, 0)),
        ],
        out_specs=pl.BlockSpec((1, C, HW), lambda b: (b, 0, 0)),
        scratch_shapes=[
            pltpu.VMEM((C, Hp, Wp), jnp.float32),
            pltpu.VMEM((9 * C, HW), matmul_dtype),
        ],
        compiler_params=pltpu.CompilerParams(
            dimension_semantics=("parallel",),
            vmem_limit_bytes=vmem_limit,
        ),
    )(x_flat, w1_f, w2_f)

    # NCHW-flat -> NCHW: free reshape, no HBM transpose round-trip.
    return out.reshape(B, C, H, W)


# ---------------------------------------------------------------------------
# Pure-JAX reference (correctness check; includes the biases the kernel drops)
# ---------------------------------------------------------------------------
def _reference_forward(x, w1, b1, w2, b2, dilation=1):
    def conv(inp, w, b, dil):
        xp = jnp.pad(inp, ((0, 0), (0, 0), (dil, dil), (dil, dil)), mode="reflect")
        y = jax.lax.conv_general_dilated(
            xp, w, window_strides=(1, 1), padding="VALID",
            rhs_dilation=(dil, dil),
            dimension_numbers=("NCHW", "OIHW", "NCHW"))
        return y + b[None, :, None, None]

    def inorm(y):
        m = jnp.mean(y, axis=(2, 3), keepdims=True)
        v = jnp.mean(jnp.square(y - m), axis=(2, 3), keepdims=True)
        return (y - m) * jax.lax.rsqrt(v + EPS)

    h = jnp.maximum(inorm(conv(x, w1, b1, dilation)), 0.0)
    h = inorm(conv(h, w2, b2, 1))
    return x + h


# ---------------------------------------------------------------------------
# Main
# ---------------------------------------------------------------------------
if __name__ == "__main__":
    B, C, H, W = 2, 4, 16, 16

    key = jax.random.PRNGKey(0)
    kx, kw1, kb1, kw2, kb2 = jax.random.split(key, 5)

    x = jax.random.normal(kx, (B, C, H, W), dtype=jnp.float32)
    w1 = jax.random.normal(kw1, (C, C, 3, 3), dtype=jnp.float32) * 0.2
    b1 = jax.random.normal(kb1, (C,), dtype=jnp.float32) * 0.1
    w2 = jax.random.normal(kw2, (C, C, 3, 3), dtype=jnp.float32) * 0.2
    b2 = jax.random.normal(kb2, (C,), dtype=jnp.float32) * 0.1

    for dilation in (1, 2):
        out = jax.block_until_ready(
            resnet_block_forward(x, w1, b1, w2, b2, dilation=dilation))
        ref = jax.block_until_ready(
            _reference_forward(x, w1, b1, w2, b2, dilation))
        assert out.shape == (B, C, H, W)
        assert jnp.allclose(out, ref, atol=1e-4, rtol=1e-4), (
            f"dilation={dilation}: max abs err {jnp.max(jnp.abs(out - ref))}")

    print("KERNEL_OK")
</pallas_src>

<mosaic_0001>
module attributes {stable_mosaic.version = 11 : i64} {
  func.func @_resnet_block_kernel(%arg0: i32, %arg1: memref<1x4x256xf32, #tpu.memory_space<vmem>>, %arg2: memref<4x36xf32, #tpu.memory_space<vmem>>, %arg3: memref<4x36xf32, #tpu.memory_space<vmem>>, %arg4: memref<1x4x256xf32, #tpu.memory_space<vmem>>, %arg5: memref<4x18x18xf32, #tpu.memory_space<vmem>>, %arg6: memref<36x256xf32, #tpu.memory_space<vmem>>) attributes {dimension_semantics = [#tpu.dimension_semantics<parallel>], iteration_bounds = array<i64: 2>, scalar_prefetch = 0 : i64, scratch_operands = 2 : i64, tpu.core_type = #tpu.core_type<tc>, window_params = [{transform_indices = @transform_0, window_bounds = array<i64: 1, 4, 256>}, {pipeline_mode = #tpu.pipeline_mode<synchronous>, transform_indices = @transform_1, window_bounds = array<i64: 4, 36>}, {pipeline_mode = #tpu.pipeline_mode<synchronous>, transform_indices = @transform_2, window_bounds = array<i64: 4, 36>}, {transform_indices = @transform_3, window_bounds = array<i64: 1, 4, 256>}]} {
    %c0 = arith.constant 0 : index
    %c0_0 = arith.constant 0 : index
    %c0_1 = arith.constant 0 : index
    %0 = vector.load %arg1[%c0, %c0_0, %c0_1] : memref<1x4x256xf32, #tpu.memory_space<vmem>>, vector<1x4x256xf32>
    %1 = vector.shape_cast %0 : vector<1x4x256xf32> to vector<4x256xf32>
    %2 = vector.shape_cast %1 : vector<4x256xf32> to vector<4x16x16xf32>
    %c0_2 = arith.constant 0 : index
    %c1 = arith.constant 1 : index
    %c1_3 = arith.constant 1 : index
    %3 = vector.load %arg5[%c0_2, %c1, %c1_3] : memref<4x18x18xf32, #tpu.memory_space<vmem>>, vector<4x16x16xf32>
    tpu.vector_store %arg5[%c0_2, %c1, %c1_3], %2 {strides = array<i32>} : memref<4x18x18xf32, #tpu.memory_space<vmem>>, vector<4x16x16xf32>,
    %4 = vector.extract_strided_slice %2 {offsets = [0, 1, 0], sizes = [4, 1, 16], strides = [1, 1, 1]} : vector<4x16x16xf32> to vector<4x1x16xf32>
    %c0_4 = arith.constant 0 : index
    %c0_5 = arith.constant 0 : index
    %c1_6 = arith.constant 1 : index
    %5 = vector.load %arg5[%c0_4, %c0_5, %c1_6] : memref<4x18x18xf32, #tpu.memory_space<vmem>>, vector<4x1x16xf32>
    tpu.vector_store %arg5[%c0_4, %c0_5, %c1_6], %4 {strides = array<i32>} : memref<4x18x18xf32, #tpu.memory_space<vmem>>, vector<4x1x16xf32>,
    %6 = vector.extract_strided_slice %2 {offsets = [0, 14, 0], sizes = [4, 1, 16], strides = [1, 1, 1]} : vector<4x16x16xf32> to vector<4x1x16xf32>
    %c0_7 = arith.constant 0 : index
    %c17 = arith.constant 17 : index
    %c1_8 = arith.constant 1 : index
    %7 = vector.load %arg5[%c0_7, %c17, %c1_8] : memref<4x18x18xf32, #tpu.memory_space<vmem>>, vector<4x1x16xf32>
    tpu.vector_store %arg5[%c0_7, %c17, %c1_8], %6 {strides = array<i32>} : memref<4x18x18xf32, #tpu.memory_space<vmem>>, vector<4x1x16xf32>,
    %c0_9 = arith.constant 0 : index
    %c0_10 = arith.constant 0 : index
    %c2 = arith.constant 2 : index
    %8 = vector.load %arg5[%c0_9, %c0_10, %c2] : memref<4x18x18xf32, #tpu.memory_space<vmem>>, vector<4x18x1xf32>
    %c0_11 = arith.constant 0 : index
    %c0_12 = arith.constant 0 : index
    %c0_13 = arith.constant 0 : index
    %9 = vector.load %arg5[%c0_11, %c0_12, %c0_13] : memref<4x18x18xf32, #tpu.memory_space<vmem>>, vector<4x18x1xf32>
    tpu.vector_store %arg5[%c0_11, %c0_12, %c0_13], %8 {strides = array<i32>} : memref<4x18x18xf32, #tpu.memory_space<vmem>>, vector<4x18x1xf32>,
    %c0_14 = arith.constant 0 : index
    %c0_15 = arith.constant 0 : index
    %c15 = arith.constant 15 : index
    %10 = vector.load %arg5[%c0_14, %c0_15, %c15] : memref<4x18x18xf32, #tpu.memory_space<vmem>>, vector<4x18x1xf32>
    %c0_16 = arith.constant 0 : index
    %c0_17 = arith.constant 0 : index
    %c17_18 = arith.constant 17 : index
    %11 = vector.load %arg5[%c0_16, %c0_17, %c17_18] : memref<4x18x18xf32, #tpu.memory_space<vmem>>, vector<4x18x1xf32>
    tpu.vector_store %arg5[%c0_16, %c0_17, %c17_18], %10 {strides = array<i32>} : memref<4x18x18xf32, #tpu.memory_space<vmem>>, vector<4x18x1xf32>,
    %c0_19 = arith.constant 0 : index
    %c0_20 = arith.constant 0 : index
    %c0_21 = arith.constant 0 : index
    %12 = vector.load %arg5[%c0_19, %c0_20, %c0_21] : memref<4x18x18xf32, #tpu.memory_space<vmem>>, vector<4x16x16xf32>
    %13 = vector.shape_cast %12 : vector<4x16x16xf32> to vector<4x256xf32>
    %c0_22 = arith.constant 0 : index
    %c0_23 = arith.constant 0 : index
    %14 = vector.load %arg6[%c0_22, %c0_23] : memref<36x256xf32, #tpu.memory_space<vmem>>, vector<4x256xf32>
    tpu.vector_store %arg6[%c0_22, %c0_23], %13 {strides = array<i32>} : memref<36x256xf32, #tpu.memory_space<vmem>>, vector<4x256xf32>,
    %c0_24 = arith.constant 0 : index
    %c0_25 = arith.constant 0 : index
    %c1_26 = arith.constant 1 : index
    %15 = vector.load %arg5[%c0_24, %c0_25, %c1_26] : memref<4x18x18xf32, #tpu.memory_space<vmem>>, vector<4x16x16xf32>
    %16 = vector.shape_cast %15 : vector<4x16x16xf32> to vector<4x256xf32>
    %c4 = arith.constant 4 : index
    %c0_27 = arith.constant 0 : index
    %17 = vector.load %arg6[%c4, %c0_27] : memref<36x256xf32, #tpu.memory_space<vmem>>, vector<4x256xf32>
    tpu.vector_store %arg6[%c4, %c0_27], %16 {strides = array<i32>} : memref<36x256xf32, #tpu.memory_space<vmem>>, vector<4x256xf32>,
    %c0_28 = arith.constant 0 : index
    %c0_29 = arith.constant 0 : index
    %c2_30 = arith.constant 2 : index
    %18 = vector.load %arg5[%c0_28, %c0_29, %c2_30] : memref<4x18x18xf32, #tpu.memory_space<vmem>>, vector<4x16x16xf32>
    %19 = vector.shape_cast %18 : vector<4x16x16xf32> to vector<4x256xf32>
    %c8 = arith.constant 8 : index
    %c0_31 = arith.constant 0 : index
    %20 = vector.load %arg6[%c8, %c0_31] : memref<36x256xf32, #tpu.memory_space<vmem>>, vector<4x256xf32>
    tpu.vector_store %arg6[%c8, %c0_31], %19 {strides = array<i32>} : memref<36x256xf32, #tpu.memory_space<vmem>>, vector<4x256xf32>,
    %c0_32 = arith.constant 0 : index
    %c1_33 = arith.constant 1 : index
    %c0_34 = arith.constant 0 : index
    %21 = vector.load %arg5[%c0_32, %c1_33, %c0_34] : memref<4x18x18xf32, #tpu.memory_space<vmem>>, vector<4x16x16xf32>
    %22 = vector.shape_cast %21 : vector<4x16x16xf32> to vector<4x256xf32>
    %c12 = arith.constant 12 : index
    %c0_35 = arith.constant 0 : index
    %23 = vector.load %arg6[%c12, %c0_35] : memref<36x256xf32, #tpu.memory_space<vmem>>, vector<4x256xf32>
    tpu.vector_store %arg6[%c12, %c0_35], %22 {strides = array<i32>} : memref<36x256xf32, #tpu.memory_space<vmem>>, vector<4x256xf32>,
    %c0_36 = arith.constant 0 : index
    %c1_37 = arith.constant 1 : index
    %c1_38 = arith.constant 1 : index
    %24 = vector.load %arg5[%c0_36, %c1_37, %c1_38] : memref<4x18x18xf32, #tpu.memory_space<vmem>>, vector<4x16x16xf32>
    %25 = vector.shape_cast %24 : vector<4x16x16xf32> to vector<4x256xf32>
    %c16 = arith.constant 16 : index
    %c0_39 = arith.constant 0 : index
    %26 = vector.load %arg6[%c16, %c0_39] : memref<36x256xf32, #tpu.memory_space<vmem>>, vector<4x256xf32>
    tpu.vector_store %arg6[%c16, %c0_39], %25 {strides = array<i32>} : memref<36x256xf32, #tpu.memory_space<vmem>>, vector<4x256xf32>,
    %c0_40 = arith.constant 0 : index
    %c1_41 = arith.constant 1 : index
    %c2_42 = arith.constant 2 : index
    %27 = vector.load %arg5[%c0_40, %c1_41, %c2_42] : memref<4x18x18xf32, #tpu.memory_space<vmem>>, vector<4x16x16xf32>
    %28 = vector.shape_cast %27 : vector<4x16x16xf32> to vector<4x256xf32>
    %c20 = arith.constant 20 : index
    %c0_43 = arith.constant 0 : index
    %29 = vector.load %arg6[%c20, %c0_43] : memref<36x256xf32, #tpu.memory_space<vmem>>, vector<4x256xf32>
    tpu.vector_store %arg6[%c20, %c0_43], %28 {strides = array<i32>} : memref<36x256xf32, #tpu.memory_space<vmem>>, vector<4x256xf32>,
    %c0_44 = arith.constant 0 : index
    %c2_45 = arith.constant 2 : index
    %c0_46 = arith.constant 0 : index
    %30 = vector.load %arg5[%c0_44, %c2_45, %c0_46] : memref<4x18x18xf32, #tpu.memory_space<vmem>>, vector<4x16x16xf32>
    %31 = vector.shape_cast %30 : vector<4x16x16xf32> to vector<4x256xf32>
    %c24 = arith.constant 24 : index
    %c0_47 = arith.constant 0 : index
    %32 = vector.load %arg6[%c24, %c0_47] : memref<36x256xf32, #tpu.memory_space<vmem>>, vector<4x256xf32>
    tpu.vector_store %arg6[%c24, %c0_47], %31 {strides = array<i32>} : memref<36x256xf32, #tpu.memory_space<vmem>>, vector<4x256xf32>,
    %c0_48 = arith.constant 0 : index
    %c2_49 = arith.constant 2 : index
    %c1_50 = arith.constant 1 : index
    %33 = vector.load %arg5[%c0_48, %c2_49, %c1_50] : memref<4x18x18xf32, #tpu.memory_space<vmem>>, vector<4x16x16xf32>
    %34 = vector.shape_cast %33 : vector<4x16x16xf32> to vector<4x256xf32>
    %c28 = arith.constant 28 : index
    %c0_51 = arith.constant 0 : index
    %35 = vector.load %arg6[%c28, %c0_51] : memref<36x256xf32, #tpu.memory_space<vmem>>, vector<4x256xf32>
    tpu.vector_store %arg6[%c28, %c0_51], %34 {strides = array<i32>} : memref<36x256xf32, #tpu.memory_space<vmem>>, vector<4x256xf32>,
    %c0_52 = arith.constant 0 : index
    %c2_53 = arith.constant 2 : index
    %c2_54 = arith.constant 2 : index
    %36 = vector.load %arg5[%c0_52, %c2_53, %c2_54] : memref<4x18x18xf32, #tpu.memory_space<vmem>>, vector<4x16x16xf32>
    %37 = vector.shape_cast %36 : vector<4x16x16xf32> to vector<4x256xf32>
    %c32 = arith.constant 32 : index
    %c0_55 = arith.constant 0 : index
    %38 = vector.load %arg6[%c32, %c0_55] : memref<36x256xf32, #tpu.memory_space<vmem>>, vector<4x256xf32>
    tpu.vector_store %arg6[%c32, %c0_55], %37 {strides = array<i32>} : memref<36x256xf32, #tpu.memory_space<vmem>>, vector<4x256xf32>,
    %c0_56 = arith.constant 0 : index
    %c0_57 = arith.constant 0 : index
    %39 = vector.load %arg2[%c0_56, %c0_57] : memref<4x36xf32, #tpu.memory_space<vmem>>, vector<4x36xf32>
    %c0_58 = arith.constant 0 : index
    %c0_59 = arith.constant 0 : index
    %40 = vector.load %arg6[%c0_58, %c0_59] : memref<36x256xf32, #tpu.memory_space<vmem>>, vector<36x256xf32>
    %cst = arith.constant dense<0.000000e+00> : vector<4x256xf32>
    %41 = tpu.matmul %39, %40, %cst {dimension_numbers = #tpu.dot_dimension_numbers<[1], [0], [0], [1], [0, 0, 1, 1], [], []>} : vector<4x36xf32>, vector<36x256xf32>, vector<4x256xf32> -> vector<4x256xf32>
    %cst_60 = arith.constant dense<0.000000e+00> : vector<4xf32>
    %42 = vector.multi_reduction <add>, %41, %cst_60 [1] : vector<4x256xf32> to vector<4xf32>
    %43 = vector.shape_cast %42 : vector<4xf32> to vector<4x1xf32>
    %cst_61 = arith.constant 2.560000e+02 : f32
    %44 = vector.broadcast %cst_61 : f32 to vector<4x1xf32>
    %45 = arith.divf %43, %44 : vector<4x1xf32>
    %46 = vector.broadcast %45 : vector<4x1xf32> to vector<4x256xf32>
    %47 = arith.subf %41, %46 : vector<4x256xf32>
    %48 = arith.mulf %47, %47 : vector<4x256xf32>
    %cst_62 = arith.constant dense<0.000000e+00> : vector<4xf32>
    %49 = vector.multi_reduction <add>, %48, %cst_62 [1] : vector<4x256xf32> to vector<4xf32>
    %50 = vector.shape_cast %49 : vector<4xf32> to vector<4x1xf32>
    %cst_63 = arith.constant 2.560000e+02 : f32
    %51 = vector.broadcast %cst_63 : f32 to vector<4x1xf32>
    %52 = arith.divf %50, %51 : vector<4x1xf32>
    %cst_64 = arith.constant 9.99999974E-6 : f32
    %53 = vector.broadcast %cst_64 : f32 to vector<4x1xf32>
    %54 = arith.addf %52, %53 : vector<4x1xf32>
    %55 = math.rsqrt %54 : vector<4x1xf32>
    %56 = vector.broadcast %55 : vector<4x1xf32> to vector<4x256xf32>
    %57 = arith.mulf %47, %56 : vector<4x256xf32>
    %cst_65 = arith.constant 0.000000e+00 : f32
    %58 = vector.broadcast %cst_65 : f32 to vector<4x256xf32>
    %59 = arith.maximumf %57, %58 : vector<4x256xf32>
    %60 = vector.shape_cast %59 : vector<4x256xf32> to vector<4x16x16xf32>
    %c0_66 = arith.constant 0 : index
    %c1_67 = arith.constant 1 : index
    %c1_68 = arith.constant 1 : index
    %61 = vector.load %arg5[%c0_66, %c1_67, %c1_68] : memref<4x18x18xf32, #tpu.memory_space<vmem>>, vector<4x16x16xf32>
    tpu.vector_store %arg5[%c0_66, %c1_67, %c1_68], %60 {strides = array<i32>} : memref<4x18x18xf32, #tpu.memory_space<vmem>>, vector<4x16x16xf32>,
    %62 = vector.extract_strided_slice %60 {offsets = [0, 1, 0], sizes = [4, 1, 16], strides = [1, 1, 1]} : vector<4x16x16xf32> to vector<4x1x16xf32>
    %c0_69 = arith.constant 0 : index
    %c0_70 = arith.constant 0 : index
    %c1_71 = arith.constant 1 : index
    %63 = vector.load %arg5[%c0_69, %c0_70, %c1_71] : memref<4x18x18xf32, #tpu.memory_space<vmem>>, vector<4x1x16xf32>
    tpu.vector_store %arg5[%c0_69, %c0_70, %c1_71], %62 {strides = array<i32>} : memref<4x18x18xf32, #tpu.memory_space<vmem>>, vector<4x1x16xf32>,
    %64 = vector.extract_strided_slice %60 {offsets = [0, 14, 0], sizes = [4, 1, 16], strides = [1, 1, 1]} : vector<4x16x16xf32> to vector<4x1x16xf32>
    %c0_72 = arith.constant 0 : index
    %c17_73 = arith.constant 17 : index
    %c1_74 = arith.constant 1 : index
    %65 = vector.load %arg5[%c0_72, %c17_73, %c1_74] : memref<4x18x18xf32, #tpu.memory_space<vmem>>, vector<4x1x16xf32>
    tpu.vector_store %arg5[%c0_72, %c17_73, %c1_74], %64 {strides = array<i32>} : memref<4x18x18xf32, #tpu.memory_space<vmem>>, vector<4x1x16xf32>,
    %c0_75 = arith.constant 0 : index
    %c0_76 = arith.constant 0 : index
    %c2_77 = arith.constant 2 : index
    %66 = vector.load %arg5[%c0_75, %c0_76, %c2_77] : memref<4x18x18xf32, #tpu.memory_space<vmem>>, vector<4x18x1xf32>
    %c0_78 = arith.constant 0 : index
    %c0_79 = arith.constant 0 : index
    %c0_80 = arith.constant 0 : index
    %67 = vector.load %arg5[%c0_78, %c0_79, %c0_80] : memref<4x18x18xf32, #tpu.memory_space<vmem>>, vector<4x18x1xf32>
    tpu.vector_store %arg5[%c0_78, %c0_79, %c0_80], %66 {strides = array<i32>} : memref<4x18x18xf32, #tpu.memory_space<vmem>>, vector<4x18x1xf32>,
    %c0_81 = arith.constant 0 : index
    %c0_82 = arith.constant 0 : index
    %c15_83 = arith.constant 15 : index
    %68 = vector.load %arg5[%c0_81, %c0_82, %c15_83] : memref<4x18x18xf32, #tpu.memory_space<vmem>>, vector<4x18x1xf32>
    %c0_84 = arith.constant 0 : index
    %c0_85 = arith.constant 0 : index
    %c17_86 = arith.constant 17 : index
    %69 = vector.load %arg5[%c0_84, %c0_85, %c17_86] : memref<4x18x18xf32, #tpu.memory_space<vmem>>, vector<4x18x1xf32>
    tpu.vector_store %arg5[%c0_84, %c0_85, %c17_86], %68 {strides = array<i32>} : memref<4x18x18xf32, #tpu.memory_space<vmem>>, vector<4x18x1xf32>,
    %c0_87 = arith.constant 0 : index
    %c0_88 = arith.constant 0 : index
    %c0_89 = arith.constant 0 : index
    %70 = vector.load %arg5[%c0_87, %c0_88, %c0_89] : memref<4x18x18xf32, #tpu.memory_space<vmem>>, vector<4x16x16xf32>
    %71 = vector.shape_cast %70 : vector<4x16x16xf32> to vector<4x256xf32>
    %c0_90 = arith.constant 0 : index
    %c0_91 = arith.constant 0 : index
    %72 = vector.load %arg6[%c0_90, %c0_91] : memref<36x256xf32, #tpu.memory_space<vmem>>, vector<4x256xf32>
    tpu.vector_store %arg6[%c0_90, %c0_91], %71 {strides = array<i32>} : memref<36x256xf32, #tpu.memory_space<vmem>>, vector<4x256xf32>,
    %c0_92 = arith.constant 0 : index
    %c0_93 = arith.constant 0 : index
    %c1_94 = arith.constant 1 : index
    %73 = vector.load %arg5[%c0_92, %c0_93, %c1_94] : memref<4x18x18xf32, #tpu.memory_space<vmem>>, vector<4x16x16xf32>
    %74 = vector.shape_cast %73 : vector<4x16x16xf32> to vector<4x256xf32>
    %c4_95 = arith.constant 4 : index
    %c0_96 = arith.constant 0 : index
    %75 = vector.load %arg6[%c4_95, %c0_96] : memref<36x256xf32, #tpu.memory_space<vmem>>, vector<4x256xf32>
    tpu.vector_store %arg6[%c4_95, %c0_96], %74 {strides = array<i32>} : memref<36x256xf32, #tpu.memory_space<vmem>>, vector<4x256xf32>,
    %c0_97 = arith.constant 0 : index
    %c0_98 = arith.constant 0 : index
    %c2_99 = arith.constant 2 : index
    %76 = vector.load %arg5[%c0_97, %c0_98, %c2_99] : memref<4x18x18xf32, #tpu.memory_space<vmem>>, vector<4x16x16xf32>
    %77 = vector.shape_cast %76 : vector<4x16x16xf32> to vector<4x256xf32>
    %c8_100 = arith.constant 8 : index
    %c0_101 = arith.constant 0 : index
    %78 = vector.load %arg6[%c8_100, %c0_101] : memref<36x256xf32, #tpu.memory_space<vmem>>, vector<4x256xf32>
    tpu.vector_store %arg6[%c8_100, %c0_101], %77 {strides = array<i32>} : memref<36x256xf32, #tpu.memory_space<vmem>>, vector<4x256xf32>,
    %c0_102 = arith.constant 0 : index
    %c1_103 = arith.constant 1 : index
    %c0_104 = arith.constant 0 : index
    %79 = vector.load %arg5[%c0_102, %c1_103, %c0_104] : memref<4x18x18xf32, #tpu.memory_space<vmem>>, vector<4x16x16xf32>
    %80 = vector.shape_cast %79 : vector<4x16x16xf32> to vector<4x256xf32>
    %c12_105 = arith.constant 12 : index
    %c0_106 = arith.constant 0 : index
    %81 = vector.load %arg6[%c12_105, %c0_106] : memref<36x256xf32, #tpu.memory_space<vmem>>, vector<4x256xf32>
    tpu.vector_store %arg6[%c12_105, %c0_106], %80 {strides = array<i32>} : memref<36x256xf32, #tpu.memory_space<vmem>>, vector<4x256xf32>,
    %c0_107 = arith.constant 0 : index
    %c1_108 = arith.constant 1 : index
    %c1_109 = arith.constant 1 : index
    %82 = vector.load %arg5[%c0_107, %c1_108, %c1_109] : memref<4x18x18xf32, #tpu.memory_space<vmem>>, vector<4x16x16xf32>
    %83 = vector.shape_cast %82 : vector<4x16x16xf32> to vector<4x256xf32>
    %c16_110 = arith.constant 16 : index
    %c0_111 = arith.constant 0 : index
    %84 = vector.load %arg6[%c16_110, %c0_111] : memref<36x256xf32, #tpu.memory_space<vmem>>, vector<4x256xf32>
    tpu.vector_store %arg6[%c16_110, %c0_111], %83 {strides = array<i32>} : memref<36x256xf32, #tpu.memory_space<vmem>>, vector<4x256xf32>,
    %c0_112 = arith.constant 0 : index
    %c1_113 = arith.constant 1 : index
    %c2_114 = arith.constant 2 : index
    %85 = vector.load %arg5[%c0_112, %c1_113, %c2_114] : memref<4x18x18xf32, #tpu.memory_space<vmem>>, vector<4x16x16xf32>
    %86 = vector.shape_cast %85 : vector<4x16x16xf32> to vector<4x256xf32>
    %c20_115 = arith.constant 20 : index
    %c0_116 = arith.constant 0 : index
    %87 = vector.load %arg6[%c20_115, %c0_116] : memref<36x256xf32, #tpu.memory_space<vmem>>, vector<4x256xf32>
    tpu.vector_store %arg6[%c20_115, %c0_116], %86 {strides = array<i32>} : memref<36x256xf32, #tpu.memory_space<vmem>>, vector<4x256xf32>,
    %c0_117 = arith.constant 0 : index
    %c2_118 = arith.constant 2 : index
    %c0_119 = arith.constant 0 : index
    %88 = vector.load %arg5[%c0_117, %c2_118, %c0_119] : memref<4x18x18xf32, #tpu.memory_space<vmem>>, vector<4x16x16xf32>
    %89 = vector.shape_cast %88 : vector<4x16x16xf32> to vector<4x256xf32>
    %c24_120 = arith.constant 24 : index
    %c0_121 = arith.constant 0 : index
    %90 = vector.load %arg6[%c24_120, %c0_121] : memref<36x256xf32, #tpu.memory_space<vmem>>, vector<4x256xf32>
    tpu.vector_store %arg6[%c24_120, %c0_121], %89 {strides = array<i32>} : memref<36x256xf32, #tpu.memory_space<vmem>>, vector<4x256xf32>,
    %c0_122 = arith.constant 0 : index
    %c2_123 = arith.constant 2 : index
    %c1_124 = arith.constant 1 : index
    %91 = vector.load %arg5[%c0_122, %c2_123, %c1_124] : memref<4x18x18xf32, #tpu.memory_space<vmem>>, vector<4x16x16xf32>
    %92 = vector.shape_cast %91 : vector<4x16x16xf32> to vector<4x256xf32>
    %c28_125 = arith.constant 28 : index
    %c0_126 = arith.constant 0 : index
    %93 = vector.load %arg6[%c28_125, %c0_126] : memref<36x256xf32, #tpu.memory_space<vmem>>, vector<4x256xf32>
    tpu.vector_store %arg6[%c28_125, %c0_126], %92 {strides = array<i32>} : memref<36x256xf32, #tpu.memory_space<vmem>>, vector<4x256xf32>,
    %c0_127 = arith.constant 0 : index
    %c2_128 = arith.constant 2 : index
    %c2_129 = arith.constant 2 : index
    %94 = vector.load %arg5[%c0_127, %c2_128, %c2_129] : memref<4x18x18xf32, #tpu.memory_space<vmem>>, vector<4x16x16xf32>
    %95 = vector.shape_cast %94 : vector<4x16x16xf32> to vector<4x256xf32>
    %c32_130 = arith.constant 32 : index
    %c0_131 = arith.constant 0 : index
    %96 = vector.load %arg6[%c32_130, %c0_131] : memref<36x256xf32, #tpu.memory_space<vmem>>, vector<4x256xf32>
    tpu.vector_store %arg6[%c32_130, %c0_131], %95 {strides = array<i32>} : memref<36x256xf32, #tpu.memory_space<vmem>>, vector<4x256xf32>,
    %c0_132 = arith.constant 0 : index
    %c0_133 = arith.constant 0 : index
    %97 = vector.load %arg3[%c0_132, %c0_133] : memref<4x36xf32, #tpu.memory_space<vmem>>, vector<4x36xf32>
    %c0_134 = arith.constant 0 : index
    %c0_135 = arith.constant 0 : index
    %98 = vector.load %arg6[%c0_134, %c0_135] : memref<36x256xf32, #tpu.memory_space<vmem>>, vector<36x256xf32>
    %cst_136 = arith.constant dense<0.000000e+00> : vector<4x256xf32>
    %99 = tpu.matmul %97, %98, %cst_136 {dimension_numbers = #tpu.dot_dimension_numbers<[1], [0], [0], [1], [0, 0, 1, 1], [], []>} : vector<4x36xf32>, vector<36x256xf32>, vector<4x256xf32> -> vector<4x256xf32>
    %cst_137 = arith.constant dense<0.000000e+00> : vector<4xf32>
    %100 = vector.multi_reduction <add>, %99, %cst_137 [1] : vector<4x256xf32> to vector<4xf32>
    %101 = vector.shape_cast %100 : vector<4xf32> to vector<4x1xf32>
    %cst_138 = arith.constant 2.560000e+02 : f32
    %102 = vector.broadcast %cst_138 : f32 to vector<4x1xf32>
    %103 = arith.divf %101, %102 : vector<4x1xf32>
    %104 = vector.broadcast %103 : vector<4x1xf32> to vector<4x256xf32>
    %105 = arith.subf %99, %104 : vector<4x256xf32>
    %106 = arith.mulf %105, %105 : vector<4x256xf32>
    %cst_139 = arith.constant dense<0.000000e+00> : vector<4xf32>
    %107 = vector.multi_reduction <add>, %106, %cst_139 [1] : vector<4x256xf32> to vector<4xf32>
    %108 = vector.shape_cast %107 : vector<4xf32> to vector<4x1xf32>
    %cst_140 = arith.constant 2.560000e+02 : f32
    %109 = vector.broadcast %cst_140 : f32 to vector<4x1xf32>
    %110 = arith.divf %108, %109 : vector<4x1xf32>
    %cst_141 = arith.constant 9.99999974E-6 : f32
    %111 = vector.broadcast %cst_141 : f32 to vector<4x1xf32>
    %112 = arith.addf %110, %111 : vector<4x1xf32>
    %113 = math.rsqrt %112 : vector<4x1xf32>
    %114 = vector.broadcast %113 : vector<4x1xf32> to vector<4x256xf32>
    %115 = arith.mulf %105, %114 : vector<4x256xf32>
    %116 = arith.addf %1, %115 : vector<4x256xf32>
    %c0_142 = arith.constant 0 : index
    %c0_143 = arith.constant 0 : index
    %c0_144 = arith.constant 0 : index
    %117 = vector.load %arg4[%c0_142, %c0_143, %c0_144] : memref<1x4x256xf32, #tpu.memory_space<vmem>>, vector<1x4x256xf32>
    %118 = vector.shape_cast %117 : vector<1x4x256xf32> to vector<4x256xf32>
    %119 = vector.shape_cast %116 : vector<4x256xf32> to vector<1x4x256xf32>
    tpu.vector_store %arg4[%c0_142, %c0_143, %c0_144], %119 {strides = array<i32>} : memref<1x4x256xf32, #tpu.memory_space<vmem>>, vector<1x4x256xf32>,
    return
  }
  func.func @transform_0(%arg0: i32) -> (i32, i32, i32) {
    %c0_i32 = arith.constant 0 : i32
    %c0_i32_0 = arith.constant 0 : i32
    %c0_i32_1 = arith.constant 0 : i32
    return %arg0, %c0_i32, %c0_i32_0 : i32, i32, i32
  }
  func.func @transform_1(%arg0: i32) -> (i32, i32) {
    %c0_i32 = arith.constant 0 : i32
    %c0_i32_0 = arith.constant 0 : i32
    %c0_i32_1 = arith.constant 0 : i32
    return %c0_i32, %c0_i32_0 : i32, i32
  }
  func.func @transform_2(%arg0: i32) -> (i32, i32) {
    %c0_i32 = arith.constant 0 : i32
    %c0_i32_0 = arith.constant 0 : i32
    %c0_i32_1 = arith.constant 0 : i32
    return %c0_i32, %c0_i32_0 : i32, i32
  }
  func.func @transform_3(%arg0: i32) -> (i32, i32, i32) {
    %c0_i32 = arith.constant 0 : i32
    %c0_i32_0 = arith.constant 0 : i32
    %c0_i32_1 = arith.constant 0 : i32
    return %arg0, %c0_i32, %c0_i32_0 : i32, i32, i32
  }
}

</mosaic_0001>

<llo_original>
// kernel: resnet_block_forward.1
$region0: #{resnet_block_forward.1}
  #allocation0 [shape = 'u32[]', space=smem, size = 0x4, offset = 0x4, fixed_abs, tag = 'smem constant byte address 0x4 - core index']
  #allocation1 [shape = 'u32[72,128]{1,0:T(1,128)}', space=vmem, size = 0x9000, scoped, tag = 'internal scratch']
  #allocation2 [shape = 'f32[4,18,18]{2,1,0:T(8,128)}', space=vmem, size = 0xc000, scoped, tag = 'scratch operand']
  #allocation3 [shape = 'f32[36,256]{1,0:T(8,128)}', space=vmem, size = 0xa000, scoped, tag = 'scratch operand']
  %s0 = inlined_call_operand.vmem [shape: f32[2,4,256], index: 0, kind: input, shape index: {}]
  %s1 = inlined_call_operand.vmem [shape: f32[4,36], index: 1, kind: input, shape index: {}]
  %s2 = inlined_call_operand.vmem [shape: f32[4,36], index: 2, kind: input, shape index: {}]
  %s3 = inlined_call_operand.vmem [shape: f32[2,4,256], index: 3, kind: output, shape index: {}]
  %s4 = sld [smem:[#allocation0]]
  $region45: #{resnet_block_forward.1} parent=0
    _
  %s6 = ssub.s32 1, %s4
  %s7 = scalar_select 0, %s6, %s4
  loop: start=0, step=1, limit=4
  $region2: #{resnet_block_forward.1} parent=0 // loop_pre_header
    _
  $region3: #{resnet_block_forward.1} parent=0 // loop_header
    %s9 = sphi 0, %s13
    %p10 = scmp.ge.s32.totalorder %s9, 4
    %s19 = sphi 0, %s21
    %s22 = sphi 0, %s19
    %s23 = sphi 0, %s22
    %s39 = sphi 0, %s23
    %s43 = sphi 0, %s43
    %s45 = sphi 0, %s43
    %s46 = sphi 0, %s45
    %s60 = sphi 0, %s46
    %s64 = sphi 0, %s64
    %s66 = sphi 0, %s64
    %s67 = sphi 0, %s66
    %s81 = sphi 0, %s67
    %s87 = sphi 0, %s89
    %s90 = sphi 0, %s87
    %s91 = sphi 0, %s90
    %s107 = sphi 0, %s91
  $region4: #{resnet_block_forward.1} parent=0 // loop_header_branch
    %12 = sbr.rel (%p10) target = $region8
  $region5: #{resnet_block_forward.1} parent=0 // loop_body
    %s14 = ssub.s32 %s9, 1
    %s15 = ssub.s32 %s9, 2
    %s16 = sadd.s32 %s9, 1
    %s17 = ssub.s32 %s9, %s16
    %p18 = scmp.eq.s32.totalorder %s17, 0
    %s20 = sadd.s32 %s19, 1
    %s21 = scalar_select %p18, %s19, %s20
    %p24 = pneg %p18
    %p25 = scmp.eq.s32.totalorder %s9, 1
    %p26 = por %p24, %p25
    %p27 = scmp.ne.s32.totalorder %s19, %s22
    %p28 = scmp.eq.s32.totalorder %s9, 0
    %p29 = por %p27, %p28
    %p30 = scmp.ne.s32.totalorder %s19, %s22
    %p31 = scmp.eq.s32.totalorder %s14, 1
    %p32 = por %p30, %p31
    %p33 = scmp.ne.s32.totalorder %s22, %s23
    %p34 = scmp.eq.s32.totalorder %s14, 0
    %p35 = por %p33, %p34
    %p36 = scmp.ne.s32.totalorder %s22, %s23
    %p37 = scmp.eq.s32.totalorder %s15, 1
    %p38 = por %p36, %p37
    %p40 = scmp.ne.s32.totalorder %s23, %s39
    %p41 = scmp.eq.s32.totalorder %s15, 0
    %p42 = por %p40, %p41
    %s44 = sadd.s32 %s43, 1
    %p47 = scmp.eq.s32.totalorder %s9, 1
    %p48 = scmp.ne.s32.totalorder %s43, %s45
    %p49 = scmp.eq.s32.totalorder %s9, 0
    %p50 = por %p48, %p49
    %p51 = scmp.ne.s32.totalorder %s43, %s45
    %p52 = scmp.eq.s32.totalorder %s14, 1
    %p53 = por %p51, %p52
    %p54 = scmp.ne.s32.totalorder %s45, %s46
    %p55 = scmp.eq.s32.totalorder %s14, 0
    %p56 = por %p54, %p55
    %p57 = scmp.ne.s32.totalorder %s45, %s46
    %p58 = scmp.eq.s32.totalorder %s15, 1
    %p59 = por %p57, %p58
    %p61 = scmp.ne.s32.totalorder %s46, %s60
    %p62 = scmp.eq.s32.totalorder %s15, 0
    %p63 = por %p61, %p62
    %s65 = sadd.s32 %s64, 1
    %p68 = scmp.eq.s32.totalorder %s9, 1
    %p69 = scmp.ne.s32.totalorder %s64, %s66
    %p70 = scmp.eq.s32.totalorder %s9, 0
    %p71 = por %p69, %p70
    %p72 = scmp.ne.s32.totalorder %s64, %s66
    %p73 = scmp.eq.s32.totalorder %s14, 1
    %p74 = por %p72, %p73
    %p75 = scmp.ne.s32.totalorder %s66, %s67
    %p76 = scmp.eq.s32.totalorder %s14, 0
    %p77 = por %p75, %p76
    %p78 = scmp.ne.s32.totalorder %s66, %s67
    %p79 = scmp.eq.s32.totalorder %s15, 1
    %p80 = por %p78, %p79
    %p82 = scmp.ne.s32.totalorder %s67, %s81
    %p83 = scmp.eq.s32.totalorder %s15, 0
    %p84 = por %p82, %p83
    %s85 = ssub.s32 %s9, %s16
    %p86 = scmp.eq.s32.totalorder %s85, 0
    %s88 = sadd.s32 %s87, 1
    %s89 = scalar_select %p86, %s87, %s88
    %p92 = pneg %p86
    %p93 = scmp.eq.s32.totalorder %s9, 1
    %p94 = por %p92, %p93
    %p95 = scmp.ne.s32.totalorder %s87, %s90
    %p96 = scmp.eq.s32.totalorder %s9, 0
    %p97 = por %p95, %p96
    %p98 = scmp.ne.s32.totalorder %s87, %s90
    %p99 = scmp.eq.s32.totalorder %s14, 1
    %p100 = por %p98, %p99
    %p101 = scmp.ne.s32.totalorder %s90, %s91
    %p102 = scmp.eq.s32.totalorder %s14, 0
    %p103 = por %p101, %p102
    %p104 = scmp.ne.s32.totalorder %s90, %s91
    %p105 = scmp.eq.s32.totalorder %s15, 1
    %p106 = por %p104, %p105
    %p108 = scmp.ne.s32.totalorder %s91, %s107
    %p109 = scmp.eq.s32.totalorder %s15, 0
    %p110 = por %p108, %p109
    %p111 = scmp.le.s32.totalorder 1, %s9
    %p112 = scmp.lt.s32.totalorder %s9, 3
    %p113 = pnand %p111, %p112
    %p114 = pneg %p113
    // Predicated region
    $region9: #{resnet_block_forward.1} parent=5 // pred_check
      _
    $region10: #{resnet_block_forward.1} parent=5 // pred_check_branch
      %116 = sbr.rel (%p113) target = $region12
    $region11: #{resnet_block_forward.1} parent=5 // pred_region
      %s117 = ssub.s32 %s9, 1
      // Predicated region
      $region13: #{resnet_block_forward.1} parent=11 // pred_check
        %p118 = pneg %p56
      $region14: #{resnet_block_forward.1} parent=11 // pred_check_branch
        %120 = sbr.rel (%p118) target = $region16
      $region15: #{resnet_block_forward.1} parent=11 // pred_region
        _
      $region16: #{resnet_block_forward.1} parent=11 // pred_fallthru
        _
      // Predicated region
      $region17: #{resnet_block_forward.1} parent=11 // pred_check
        %p121 = pneg %p77
      $region18: #{resnet_block_forward.1} parent=11 // pred_check_branch
        %123 = sbr.rel (%p121) target = $region20
      $region19: #{resnet_block_forward.1} parent=11 // pred_region
        _
      $region20: #{resnet_block_forward.1} parent=11 // pred_fallthru
        _
    $region12: #{resnet_block_forward.1} parent=5 // pred_fallthru
      _
    %p124 = scmp.lt.s32.totalorder %s9, 2
    // Predicated region
    $region21: #{resnet_block_forward.1} parent=5 // pred_check
      %p125 = pneg %p124
    $region22: #{resnet_block_forward.1} parent=5 // pred_check_branch
      %127 = sbr.rel (%p125) target = $region24
    $region23: #{resnet_block_forward.1} parent=5 // pred_region
      // Predicated region
      $region25: #{resnet_block_forward.1} parent=23 // pred_check
        %p128 = pneg %p29
      $region26: #{resnet_block_forward.1} parent=23 // pred_check_branch
        %130 = sbr.rel (%p128) target = $region28
      $region27: #{resnet_block_forward.1} parent=23 // pred_region
        %p131 = scmp.lt.s32.totalorder %s9, 1
        %s132 = scalar_select %p131, %s9, 1
        %s133 = smul.addr %s132, 2
        %s134 = smul.addr %s133, 4
        %s135 = scalar_lea.vmem %s0, %s134
      $region28: #{resnet_block_forward.1} parent=23 // pred_fallthru
        _
    $region24: #{resnet_block_forward.1} parent=5 // pred_fallthru
      _
    %p136 = scmp.le.s32.totalorder 1, %s9
    %p137 = scmp.lt.s32.totalorder %s9, 3
    %p138 = pnand %p136, %p137
    %p139 = pneg %p138
    // Predicated region
    $region29: #{resnet_block_forward.1} parent=5 // pred_check
      _
    $region30: #{resnet_block_forward.1} parent=5 // pred_check_branch
      %141 = sbr.rel (%p138) target = $region32
    $region31: #{resnet_block_forward.1} parent=5 // pred_region
      %s142 = ssub.s32 %s9, 1
      %p143 = scmp.lt.s32.totalorder %s14, 1
      %s144 = scalar_select %p143, %s14, 1
      %s145 = smul.addr %s144, 2
      %s146 = smul.addr %s145, 4
      %s147 = scalar_lea.vmem %s0, %s146
      %p148 = pneg %p35
      %p149 = pneg %p32
      %p150 = pneg %p56
      %p151 = pneg %p53
      %p152 = pneg %p77
      %p153 = pneg %p74
      %p154 = pneg %p103
      %p155 = pneg %p100
      %p156 = scmp.lt.s32.totalorder %s14, 1
      %s157 = scalar_select %p156, %s14, 1
      %s158 = smul.addr %s157, 2
      %s159 = smul.addr %s158, 4
      %s160 = scalar_lea.vmem %s3, %s159
      %p161 = scmp.lt.s32.totalorder %s14, 1
      %s162 = scalar_select %p161, %s14, 1
      %s163 = smul.addr %s162, 2
      %s164 = smul.addr %s163, 4
      %s165 = scalar_lea.vmem %s0, %s164
      %p166 = scmp.lt.s32.totalorder %s14, 1
      %s167 = scalar_select %p166, %s14, 1
      %s168 = smul.addr %s167, 2
      %s169 = smul.addr %s168, 4
      %s170 = scalar_lea.vmem %s3, %s169
      %v171 = vld [vmem:[%s165] sm:$0xff]
      %v173 = vrot.slane %v171, 4
      %175 = vrot.lane.b32.xlu0 %v171, 112
      %v176 = vpop.permute.xlu0 %175
      %v177 = vrot.slane %v176, 4
      %179 = vrot.lane.b32.xlu0 %v171, 96
      %v180 = vpop.permute.xlu0 %179
      %v181 = vrot.slane %v180, 4
      %183 = vrot.lane.b32.xlu0 %v171, 80
      %v184 = vpop.permute.xlu0 %183
      %v185 = vrot.slane %v184, 4
      %187 = vrot.lane.b32.xlu0 %v171, 64
      %v188 = vpop.permute.xlu0 %187
      %v189 = vrot.slane %v188, 4
      %191 = vrot.lane.b32.xlu0 %v171, 48
      %v192 = vpop.permute.xlu0 %191
      %v193 = vrot.slane %v192, 4
      %195 = vrot.lane.b32.xlu0 %v171, 32
      %v196 = vpop.permute.xlu0 %195
      %v197 = vrot.slane %v196, 4
      %199 = vrot.lane.b32.xlu0 %v171, 16
      %v200 = vpop.permute.xlu0 %199
      %v201 = vrot.slane %v200, 4
      %v210 = vrot.slane %v180, 4
      %vm211 = vcmask 1047556
      %v212 = vsel %vm211, %v210, %v171
      %v214 = vunpack.c.l.s4 1983009808
      %v215 = vunpack.c.0.s8 %v214
      %v216 = vperm.slane %v212, %v215
      %v217 = vrot.slane %v184, 4
      %v218 = vsel %vm211, %v217, %v176
      %v220 = vunpack.c.l.s4 1983009808
      %v221 = vunpack.c.0.s8 %v220
      %v222 = vperm.slane %v218, %v221
      %v223 = vrot.slane %v222, 4
      %v224 = vsel %vm211, %v223, %v216
      %v225 = vrot.slane %v216, 4
      %v226 = vsel %vm211, %v222, %v225
      %v228 = vunpack.c.l.s4 1934713408
      %v229 = vunpack.c.0.s8 %v228
      %v230 = vperm.slane %v224, %v229
      %v232 = vunpack.c.l.s4 1934713408
      %v233 = vunpack.c.0.s8 %v232
      %v234 = vperm.slane %v226, %v233
      %v235 = vrot.slane %v230, 4
      %v236 = vsel %vm211, 0.0, %v235
      %v237 = vrot.slane %v234, 4
      %v238 = vsel %vm211, 0.0, %v237
      %v239 = vrot.slane %v196, 4
      %v240 = vsel %vm211, %v239, %v188
      %v242 = vunpack.c.l.s4 1983009808
      %v243 = vunpack.c.0.s8 %v242
      %v244 = vperm.slane %v240, %v243
      %v245 = vrot.slane %v200, 4
      %v246 = vsel %vm211, %v245, %v192
      %v248 = vunpack.c.l.s4 1983009808
      %v249 = vunpack.c.0.s8 %v248
      %v250 = vperm.slane %v246, %v249
      %v251 = vrot.slane %v250, 4
      %v252 = vsel %vm211, %v251, %v244
      %v253 = vrot.slane %v244, 4
      %v254 = vsel %vm211, %v250, %v253
      %v256 = vunpack.c.l.s4 1934713408
      %v257 = vunpack.c.0.s8 %v256
      %v258 = vperm.slane %v252, %v257
      %v260 = vunpack.c.l.s4 1934713408
      %v261 = vunpack.c.0.s8 %v260
      %v262 = vperm.slane %v254, %v261
      %v263 = vrot.slane %v258, 4
      %v264 = vsel %vm211, 0.0, %v263
      %v265 = vrot.slane %v262, 4
      %v266 = vsel %vm211, 0.0, %v265
      %v267 = vrot.slane %v181, 4
      %v268 = vsel %vm211, %v267, %v173
      %v270 = vunpack.c.l.s4 1983009808
      %v271 = vunpack.c.0.s8 %v270
      %v272 = vperm.slane %v268, %v271
      %v273 = vrot.slane %v185, 4
      %v274 = vsel %vm211, %v273, %v177
      %v276 = vunpack.c.l.s4 1983009808
      %v277 = vunpack.c.0.s8 %v276
      %v278 = vperm.slane %v274, %v277
      %v279 = vrot.slane %v278, 4
      %v280 = vsel %vm211, %v279, %v272
      %v281 = vrot.slane %v272, 4
      %v282 = vsel %vm211, %v278, %v281
      %v284 = vunpack.c.l.s4 1934713408
      %v285 = vunpack.c.0.s8 %v284
      %v286 = vperm.slane %v280, %v285
      %v288 = vunpack.c.l.s4 1934713408
      %v289 = vunpack.c.0.s8 %v288
      %v290 = vperm.slane %v282, %v289
      %v291 = vrot.slane %v286, 4
      %v292 = vsel %vm211, 0.0, %v291
      %v293 = vrot.slane %v290, 4
      %v294 = vsel %vm211, 0.0, %v293
      %v295 = vrot.slane %v197, 4
      %v296 = vsel %vm211, %v295, %v189
      %v298 = vunpack.c.l.s4 1983009808
      %v299 = vunpack.c.0.s8 %v298
      %v300 = vperm.slane %v296, %v299
      %v301 = vrot.slane %v201, 4
      %v302 = vsel %vm211, %v301, %v193
      %v304 = vunpack.c.l.s4 1983009808
      %v305 = vunpack.c.0.s8 %v304
      %v306 = vperm.slane %v302, %v305
      %v307 = vrot.slane %v306, 4
      %v308 = vsel %vm211, %v307, %v300
      %v309 = vrot.slane %v300, 4
      %v310 = vsel %vm211, %v306, %v309
      %v312 = vunpack.c.l.s4 1934713408
      %v313 = vunpack.c.0.s8 %v312
      %v314 = vperm.slane %v308, %v313
      %v316 = vunpack.c.l.s4 1934713408
      %v317 = vunpack.c.0.s8 %v316
      %v318 = vperm.slane %v310, %v317
      %v319 = vrot.slane %v314, 4
      %v320 = vsel %vm211, 0.0, %v319
      %v321 = vrot.slane %v318, 4
      %v322 = vsel %vm211, 0.0, %v321
      %339 = vst [vmem:[#allocation1] ss:$2 sm:$0xff] %v230
      %s340 = scalar_lea.vmem [#allocation1], 1
      %341 = vst [vmem:[%s340] ss:$2 sm:$0xff] %v258
      %s342 = scalar_lea.vmem [#allocation1], 16
      %343 = vst [vmem:[%s342] ss:$2 sm:$0xff] %v286
      %s344 = scalar_lea.vmem [#allocation1], 17
      %345 = vst [vmem:[%s344] ss:$2 sm:$0xff] %v314
      %v346 = vld.sshfl [vmem:[#allocation1] sm:$0xff pattern:$0x75316420]
      %v347 = vld.sshfl [vmem:[#allocation1 + $0x10] sm:$0xff pattern:$0x75316420]
      %s348 = scalar_lea.vmem [#allocation1], 32
      %349 = vst [vmem:[%s348] ss:$2 sm:$0xff] %v236
      %s350 = scalar_lea.vmem [#allocation1], 33
      %351 = vst [vmem:[%s350] ss:$2 sm:$0xff] %v264
      %s352 = scalar_lea.vmem [#allocation1], 48
      %353 = vst [vmem:[%s352] ss:$2 sm:$0xff] %v292
      %s354 = scalar_lea.vmem [#allocation1], 49
      %355 = vst [vmem:[%s354] ss:$2 sm:$0xff] %v320
      %v356 = vld.sshfl [vmem:[#allocation1 + $0x20] sm:$0xff pattern:$0x75316420]
      %v357 = vld.sshfl [vmem:[#allocation1 + $0x30] sm:$0xff pattern:$0x75316420]
      %358 = vst [vmem:[#allocation1] ss:$2 sm:$0xff] %v234
      %359 = vst [vmem:[%s340] ss:$2 sm:$0xff] %v262
      %360 = vst [vmem:[%s342] ss:$2 sm:$0xff] %v290
      %361 = vst [vmem:[%s344] ss:$2 sm:$0xff] %v318
      %v362 = vld.sshfl [vmem:[#allocation1] sm:$0xff pattern:$0x75316420]
      %v363 = vld.sshfl [vmem:[#allocation1 + $0x10] sm:$0xff pattern:$0x75316420]
      %364 = vst [vmem:[%s348] ss:$2 sm:$0xff] %v238
      %365 = vst [vmem:[%s350] ss:$2 sm:$0xff] %v266
      %366 = vst [vmem:[%s352] ss:$2 sm:$0xff] %v294
      %367 = vst [vmem:[%s354] ss:$2 sm:$0xff] %v322
      %v368 = vld.sshfl [vmem:[#allocation1 + $0x20] sm:$0xff pattern:$0x75316420]
      %v369 = vld.sshfl [vmem:[#allocation1 + $0x30] sm:$0xff pattern:$0x75316420]
      %370 = vrot.lane.b32.xlu0 %v346, 1
      %v371 = vpop.permute.xlu0 %370
      %372 = vrot.lane.b32.xlu0 %v347, 1
      %v373 = vpop.permute.xlu0 %372
      %374 = vrot.lane.b32.xlu0 %v356, 1
      %v375 = vpop.permute.xlu0 %374
      %376 = vrot.lane.b32.xlu0 %v357, 1
      %v377 = vpop.permute.xlu0 %376
      %378 = vrot.lane.b32.xlu0 %v362, 1
      %v379 = vpop.permute.xlu0 %378
      %380 = vrot.lane.b32.xlu0 %v363, 1
      %v381 = vpop.permute.xlu0 %380
      %382 = vrot.lane.b32.xlu0 %v368, 1
      %v383 = vpop.permute.xlu0 %382
      %384 = vrot.lane.b32.xlu0 %v369, 1
      %v385 = vpop.permute.xlu0 %384
      %vm394 = vcmask 138248
      %395 = vst.msk [vmem:[#allocation2 + $0x1] sm:$0xff] %vm394, %v371
      %396 = vst.msk [vmem:[#allocation2 + $0x9] sm:$0xff] %vm394, %v373
      %397 = vst.msk [vmem:[#allocation2 + $0x19] sm:$0xff] %vm394, %v375
      %398 = vst.msk [vmem:[#allocation2 + $0x21] sm:$0xff] %vm394, %v377
      %399 = vst.msk [vmem:[#allocation2 + $0x31] sm:$0xff] %vm394, %v379
      %400 = vst.msk [vmem:[#allocation2 + $0x39] sm:$0xff] %vm394, %v381
      %401 = vst.msk [vmem:[#allocation2 + $0x49] sm:$0xff] %vm394, %v383
      %402 = vst.msk [vmem:[#allocation2 + $0x51] sm:$0xff] %vm394, %v385
      %v403 = vperm.slane %v230, 1
      %v404 = vperm.slane %v236, 1
      %v405 = vperm.slane %v234, 1
      %v406 = vperm.slane %v238, 1
      %407 = vrot.lane.b32.xlu0 %v403, 1
      %v408 = vpop.permute.xlu0 %407
      %409 = vrot.lane.b32.xlu0 %v404, 1
      %v410 = vpop.permute.xlu0 %409
      %411 = vrot.lane.b32.xlu0 %v405, 1
      %v412 = vpop.permute.xlu0 %411
      %413 = vrot.lane.b32.xlu0 %v406, 1
      %v414 = vpop.permute.xlu0 %413
      %vm419 = vcmask 132105
      %420 = vst.msk [vmem:[#allocation2 - $0x1] sm:$0x2] %vm419, %v408
      %421 = vst.msk [vmem:[#allocation2 + $0x17] sm:$0x2] %vm419, %v410
      %422 = vst.msk [vmem:[#allocation2 + $0x2f] sm:$0x2] %vm419, %v412
      %423 = vst.msk [vmem:[#allocation2 + $0x47] sm:$0x2] %vm419, %v414
      %v424 = vperm.slane %v314, 2
      %v425 = vperm.slane %v320, 2
      %v426 = vperm.slane %v318, 2
      %v427 = vperm.slane %v322, 2
      %428 = vrot.lane.b32.xlu0 %v424, 1
      %v429 = vpop.permute.xlu0 %428
      %430 = vrot.lane.b32.xlu0 %v425, 1
      %v431 = vpop.permute.xlu0 %430
      %432 = vrot.lane.b32.xlu0 %v426, 1
      %v433 = vpop.permute.xlu0 %432
      %434 = vrot.lane.b32.xlu0 %v427, 1
      %v435 = vpop.permute.xlu0 %434
      %vm440 = vcmask 133130
      %441 = vst.msk [vmem:[#allocation2 + $0xf] sm:$0x4] %vm440, %v429
      %442 = vst.msk [vmem:[#allocation2 + $0x27] sm:$0x4] %vm440, %v431
      %443 = vst.msk [vmem:[#allocation2 + $0x3f] sm:$0x4] %vm440, %v433
      %444 = vst.msk [vmem:[#allocation2 + $0x57] sm:$0x4] %vm440, %v435
      %v445 = vld [vmem:[#allocation2] sm:$0xff]
      %v446 = vld [vmem:[#allocation2 + $0x8] sm:$0xff]
      %v447 = vld [vmem:[#allocation2 + $0x10] sm:$0x3]
      %v448 = vld [vmem:[#allocation2 + $0x18] sm:$0xff]
      %v449 = vld [vmem:[#allocation2 + $0x20] sm:$0xff]
      %v450 = vld [vmem:[#allocation2 + $0x28] sm:$0x3]
      %v451 = vld [vmem:[#allocation2 + $0x30] sm:$0xff]
      %v452 = vld [vmem:[#allocation2 + $0x38] sm:$0xff]
      %v453 = vld [vmem:[#allocation2 + $0x40] sm:$0x3]
      %v454 = vld [vmem:[#allocation2 + $0x48] sm:$0xff]
      %v455 = vld [vmem:[#allocation2 + $0x50] sm:$0xff]
      %v456 = vld [vmem:[#allocation2 + $0x58] sm:$0x3]
      %469 = vrot.lane.b32.xlu0 %v445, 126
      %v470 = vpop.permute.xlu0 %469
      %471 = vrot.lane.b32.xlu0 %v446, 126
      %v472 = vpop.permute.xlu0 %471
      %473 = vrot.lane.b32.xlu0 %v447, 126
      %v474 = vpop.permute.xlu0 %473
      %475 = vrot.lane.b32.xlu0 %v448, 126
      %v476 = vpop.permute.xlu0 %475
      %477 = vrot.lane.b32.xlu0 %v449, 126
      %v478 = vpop.permute.xlu0 %477
      %479 = vrot.lane.b32.xlu0 %v450, 126
      %v480 = vpop.permute.xlu0 %479
      %481 = vrot.lane.b32.xlu0 %v451, 126
      %v482 = vpop.permute.xlu0 %481
      %483 = vrot.lane.b32.xlu0 %v452, 126
      %v484 = vpop.permute.xlu0 %483
      %485 = vrot.lane.b32.xlu0 %v453, 126
      %v486 = vpop.permute.xlu0 %485
      %487 = vrot.lane.b32.xlu0 %v454, 126
      %v488 = vpop.permute.xlu0 %487
      %489 = vrot.lane.b32.xlu0 %v455, 126
      %v490 = vpop.permute.xlu0 %489
      %491 = vrot.lane.b32.xlu0 %v456, 126
      %v492 = vpop.permute.xlu0 %491
      %vm505 = vcmask 7168
      %506 = vst.msk [vmem:[#allocation2] sm:$0xff] %vm505, %v470
      %507 = vst.msk [vmem:[#allocation2 + $0x8] sm:$0xff] %vm505, %v472
      %vm508 = vcmask 1024
      %509 = vst.msk [vmem:[#allocation2 + $0x10] sm:$0x3] %vm508, %v474
      %510 = vst.msk [vmem:[#allocation2 + $0x18] sm:$0xff] %vm505, %v476
      %511 = vst.msk [vmem:[#allocation2 + $0x20] sm:$0xff] %vm505, %v478
      %512 = vst.msk [vmem:[#allocation2 + $0x28] sm:$0x3] %vm508, %v480
      %513 = vst.msk [vmem:[#allocation2 + $0x30] sm:$0xff] %vm505, %v482
      %514 = vst.msk [vmem:[#allocation2 + $0x38] sm:$0xff] %vm505, %v484
      %515 = vst.msk [vmem:[#allocation2 + $0x40] sm:$0x3] %vm508, %v486
      %516 = vst.msk [vmem:[#allocation2 + $0x48] sm:$0xff] %vm505, %v488
      %517 = vst.msk [vmem:[#allocation2 + $0x50] sm:$0xff] %vm505, %v490
      %518 = vst.msk [vmem:[#allocation2 + $0x58] sm:$0x3] %vm508, %v492
      %v519 = vld [vmem:[#allocation2] sm:$0xff]
      %v520 = vld [vmem:[#allocation2 + $0x8] sm:$0xff]
      %v521 = vld [vmem:[#allocation2 + $0x10] sm:$0x3]
      %v522 = vld [vmem:[#allocation2 + $0x18] sm:$0xff]
      %v523 = vld [vmem:[#allocation2 + $0x20] sm:$0xff]
      %v524 = vld [vmem:[#allocation2 + $0x28] sm:$0x3]
      %v525 = vld [vmem:[#allocation2 + $0x30] sm:$0xff]
      %v526 = vld [vmem:[#allocation2 + $0x38] sm:$0xff]
      %v527 = vld [vmem:[#allocation2 + $0x40] sm:$0x3]
      %v528 = vld [vmem:[#allocation2 + $0x48] sm:$0xff]
      %v529 = vld [vmem:[#allocation2 + $0x50] sm:$0xff]
      %v530 = vld [vmem:[#allocation2 + $0x58] sm:$0x3]
      %543 = vrot.lane.b32.xlu0 %v519, 2
      %v544 = vpop.permute.xlu0 %543
      %545 = vrot.lane.b32.xlu0 %v520, 2
      %v546 = vpop.permute.xlu0 %545
      %547 = vrot.lane.b32.xlu0 %v521, 2
      %v548 = vpop.permute.xlu0 %547
      %549 = vrot.lane.b32.xlu0 %v522, 2
      %v550 = vpop.permute.xlu0 %549
      %551 = vrot.lane.b32.xlu0 %v523, 2
      %v552 = vpop.permute.xlu0 %551
      %553 = vrot.lane.b32.xlu0 %v524, 2
      %v554 = vpop.permute.xlu0 %553
      %555 = vrot.lane.b32.xlu0 %v525, 2
      %v556 = vpop.permute.xlu0 %555
      %557 = vrot.lane.b32.xlu0 %v526, 2
      %v558 = vpop.permute.xlu0 %557
      %559 = vrot.lane.b32.xlu0 %v527, 2
      %v560 = vpop.permute.xlu0 %559
      %561 = vrot.lane.b32.xlu0 %v528, 2
      %v562 = vpop.permute.xlu0 %561
      %563 = vrot.lane.b32.xlu0 %v529, 2
      %v564 = vpop.permute.xlu0 %563
      %565 = vrot.lane.b32.xlu0 %v530, 2
      %v566 = vpop.permute.xlu0 %565
      %vm579 = vcmask 146568
      %580 = vst.msk [vmem:[#allocation2] sm:$0xff] %vm579, %v544
      %581 = vst.msk [vmem:[#allocation2 + $0x8] sm:$0xff] %vm579, %v546
      %vm582 = vcmask 140424
      %583 = vst.msk [vmem:[#allocation2 + $0x10] sm:$0x3] %vm582, %v548
      %584 = vst.msk [vmem:[#allocation2 + $0x18] sm:$0xff] %vm579, %v550
      %585 = vst.msk [vmem:[#allocation2 + $0x20] sm:$0xff] %vm579, %v552
      %586 = vst.msk [vmem:[#allocation2 + $0x28] sm:$0x3] %vm582, %v554
      %587 = vst.msk [vmem:[#allocation2 + $0x30] sm:$0xff] %vm579, %v556
      %588 = vst.msk [vmem:[#allocation2 + $0x38] sm:$0xff] %vm579, %v558
      %589 = vst.msk [vmem:[#allocation2 + $0x40] sm:$0x3] %vm582, %v560
      %590 = vst.msk [vmem:[#allocation2 + $0x48] sm:$0xff] %vm579, %v562
      %591 = vst.msk [vmem:[#allocation2 + $0x50] sm:$0xff] %vm579, %v564
      %592 = vst.msk [vmem:[#allocation2 + $0x58] sm:$0x3] %vm582, %v566
      %v593 = vld [vmem:[#allocation2] sm:$0xff]
      %v594 = vld [vmem:[#allocation2 + $0x8] sm:$0xff]
      %v595 = vld [vmem:[#allocation2 + $0x18] sm:$0xff]
      %v596 = vld [vmem:[#allocation2 + $0x20] sm:$0xff]
      %v597 = vld [vmem:[#allocation2 + $0x30] sm:$0xff]
      %v598 = vld [vmem:[#allocation2 + $0x38] sm:$0xff]
      %v599 = vld [vmem:[#allocation2 + $0x48] sm:$0xff]
      %v600 = vld [vmem:[#allocation2 + $0x50] sm:$0xff]
      %v601 = vrot.slane %v597, 4
      %v602 = vsel %vm211, %v601, %v593
      %v603 = vrot.slane %v593, 4
      %v604 = vsel %vm211, %v597, %v603
      %v606 = vunpack.c.l.s4 1983009808
      %v607 = vunpack.c.0.s8 %v606
      %v608 = vperm.slane %v602, %v607
      %v610 = vunpack.c.l.s4 1983009808
      %v611 = vunpack.c.0.s8 %v610
      %v612 = vperm.slane %v604, %v611
      %v613 = vrot.slane %v599, 4
      %v614 = vsel %vm211, %v613, %v595
      %v615 = vrot.slane %v595, 4
      %v616 = vsel %vm211, %v599, %v615
      %v618 = vunpack.c.l.s4 1983009808
      %v619 = vunpack.c.0.s8 %v618
      %v620 = vperm.slane %v614, %v619
      %v622 = vunpack.c.l.s4 1983009808
      %v623 = vunpack.c.0.s8 %v622
      %v624 = vperm.slane %v616, %v623
      %v625 = vrot.slane %v620, 4
      %v626 = vsel %vm211, %v625, %v608
      %v627 = vrot.slane %v608, 4
      %v628 = vsel %vm211, %v620, %v627
      %v630 = vunpack.c.l.s4 1934713408
      %v631 = vunpack.c.0.s8 %v630
      %v632 = vperm.slane %v626, %v631
      %v634 = vunpack.c.l.s4 1934713408
      %v635 = vunpack.c.0.s8 %v634
      %v636 = vperm.slane %v628, %v635
      %v637 = vrot.slane %v624, 4
      %v638 = vsel %vm211, %v637, %v612
      %v639 = vrot.slane %v612, 4
      %v640 = vsel %vm211, %v624, %v639
      %v642 = vunpack.c.l.s4 1934713408
      %v643 = vunpack.c.0.s8 %v642
      %v644 = vperm.slane %v638, %v643
      %v646 = vunpack.c.l.s4 1934713408
      %v647 = vunpack.c.0.s8 %v646
      %v648 = vperm.slane %v640, %v647
      %v649 = vrot.slane %v632, 4
      %v650 = vsel %vm211, 0.0, %v649
      %v651 = vrot.slane %v636, 4
      %v652 = vsel %vm211, 0.0, %v651
      %v653 = vrot.slane %v644, 4
      %v654 = vsel %vm211, 0.0, %v653
      %v655 = vrot.slane %v648, 4
      %v656 = vsel %vm211, 0.0, %v655
      %v657 = vrot.slane %v598, 4
      %v658 = vsel %vm211, %v657, %v594
      %v659 = vrot.slane %v594, 4
      %v660 = vsel %vm211, %v598, %v659
      %v662 = vunpack.c.l.s4 1983009808
      %v663 = vunpack.c.0.s8 %v662
      %v664 = vperm.slane %v658, %v663
      %v666 = vunpack.c.l.s4 1983009808
      %v667 = vunpack.c.0.s8 %v666
      %v668 = vperm.slane %v660, %v667
      %v669 = vrot.slane %v600, 4
      %v670 = vsel %vm211, %v669, %v596
      %v671 = vrot.slane %v596, 4
      %v672 = vsel %vm211, %v600, %v671
      %v674 = vunpack.c.l.s4 1983009808
      %v675 = vunpack.c.0.s8 %v674
      %v676 = vperm.slane %v670, %v675
      %v678 = vunpack.c.l.s4 1983009808
      %v679 = vunpack.c.0.s8 %v678
      %v680 = vperm.slane %v672, %v679
      %v681 = vrot.slane %v676, 4
      %v682 = vsel %vm211, %v681, %v664
      %v683 = vrot.slane %v664, 4
      %v684 = vsel %vm211, %v676, %v683
      %v686 = vunpack.c.l.s4 1934713408
      %v687 = vunpack.c.0.s8 %v686
      %v688 = vperm.slane %v682, %v687
      %v690 = vunpack.c.l.s4 1934713408
      %v691 = vunpack.c.0.s8 %v690
      %v692 = vperm.slane %v684, %v691
      %v693 = vrot.slane %v680, 4
      %v694 = vsel %vm211, %v693, %v668
      %v695 = vrot.slane %v668, 4
      %v696 = vsel %vm211, %v680, %v695
      %v698 = vunpack.c.l.s4 1934713408
      %v699 = vunpack.c.0.s8 %v698
      %v700 = vperm.slane %v694, %v699
      %v702 = vunpack.c.l.s4 1934713408
      %v703 = vunpack.c.0.s8 %v702
      %v704 = vperm.slane %v696, %v703
      %v705 = vrot.slane %v688, 4
      %v706 = vsel %vm211, 0.0, %v705
      %v707 = vrot.slane %v692, 4
      %v708 = vsel %vm211, 0.0, %v707
      %v709 = vrot.slane %v700, 4
      %v710 = vsel %vm211, 0.0, %v709
      %v711 = vrot.slane %v704, 4
      %v712 = vsel %vm211, 0.0, %v711
      %714 = vrot.lane.b32.xlu0 %v650, 16
      %v715 = vpop.permute.xlu0 %714
      %718 = vrot.lane.b32.xlu0 %v636, 32
      %v719 = vpop.permute.xlu0 %718
      %722 = vrot.lane.b32.xlu0 %v652, 48
      %v723 = vpop.permute.xlu0 %722
      %726 = vrot.lane.b32.xlu0 %v644, 64
      %v727 = vpop.permute.xlu0 %726
      %730 = vrot.lane.b32.xlu0 %v654, 80
      %v731 = vpop.permute.xlu0 %730
      %734 = vrot.lane.b32.xlu0 %v648, 96
      %v735 = vpop.permute.xlu0 %734
      %738 = vrot.lane.b32.xlu0 %v656, 112
      %v739 = vpop.permute.xlu0 %738
      %742 = vrot.lane.b32.xlu0 %v706, 16
      %v743 = vpop.permute.xlu0 %742
      %746 = vrot.lane.b32.xlu0 %v692, 32
      %v747 = vpop.permute.xlu0 %746
      %750 = vrot.lane.b32.xlu0 %v708, 48
      %v751 = vpop.permute.xlu0 %750
      %754 = vrot.lane.b32.xlu0 %v700, 64
      %v755 = vpop.permute.xlu0 %754
      %758 = vrot.lane.b32.xlu0 %v710, 80
      %v759 = vpop.permute.xlu0 %758
      %762 = vrot.lane.b32.xlu0 %v704, 96
      %v763 = vpop.permute.xlu0 %762
      %766 = vrot.lane.b32.xlu0 %v712, 112
      %v767 = vpop.permute.xlu0 %766
      %vm769 = vcmask 130048
      %v770 = vsel %vm769, %v632, %v715
      %vm771 = vcmask 261120
      %v772 = vsel %vm771, %v770, %v719
      %vm773 = vcmask 392192
      %v774 = vsel %vm773, %v772, %v723
      %vm775 = vcmask 523264
      %v776 = vsel %vm775, %v774, %v727
      %vm777 = vcmask 654336
      %v778 = vsel %vm777, %v776, %v731
      %vm779 = vcmask 785408
      %v780 = vsel %vm779, %v778, %v735
      %vm781 = vcmask 916480
      %v782 = vsel %vm781, %v780, %v739
      %v783 = vsel %vm769, %v688, %v743
      %v784 = vsel %vm771, %v783, %v747
      %v785 = vsel %vm773, %v784, %v751
      %v786 = vsel %vm775, %v785, %v755
      %v787 = vsel %vm777, %v786, %v759
      %v788 = vsel %vm779, %v787, %v763
      %v789 = vsel %vm781, %v788, %v767
      %790 = vst [vmem:[#allocation3] sm:$0xf] %v782
      %791 = vst [vmem:[#allocation3 + $0x8] sm:$0xf] %v789
      %v792 = vld [vmem:[#allocation2] sm:$0xff]
      %v793 = vld [vmem:[#allocation2 + $0x8] sm:$0xff]
      %v794 = vld [vmem:[#allocation2 + $0x18] sm:$0xff]
      %v795 = vld [vmem:[#allocation2 + $0x20] sm:$0xff]
      %v796 = vld [vmem:[#allocation2 + $0x30] sm:$0xff]
      %v797 = vld [vmem:[#allocation2 + $0x38] sm:$0xff]
      %v798 = vld [vmem:[#allocation2 + $0x48] sm:$0xff]
      %v799 = vld [vmem:[#allocation2 + $0x50] sm:$0xff]
      %808 = vrot.lane.b32.xlu0 %v792, 127
      %v809 = vpop.permute.xlu0 %808
      %810 = vrot.lane.b32.xlu0 %v793, 127
      %v811 = vpop.permute.xlu0 %810
      %812 = vrot.lane.b32.xlu0 %v794, 127
      %v813 = vpop.permute.xlu0 %812
      %814 = vrot.lane.b32.xlu0 %v795, 127
      %v815 = vpop.permute.xlu0 %814
      %816 = vrot.lane.b32.xlu0 %v796, 127
      %v817 = vpop.permute.xlu0 %816
      %818 = vrot.lane.b32.xlu0 %v797, 127
      %v819 = vpop.permute.xlu0 %818
      %820 = vrot.lane.b32.xlu0 %v798, 127
      %v821 = vpop.permute.xlu0 %820
      %822 = vrot.lane.b32.xlu0 %v799, 127
      %v823 = vpop.permute.xlu0 %822
      %v832 = vrot.slane %v817, 4
      %v833 = vsel %vm211, %v832, %v809
      %v834 = vrot.slane %v809, 4
      %v835 = vsel %vm211, %v817, %v834
      %v837 = vunpack.c.l.s4 1983009808
      %v838 = vunpack.c.0.s8 %v837
      %v839 = vperm.slane %v833, %v838
      %v841 = vunpack.c.l.s4 1983009808
      %v842 = vunpack.c.0.s8 %v841
      %v843 = vperm.slane %v835, %v842
      %v844 = vrot.slane %v821, 4
      %v845 = vsel %vm211, %v844, %v813
      %v846 = vrot.slane %v813, 4
      %v847 = vsel %vm211, %v821, %v846
      %v849 = vunpack.c.l.s4 1983009808
      %v850 = vunpack.c.0.s8 %v849
      %v851 = vperm.slane %v845, %v850
      %v853 = vunpack.c.l.s4 1983009808
      %v854 = vunpack.c.0.s8 %v853
      %v855 = vperm.slane %v847, %v854
      %v856 = vrot.slane %v851, 4
      %v857 = vsel %vm211, %v856, %v839
      %v858 = vrot.slane %v839, 4
      %v859 = vsel %vm211, %v851, %v858
      %v861 = vunpack.c.l.s4 1934713408
      %v862 = vunpack.c.0.s8 %v861
      %v863 = vperm.slane %v857, %v862
      %v865 = vunpack.c.l.s4 1934713408
      %v866 = vunpack.c.0.s8 %v865
      %v867 = vperm.slane %v859, %v866
      %v868 = vrot.slane %v855, 4
      %v869 = vsel %vm211, %v868, %v843
      %v870 = vrot.slane %v843, 4
      %v871 = vsel %vm211, %v855, %v870
      %v873 = vunpack.c.l.s4 1934713408
      %v874 = vunpack.c.0.s8 %v873
      %v875 = vperm.slane %v869, %v874
      %v877 = vunpack.c.l.s4 1934713408
      %v878 = vunpack.c.0.s8 %v877
      %v879 = vperm.slane %v871, %v878
      %v880 = vrot.slane %v863, 4
      %v881 = vsel %vm211, 0.0, %v880
      %v882 = vrot.slane %v867, 4
      %v883 = vsel %vm211, 0.0, %v882
      %v884 = vrot.slane %v875, 4
      %v885 = vsel %vm211, 0.0, %v884
      %v886 = vrot.slane %v879, 4
      %v887 = vsel %vm211, 0.0, %v886
      %v888 = vrot.slane %v819, 4
      %v889 = vsel %vm211, %v888, %v811
      %v890 = vrot.slane %v811, 4
      %v891 = vsel %vm211, %v819, %v890
      %v893 = vunpack.c.l.s4 1983009808
      %v894 = vunpack.c.0.s8 %v893
      %v895 = vperm.slane %v889, %v894
      %v897 = vunpack.c.l.s4 1983009808
      %v898 = vunpack.c.0.s8 %v897
      %v899 = vperm.slane %v891, %v898
      %v900 = vrot.slane %v823, 4
      %v901 = vsel %vm211, %v900, %v815
      %v902 = vrot.slane %v815, 4
      %v903 = vsel %vm211, %v823, %v902
      %v905 = vunpack.c.l.s4 1983009808
      %v906 = vunpack.c.0.s8 %v905
      %v907 = vperm.slane %v901, %v906
      %v909 = vunpack.c.l.s4 1983009808
      %v910 = vunpack.c.0.s8 %v909
      %v911 = vperm.slane %v903, %v910
      %v912 = vrot.slane %v907, 4
      %v913 = vsel %vm211, %v912, %v895
      %v914 = vrot.slane %v895, 4
      %v915 = vsel %vm211, %v907, %v914
      %v917 = vunpack.c.l.s4 1934713408
      %v918 = vunpack.c.0.s8 %v917
      %v919 = vperm.slane %v913, %v918
      %v921 = vunpack.c.l.s4 1934713408
      %v922 = vunpack.c.0.s8 %v921
      %v923 = vperm.slane %v915, %v922
      %v924 = vrot.slane %v911, 4
      %v925 = vsel %vm211, %v924, %v899
      %v926 = vrot.slane %v899, 4
      %v927 = vsel %vm211, %v911, %v926
      %v929 = vunpack.c.l.s4 1934713408
      %v930 = vunpack.c.0.s8 %v929
      %v931 = vperm.slane %v925, %v930
      %v933 = vunpack.c.l.s4 1934713408
      %v934 = vunpack.c.0.s8 %v933
      %v935 = vperm.slane %v927, %v934
      %v936 = vrot.slane %v919, 4
      %v937 = vsel %vm211, 0.0, %v936
      %v938 = vrot.slane %v923, 4
      %v939 = vsel %vm211, 0.0, %v938
      %v940 = vrot.slane %v931, 4
      %v941 = vsel %vm211, 0.0, %v940
      %v942 = vrot.slane %v935, 4
      %v943 = vsel %vm211, 0.0, %v942
      %945 = vrot.lane.b32.xlu0 %v881, 16
      %v946 = vpop.permute.xlu0 %945
      %949 = vrot.lane.b32.xlu0 %v867, 32
      %v950 = vpop.permute.xlu0 %949
      %953 = vrot.lane.b32.xlu0 %v883, 48
      %v954 = vpop.permute.xlu0 %953
      %957 = vrot.lane.b32.xlu0 %v875, 64
      %v958 = vpop.permute.xlu0 %957
      %961 = vrot.lane.b32.xlu0 %v885, 80
      %v962 = vpop.permute.xlu0 %961
      %965 = vrot.lane.b32.xlu0 %v879, 96
      %v966 = vpop.permute.xlu0 %965
      %969 = vrot.lane.b32.xlu0 %v887, 112
      %v970 = vpop.permute.xlu0 %969
      %973 = vrot.lane.b32.xlu0 %v937, 16
      %v974 = vpop.permute.xlu0 %973
      %977 = vrot.lane.b32.xlu0 %v923, 32
      %v978 = vpop.permute.xlu0 %977
      %981 = vrot.lane.b32.xlu0 %v939, 48
      %v982 = vpop.permute.xlu0 %981
      %985 = vrot.lane.b32.xlu0 %v931, 64
      %v986 = vpop.permute.xlu0 %985
      %989 = vrot.lane.b32.xlu0 %v941, 80
      %v990 = vpop.permute.xlu0 %989
      %993 = vrot.lane.b32.xlu0 %v935, 96
      %v994 = vpop.permute.xlu0 %993
      %997 = vrot.lane.b32.xlu0 %v943, 112
      %v998 = vpop.permute.xlu0 %997
      %v1000 = vsel %vm769, %v863, %v946
      %v1001 = vsel %vm771, %v1000, %v950
      %v1002 = vsel %vm773, %v1001, %v954
      %v1003 = vsel %vm775, %v1002, %v958
      %v1004 = vsel %vm777, %v1003, %v962
      %v1005 = vsel %vm779, %v1004, %v966
      %v1006 = vsel %vm781, %v1005, %v970
      %v1007 = vsel %vm769, %v919, %v974
      %v1008 = vsel %vm771, %v1007, %v978
      %v1009 = vsel %vm773, %v1008, %v982
      %v1010 = vsel %vm775, %v1009, %v986
      %v1011 = vsel %vm777, %v1010, %v990
      %v1012 = vsel %vm779, %v1011, %v994
      %v1013 = vsel %vm781, %v1012, %v998
      %v1016 = vrot.slane %v1006, 4
      %v1017 = vrot.slane %v1013, 4
      %1020 = vst [vmem:[#allocation3] sm:$0xf0] %v1016
      %1021 = vst [vmem:[#allocation3 + $0x8] sm:$0xf0] %v1017
      %v1022 = vld [vmem:[#allocation2] sm:$0xff]
      %v1023 = vld [vmem:[#allocation2 + $0x8] sm:$0xff]
      %v1024 = vld [vmem:[#allocation2 + $0x18] sm:$0xff]
      %v1025 = vld [vmem:[#allocation2 + $0x20] sm:$0xff]
      %v1026 = vld [vmem:[#allocation2 + $0x30] sm:$0xff]
      %v1027 = vld [vmem:[#allocation2 + $0x38] sm:$0xff]
      %v1028 = vld [vmem:[#allocation2 + $0x48] sm:$0xff]
      %v1029 = vld [vmem:[#allocation2 + $0x50] sm:$0xff]
      %1038 = vrot.lane.b32.xlu0 %v1022, 126
      %v1039 = vpop.permute.xlu0 %1038
      %1040 = vrot.lane.b32.xlu0 %v1023, 126
      %v1041 = vpop.permute.xlu0 %1040
      %1042 = vrot.lane.b32.xlu0 %v1024, 126
      %v1043 = vpop.permute.xlu0 %1042
      %1044 = vrot.lane.b32.xlu0 %v1025, 126
      %v1045 = vpop.permute.xlu0 %1044
      %1046 = vrot.lane.b32.xlu0 %v1026, 126
      %v1047 = vpop.permute.xlu0 %1046
      %1048 = vrot.lane.b32.xlu0 %v1027, 126
      %v1049 = vpop.permute.xlu0 %1048
      %1050 = vrot.lane.b32.xlu0 %v1028, 126
      %v1051 = vpop.permute.xlu0 %1050
      %1052 = vrot.lane.b32.xlu0 %v1029, 126
      %v1053 = vpop.permute.xlu0 %1052
      %v1062 = vrot.slane %v1047, 4
      %v1063 = vsel %vm211, %v1062, %v1039
      %v1064 = vrot.slane %v1039, 4
      %v1065 = vsel %vm211, %v1047, %v1064
      %v1067 = vunpack.c.l.s4 1983009808
      %v1068 = vunpack.c.0.s8 %v1067
      %v1069 = vperm.slane %v1063, %v1068
      %v1071 = vunpack.c.l.s4 1983009808
      %v1072 = vunpack.c.0.s8 %v1071
      %v1073 = vperm.slane %v1065, %v1072
      %v1074 = vrot.slane %v1051, 4
      %v1075 = vsel %vm211, %v1074, %v1043
      %v1076 = vrot.slane %v1043, 4
      %v1077 = vsel %vm211, %v1051, %v1076
      %v1079 = vunpack.c.l.s4 1983009808
      %v1080 = vunpack.c.0.s8 %v1079
      %v1081 = vperm.slane %v1075, %v1080
      %v1083 = vunpack.c.l.s4 1983009808
      %v1084 = vunpack.c.0.s8 %v1083
      %v1085 = vperm.slane %v1077, %v1084
      %v1086 = vrot.slane %v1081, 4
      %v1087 = vsel %vm211, %v1086, %v1069
      %v1088 = vrot.slane %v1069, 4
      %v1089 = vsel %vm211, %v1081, %v1088
      %v1091 = vunpack.c.l.s4 1934713408
      %v1092 = vunpack.c.0.s8 %v1091
      %v1093 = vperm.slane %v1087, %v1092
      %v1095 = vunpack.c.l.s4 1934713408
      %v1096 = vunpack.c.0.s8 %v1095
      %v1097 = vperm.slane %v1089, %v1096
      %v1098 = vrot.slane %v1085, 4
      %v1099 = vsel %vm211, %v1098, %v1073
      %v1100 = vrot.slane %v1073, 4
      %v1101 = vsel %vm211, %v1085, %v1100
      %v1103 = vunpack.c.l.s4 1934713408
      %v1104 = vunpack.c.0.s8 %v1103
      %v1105 = vperm.slane %v1099, %v1104
      %v1107 = vunpack.c.l.s4 1934713408
      %v1108 = vunpack.c.0.s8 %v1107
      %v1109 = vperm.slane %v1101, %v1108
      %v1110 = vrot.slane %v1093, 4
      %v1111 = vsel %vm211, 0.0, %v1110
      %v1112 = vrot.slane %v1097, 4
      %v1113 = vsel %vm211, 0.0, %v1112
      %v1114 = vrot.slane %v1105, 4
      %v1115 = vsel %vm211, 0.0, %v1114
      %v1116 = vrot.slane %v1109, 4
      %v1117 = vsel %vm211, 0.0, %v1116
      %v1118 = vrot.slane %v1049, 4
      %v1119 = vsel %vm211, %v1118, %v1041
      %v1120 = vrot.slane %v1041, 4
      %v1121 = vsel %vm211, %v1049, %v1120
      %v1123 = vunpack.c.l.s4 1983009808
      %v1124 = vunpack.c.0.s8 %v1123
      %v1125 = vperm.slane %v1119, %v1124
      %v1127 = vunpack.c.l.s4 1983009808
      %v1128 = vunpack.c.0.s8 %v1127
      %v1129 = vperm.slane %v1121, %v1128
      %v1130 = vrot.slane %v1053, 4
      %v1131 = vsel %vm211, %v1130, %v1045
      %v1132 = vrot.slane %v1045, 4
      %v1133 = vsel %vm211, %v1053, %v1132
      %v1135 = vunpack.c.l.s4 1983009808
      %v1136 = vunpack.c.0.s8 %v1135
      %v1137 = vperm.slane %v1131, %v1136
      %v1139 = vunpack.c.l.s4 1983009808
      %v1140 = vunpack.c.0.s8 %v1139
      %v1141 = vperm.slane %v1133, %v1140
      %v1142 = vrot.slane %v1137, 4
      %v1143 = vsel %vm211, %v1142, %v1125
      %v1144 = vrot.slane %v1125, 4
      %v1145 = vsel %vm211, %v1137, %v1144
      %v1147 = vunpack.c.l.s4 1934713408
      %v1148 = vunpack.c.0.s8 %v1147
      %v1149 = vperm.slane %v1143, %v1148
      %v1151 = vunpack.c.l.s4 1934713408
      %v1152 = vunpack.c.0.s8 %v1151
      %v1153 = vperm.slane %v1145, %v1152
      %v1154 = vrot.slane %v1141, 4
      %v1155 = vsel %vm211, %v1154, %v1129
      %v1156 = vrot.slane %v1129, 4
      %v1157 = vsel %vm211, %v1141, %v1156
      %v1159 = vunpack.c.l.s4 1934713408
      %v1160 = vunpack.c.0.s8 %v1159
      %v1161 = vperm.slane %v1155, %v1160
      %v1163 = vunpack.c.l.s4 1934713408
      %v1164 = vunpack.c.0.s8 %v1163
      %v1165 = vperm.slane %v1157, %v1164
      %v1166 = vrot.slane %v1149, 4
      %v1167 = vsel %vm211, 0.0, %v1166
      %v1168 = vrot.slane %v1153, 4
      %v1169 = vsel %vm211, 0.0, %v1168
      %v1170 = vrot.slane %v1161, 4
      %v1171 = vsel %vm211, 0.0, %v1170
      %v1172 = vrot.slane %v1165, 4
      %v1173 = vsel %vm211, 0.0, %v1172
      %1175 = vrot.lane.b32.xlu0 %v1111, 16
      %v1176 = vpop.permute.xlu0 %1175
      %1179 = vrot.lane.b32.xlu0 %v1097, 32
      %v1180 = vpop.permute.xlu0 %1179
      %1183 = vrot.lane.b32.xlu0 %v1113, 48
      %v1184 = vpop.permute.xlu0 %1183
      %1187 = vrot.lane.b32.xlu0 %v1105, 64
      %v1188 = vpop.permute.xlu0 %1187
      %1191 = vrot.lane.b32.xlu0 %v1115, 80
      %v1192 = vpop.permute.xlu0 %1191
      %1195 = vrot.lane.b32.xlu0 %v1109, 96
      %v1196 = vpop.permute.xlu0 %1195
      %1199 = vrot.lane.b32.xlu0 %v1117, 112
      %v1200 = vpop.permute.xlu0 %1199
      %1203 = vrot.lane.b32.xlu0 %v1167, 16
      %v1204 = vpop.permute.xlu0 %1203
      %1207 = vrot.lane.b32.xlu0 %v1153, 32
      %v1208 = vpop.permute.xlu0 %1207
      %1211 = vrot.lane.b32.xlu0 %v1169, 48
      %v1212 = vpop.permute.xlu0 %1211
      %1215 = vrot.lane.b32.xlu0 %v1161, 64
      %v1216 = vpop.permute.xlu0 %1215
      %1219 = vrot.lane.b32.xlu0 %v1171, 80
      %v1220 = vpop.permute.xlu0 %1219
      %1223 = vrot.lane.b32.xlu0 %v1165, 96
      %v1224 = vpop.permute.xlu0 %1223
      %1227 = vrot.lane.b32.xlu0 %v1173, 112
      %v1228 = vpop.permute.xlu0 %1227
      %v1230 = vsel %vm769, %v1093, %v1176
      %v1231 = vsel %vm771, %v1230, %v1180
      %v1232 = vsel %vm773, %v1231, %v1184
      %v1233 = vsel %vm775, %v1232, %v1188
      %v1234 = vsel %vm777, %v1233, %v1192
      %v1235 = vsel %vm779, %v1234, %v1196
      %v1236 = vsel %vm781, %v1235, %v1200
      %v1237 = vsel %vm769, %v1149, %v1204
      %v1238 = vsel %vm771, %v1237, %v1208
      %v1239 = vsel %vm773, %v1238, %v1212
      %v1240 = vsel %vm775, %v1239, %v1216
      %v1241 = vsel %vm777, %v1240, %v1220
      %v1242 = vsel %vm779, %v1241, %v1224
      %v1243 = vsel %vm781, %v1242, %v1228
      %1244 = vst [vmem:[#allocation3 + $0x10] sm:$0xf] %v1236
      %1245 = vst [vmem:[#allocation3 + $0x18] sm:$0xf] %v1243
      %v1246 = vld [vmem:[#allocation2 + $0x1] sm:$0xff]
      %v1247 = vld [vmem:[#allocation2 + $0x9] sm:$0xff]
      %v1248 = vld [vmem:[#allocation2 + $0x19] sm:$0xff]
      %v1249 = vld [vmem:[#allocation2 + $0x21] sm:$0xff]
      %v1250 = vld [vmem:[#allocation2 + $0x31] sm:$0xff]
      %v1251 = vld [vmem:[#allocation2 + $0x39] sm:$0xff]
      %v1252 = vld [vmem:[#allocation2 + $0x49] sm:$0xff]
      %v1253 = vld [vmem:[#allocation2 + $0x51] sm:$0xff]
      %v1254 = vrot.slane %v1250, 4
      %v1255 = vsel %vm211, %v1254, %v1246
      %v1256 = vrot.slane %v1246, 4
      %v1257 = vsel %vm211, %v1250, %v1256
      %v1259 = vunpack.c.l.s4 1983009808
      %v1260 = vunpack.c.0.s8 %v1259
      %v1261 = vperm.slane %v1255, %v1260
      %v1263 = vunpack.c.l.s4 1983009808
      %v1264 = vunpack.c.0.s8 %v1263
      %v1265 = vperm.slane %v1257, %v1264
      %v1266 = vrot.slane %v1252, 4
      %v1267 = vsel %vm211, %v1266, %v1248
      %v1268 = vrot.slane %v1248, 4
      %v1269 = vsel %vm211, %v1252, %v1268
      %v1271 = vunpack.c.l.s4 1983009808
      %v1272 = vunpack.c.0.s8 %v1271
      %v1273 = vperm.slane %v1267, %v1272
      %v1275 = vunpack.c.l.s4 1983009808
      %v1276 = vunpack.c.0.s8 %v1275
      %v1277 = vperm.slane %v1269, %v1276
      %v1278 = vrot.slane %v1273, 4
      %v1279 = vsel %vm211, %v1278, %v1261
      %v1280 = vrot.slane %v1261, 4
      %v1281 = vsel %vm211, %v1273, %v1280
      %v1283 = vunpack.c.l.s4 1934713408
      %v1284 = vunpack.c.0.s8 %v1283
      %v1285 = vperm.slane %v1279, %v1284
      %v1287 = vunpack.c.l.s4 1934713408
      %v1288 = vunpack.c.0.s8 %v1287
      %v1289 = vperm.slane %v1281, %v1288
      %v1290 = vrot.slane %v1277, 4
      %v1291 = vsel %vm211, %v1290, %v1265
      %v1292 = vrot.slane %v1265, 4
      %v1293 = vsel %vm211, %v1277, %v1292
      %v1295 = vunpack.c.l.s4 1934713408
      %v1296 = vunpack.c.0.s8 %v1295
      %v1297 = vperm.slane %v1291, %v1296
      %v1299 = vunpack.c.l.s4 1934713408
      %v1300 = vunpack.c.0.s8 %v1299
      %v1301 = vperm.slane %v1293, %v1300
      %v1302 = vrot.slane %v1285, 4
      %v1303 = vsel %vm211, 0.0, %v1302
      %v1304 = vrot.slane %v1289, 4
      %v1305 = vsel %vm211, 0.0, %v1304
      %v1306 = vrot.slane %v1297, 4
      %v1307 = vsel %vm211, 0.0, %v1306
      %v1308 = vrot.slane %v1301, 4
      %v1309 = vsel %vm211, 0.0, %v1308
      %v1310 = vrot.slane %v1251, 4
      %v1311 = vsel %vm211, %v1310, %v1247
      %v1312 = vrot.slane %v1247, 4
      %v1313 = vsel %vm211, %v1251, %v1312
      %v1315 = vunpack.c.l.s4 1983009808
      %v1316 = vunpack.c.0.s8 %v1315
      %v1317 = vperm.slane %v1311, %v1316
      %v1319 = vunpack.c.l.s4 1983009808
      %v1320 = vunpack.c.0.s8 %v1319
      %v1321 = vperm.slane %v1313, %v1320
      %v1322 = vrot.slane %v1253, 4
      %v1323 = vsel %vm211, %v1322, %v1249
      %v1324 = vrot.slane %v1249, 4
      %v1325 = vsel %vm211, %v1253, %v1324
      %v1327 = vunpack.c.l.s4 1983009808
      %v1328 = vunpack.c.0.s8 %v1327
      %v1329 = vperm.slane %v1323, %v1328
      %v1331 = vunpack.c.l.s4 1983009808
      %v1332 = vunpack.c.0.s8 %v1331
      %v1333 = vperm.slane %v1325, %v1332
      %v1334 = vrot.slane %v1329, 4
      %v1335 = vsel %vm211, %v1334, %v1317
      %v1336 = vrot.slane %v1317, 4
      %v1337 = vsel %vm211, %v1329, %v1336
      %v1339 = vunpack.c.l.s4 1934713408
      %v1340 = vunpack.c.0.s8 %v1339
      %v1341 = vperm.slane %v1335, %v1340
      %v1343 = vunpack.c.l.s4 1934713408
      %v1344 = vunpack.c.0.s8 %v1343
      %v1345 = vperm.slane %v1337, %v1344
      %v1346 = vrot.slane %v1333, 4
      %v1347 = vsel %vm211, %v1346, %v1321
      %v1348 = vrot.slane %v1321, 4
      %v1349 = vsel %vm211, %v1333, %v1348
      %v1351 = vunpack.c.l.s4 1934713408
      %v1352 = vunpack.c.0.s8 %v1351
      %v1353 = vperm.slane %v1347, %v1352
      %v1355 = vunpack.c.l.s4 1934713408
      %v1356 = vunpack.c.0.s8 %v1355
      %v1357 = vperm.slane %v1349, %v1356
      %v1358 = vrot.slane %v1341, 4
      %v1359 = vsel %vm211, 0.0, %v1358
      %v1360 = vrot.slane %v1345, 4
      %v1361 = vsel %vm211, 0.0, %v1360
      %v1362 = vrot.slane %v1353, 4
      %v1363 = vsel %vm211, 0.0, %v1362
      %v1364 = vrot.slane %v1357, 4
      %v1365 = vsel %vm211, 0.0, %v1364
      %1367 = vrot.lane.b32.xlu0 %v1303, 16
      %v1368 = vpop.permute.xlu0 %1367
      %1371 = vrot.lane.b32.xlu0 %v1289, 32
      %v1372 = vpop.permute.xlu0 %1371
      %1375 = vrot.lane.b32.xlu0 %v1305, 48
      %v1376 = vpop.permute.xlu0 %1375
      %1379 = vrot.lane.b32.xlu0 %v1297, 64
      %v1380 = vpop.permute.xlu0 %1379
      %1383 = vrot.lane.b32.xlu0 %v1307, 80
      %v1384 = vpop.permute.xlu0 %1383
      %1387 = vrot.lane.b32.xlu0 %v1301, 96
      %v1388 = vpop.permute.xlu0 %1387
      %1391 = vrot.lane.b32.xlu0 %v1309, 112
      %v1392 = vpop.permute.xlu0 %1391
      %1395 = vrot.lane.b32.xlu0 %v1359, 16
      %v1396 = vpop.permute.xlu0 %1395
      %1399 = vrot.lane.b32.xlu0 %v1345, 32
      %v1400 = vpop.permute.xlu0 %1399
      %1403 = vrot.lane.b32.xlu0 %v1361, 48
      %v1404 = vpop.permute.xlu0 %1403
      %1407 = vrot.lane.b32.xlu0 %v1353, 64
      %v1408 = vpop.permute.xlu0 %1407
      %1411 = vrot.lane.b32.xlu0 %v1363, 80
      %v1412 = vpop.permute.xlu0 %1411
      %1415 = vrot.lane.b32.xlu0 %v1357, 96
      %v1416 = vpop.permute.xlu0 %1415
      %1419 = vrot.lane.b32.xlu0 %v1365, 112
      %v1420 = vpop.permute.xlu0 %1419
      %v1422 = vsel %vm769, %v1285, %v1368
      %v1423 = vsel %vm771, %v1422, %v1372
      %v1424 = vsel %vm773, %v1423, %v1376
      %v1425 = vsel %vm775, %v1424, %v1380
      %v1426 = vsel %vm777, %v1425, %v1384
      %v1427 = vsel %vm779, %v1426, %v1388
      %v1428 = vsel %vm781, %v1427, %v1392
      %v1429 = vsel %vm769, %v1341, %v1396
      %v1430 = vsel %vm771, %v1429, %v1400
      %v1431 = vsel %vm773, %v1430, %v1404
      %v1432 = vsel %vm775, %v1431, %v1408
      %v1433 = vsel %vm777, %v1432, %v1412
      %v1434 = vsel %vm779, %v1433, %v1416
      %v1435 = vsel %vm781, %v1434, %v1420
      %v1438 = vrot.slane %v1428, 4
      %v1439 = vrot.slane %v1435, 4
      %1442 = vst [vmem:[#allocation3 + $0x10] sm:$0xf0] %v1438
      %1443 = vst [vmem:[#allocation3 + $0x18] sm:$0xf0] %v1439
      %v1444 = vld [vmem:[#allocation2 + $0x1] sm:$0xff]
      %v1445 = vld [vmem:[#allocation2 + $0x9] sm:$0xff]
      %v1446 = vld [vmem:[#allocation2 + $0x19] sm:$0xff]
      %v1447 = vld [vmem:[#allocation2 + $0x21] sm:$0xff]
      %v1448 = vld [vmem:[#allocation2 + $0x31] sm:$0xff]
      %v1449 = vld [vmem:[#allocation2 + $0x39] sm:$0xff]
      %v1450 = vld [vmem:[#allocation2 + $0x49] sm:$0xff]
      %v1451 = vld [vmem:[#allocation2 + $0x51] sm:$0xff]
      %1460 = vrot.lane.b32.xlu0 %v1444, 127
      %v1461 = vpop.permute.xlu0 %1460
      %1462 = vrot.lane.b32.xlu0 %v1445, 127
      %v1463 = vpop.permute.xlu0 %1462
      %1464 = vrot.lane.b32.xlu0 %v1446, 127
      %v1465 = vpop.permute.xlu0 %1464
      %1466 = vrot.lane.b32.xlu0 %v1447, 127
      %v1467 = vpop.permute.xlu0 %1466
      %1468 = vrot.lane.b32.xlu0 %v1448, 127
      %v1469 = vpop.permute.xlu0 %1468
      %1470 = vrot.lane.b32.xlu0 %v1449, 127
      %v1471 = vpop.permute.xlu0 %1470
      %1472 = vrot.lane.b32.xlu0 %v1450, 127
      %v1473 = vpop.permute.xlu0 %1472
      %1474 = vrot.lane.b32.xlu0 %v1451, 127
      %v1475 = vpop.permute.xlu0 %1474
      %v1484 = vrot.slane %v1469, 4
      %v1485 = vsel %vm211, %v1484, %v1461
      %v1486 = vrot.slane %v1461, 4
      %v1487 = vsel %vm211, %v1469, %v1486
      %v1489 = vunpack.c.l.s4 1983009808
      %v1490 = vunpack.c.0.s8 %v1489
      %v1491 = vperm.slane %v1485, %v1490
      %v1493 = vunpack.c.l.s4 1983009808
      %v1494 = vunpack.c.0.s8 %v1493
      %v1495 = vperm.slane %v1487, %v1494
      %v1496 = vrot.slane %v1473, 4
      %v1497 = vsel %vm211, %v1496, %v1465
      %v1498 = vrot.slane %v1465, 4
      %v1499 = vsel %vm211, %v1473, %v1498
      %v1501 = vunpack.c.l.s4 1983009808
      %v1502 = vunpack.c.0.s8 %v1501
      %v1503 = vperm.slane %v1497, %v1502
      %v1505 = vunpack.c.l.s4 1983009808
      %v1506 = vunpack.c.0.s8 %v1505
      %v1507 = vperm.slane %v1499, %v1506
      %v1508 = vrot.slane %v1503, 4
      %v1509 = vsel %vm211, %v1508, %v1491
      %v1510 = vrot.slane %v1491, 4
      %v1511 = vsel %vm211, %v1503, %v1510
      %v1513 = vunpack.c.l.s4 1934713408
      %v1514 = vunpack.c.0.s8 %v1513
      %v1515 = vperm.slane %v1509, %v1514
      %v1517 = vunpack.c.l.s4 1934713408
      %v1518 = vunpack.c.0.s8 %v1517
      %v1519 = vperm.slane %v1511, %v1518
      %v1520 = vrot.slane %v1507, 4
      %v1521 = vsel %vm211, %v1520, %v1495
      %v1522 = vrot.slane %v1495, 4
      %v1523 = vsel %vm211, %v1507, %v1522
      %v1525 = vunpack.c.l.s4 1934713408
      %v1526 = vunpack.c.0.s8 %v1525
      %v1527 = vperm.slane %v1521, %v1526
      %v1529 = vunpack.c.l.s4 1934713408
      %v1530 = vunpack.c.0.s8 %v1529
      %v1531 = vperm.slane %v1523, %v1530
      %v1532 = vrot.slane %v1515, 4
      %v1533 = vsel %vm211, 0.0, %v1532
      %v1534 = vrot.slane %v1519, 4
      %v1535 = vsel %vm211, 0.0, %v1534
      %v1536 = vrot.slane %v1527, 4
      %v1537 = vsel %vm211, 0.0, %v1536
      %v1538 = vrot.slane %v1531, 4
      %v1539 = vsel %vm211, 0.0, %v1538
      %v1540 = vrot.slane %v1471, 4
      %v1541 = vsel %vm211, %v1540, %v1463
      %v1542 = vrot.slane %v1463, 4
      %v1543 = vsel %vm211, %v1471, %v1542
      %v1545 = vunpack.c.l.s4 1983009808
      %v1546 = vunpack.c.0.s8 %v1545
      %v1547 = vperm.slane %v1541, %v1546
      %v1549 = vunpack.c.l.s4 1983009808
      %v1550 = vunpack.c.0.s8 %v1549
      %v1551 = vperm.slane %v1543, %v1550
      %v1552 = vrot.slane %v1475, 4
      %v1553 = vsel %vm211, %v1552, %v1467
      %v1554 = vrot.slane %v1467, 4
      %v1555 = vsel %vm211, %v1475, %v1554
      %v1557 = vunpack.c.l.s4 1983009808
      %v1558 = vunpack.c.0.s8 %v1557
      %v1559 = vperm.slane %v1553, %v1558
      %v1561 = vunpack.c.l.s4 1983009808
      %v1562 = vunpack.c.0.s8 %v1561
      %v1563 = vperm.slane %v1555, %v1562
      %v1564 = vrot.slane %v1559, 4
      %v1565 = vsel %vm211, %v1564, %v1547
      %v1566 = vrot.slane %v1547, 4
      %v1567 = vsel %vm211, %v1559, %v1566
      %v1569 = vunpack.c.l.s4 1934713408
      %v1570 = vunpack.c.0.s8 %v1569
      %v1571 = vperm.slane %v1565, %v1570
      %v1573 = vunpack.c.l.s4 1934713408
      %v1574 = vunpack.c.0.s8 %v1573
      %v1575 = vperm.slane %v1567, %v1574
      %v1576 = vrot.slane %v1563, 4
      %v1577 = vsel %vm211, %v1576, %v1551
      %v1578 = vrot.slane %v1551, 4
      %v1579 = vsel %vm211, %v1563, %v1578
      %v1581 = vunpack.c.l.s4 1934713408
      %v1582 = vunpack.c.0.s8 %v1581
      %v1583 = vperm.slane %v1577, %v1582
      %v1585 = vunpack.c.l.s4 1934713408
      %v1586 = vunpack.c.0.s8 %v1585
      %v1587 = vperm.slane %v1579, %v1586
      %v1588 = vrot.slane %v1571, 4
      %v1589 = vsel %vm211, 0.0, %v1588
      %v1590 = vrot.slane %v1575, 4
      %v1591 = vsel %vm211, 0.0, %v1590
      %v1592 = vrot.slane %v1583, 4
      %v1593 = vsel %vm211, 0.0, %v1592
      %v1594 = vrot.slane %v1587, 4
      %v1595 = vsel %vm211, 0.0, %v1594
      %1597 = vrot.lane.b32.xlu0 %v1533, 16
      %v1598 = vpop.permute.xlu0 %1597
      %1601 = vrot.lane.b32.xlu0 %v1519, 32
      %v1602 = vpop.permute.xlu0 %1601
      %1605 = vrot.lane.b32.xlu0 %v1535, 48
      %v1606 = vpop.permute.xlu0 %1605
      %1609 = vrot.lane.b32.xlu0 %v1527, 64
      %v1610 = vpop.permute.xlu0 %1609
      %1613 = vrot.lane.b32.xlu0 %v1537, 80
      %v1614 = vpop.permute.xlu0 %1613
      %1617 = vrot.lane.b32.xlu0 %v1531, 96
      %v1618 = vpop.permute.xlu0 %1617
      %1621 = vrot.lane.b32.xlu0 %v1539, 112
      %v1622 = vpop.permute.xlu0 %1621
      %1625 = vrot.lane.b32.xlu0 %v1589, 16
      %v1626 = vpop.permute.xlu0 %1625
      %1629 = vrot.lane.b32.xlu0 %v1575, 32
      %v1630 = vpop.permute.xlu0 %1629
      %1633 = vrot.lane.b32.xlu0 %v1591, 48
      %v1634 = vpop.permute.xlu0 %1633
      %1637 = vrot.lane.b32.xlu0 %v1583, 64
      %v1638 = vpop.permute.xlu0 %1637
      %1641 = vrot.lane.b32.xlu0 %v1593, 80
      %v1642 = vpop.permute.xlu0 %1641
      %1645 = vrot.lane.b32.xlu0 %v1587, 96
      %v1646 = vpop.permute.xlu0 %1645
      %1649 = vrot.lane.b32.xlu0 %v1595, 112
      %v1650 = vpop.permute.xlu0 %1649
      %v1652 = vsel %vm769, %v1515, %v1598
      %v1653 = vsel %vm771, %v1652, %v1602
      %v1654 = vsel %vm773, %v1653, %v1606
      %v1655 = vsel %vm775, %v1654, %v1610
      %v1656 = vsel %vm777, %v1655, %v1614
      %v1657 = vsel %vm779, %v1656, %v1618
      %v1658 = vsel %vm781, %v1657, %v1622
      %v1659 = vsel %vm769, %v1571, %v1626
      %v1660 = vsel %vm771, %v1659, %v1630
      %v1661 = vsel %vm773, %v1660, %v1634
      %v1662 = vsel %vm775, %v1661, %v1638
      %v1663 = vsel %vm777, %v1662, %v1642
      %v1664 = vsel %vm779, %v1663, %v1646
      %v1665 = vsel %vm781, %v1664, %v1650
      %1666 = vst [vmem:[#allocation3 + $0x20] sm:$0xf] %v1658
      %1667 = vst [vmem:[#allocation3 + $0x28] sm:$0xf] %v1665
      %v1668 = vld [vmem:[#allocation2 + $0x1] sm:$0xff]
      %v1669 = vld [vmem:[#allocation2 + $0x9] sm:$0xff]
      %v1670 = vld [vmem:[#allocation2 + $0x19] sm:$0xff]
      %v1671 = vld [vmem:[#allocation2 + $0x21] sm:$0xff]
      %v1672 = vld [vmem:[#allocation2 + $0x31] sm:$0xff]
      %v1673 = vld [vmem:[#allocation2 + $0x39] sm:$0xff]
      %v1674 = vld [vmem:[#allocation2 + $0x49] sm:$0xff]
      %v1675 = vld [vmem:[#allocation2 + $0x51] sm:$0xff]
      %1684 = vrot.lane.b32.xlu0 %v1668, 126
      %v1685 = vpop.permute.xlu0 %1684
      %1686 = vrot.lane.b32.xlu0 %v1669, 126
      %v1687 = vpop.permute.xlu0 %1686
      %1688 = vrot.lane.b32.xlu0 %v1670, 126
      %v1689 = vpop.permute.xlu0 %1688
      %1690 = vrot.lane.b32.xlu0 %v1671, 126
      %v1691 = vpop.permute.xlu0 %1690
      %1692 = vrot.lane.b32.xlu0 %v1672, 126
      %v1693 = vpop.permute.xlu0 %1692
      %1694 = vrot.lane.b32.xlu0 %v1673, 126
      %v1695 = vpop.permute.xlu0 %1694
      %1696 = vrot.lane.b32.xlu0 %v1674, 126
      %v1697 = vpop.permute.xlu0 %1696
      %1698 = vrot.lane.b32.xlu0 %v1675, 126
      %v1699 = vpop.permute.xlu0 %1698
      %v1708 = vrot.slane %v1693, 4
      %v1709 = vsel %vm211, %v1708, %v1685
      %v1710 = vrot.slane %v1685, 4
      %v1711 = vsel %vm211, %v1693, %v1710
      %v1713 = vunpack.c.l.s4 1983009808
      %v1714 = vunpack.c.0.s8 %v1713
      %v1715 = vperm.slane %v1709, %v1714
      %v1717 = vunpack.c.l.s4 1983009808
      %v1718 = vunpack.c.0.s8 %v1717
      %v1719 = vperm.slane %v1711, %v1718
      %v1720 = vrot.slane %v1697, 4
      %v1721 = vsel %vm211, %v1720, %v1689
      %v1722 = vrot.slane %v1689, 4
      %v1723 = vsel %vm211, %v1697, %v1722
      %v1725 = vunpack.c.l.s4 1983009808
      %v1726 = vunpack.c.0.s8 %v1725
      %v1727 = vperm.slane %v1721, %v1726
      %v1729 = vunpack.c.l.s4 1983009808
      %v1730 = vunpack.c.0.s8 %v1729
      %v1731 = vperm.slane %v1723, %v1730
      %v1732 = vrot.slane %v1727, 4
      %v1733 = vsel %vm211, %v1732, %v1715
      %v1734 = vrot.slane %v1715, 4
      %v1735 = vsel %vm211, %v1727, %v1734
      %v1737 = vunpack.c.l.s4 1934713408
      %v1738 = vunpack.c.0.s8 %v1737
      %v1739 = vperm.slane %v1733, %v1738
      %v1741 = vunpack.c.l.s4 1934713408
      %v1742 = vunpack.c.0.s8 %v1741
      %v1743 = vperm.slane %v1735, %v1742
      %v1744 = vrot.slane %v1731, 4
      %v1745 = vsel %vm211, %v1744, %v1719
      %v1746 = vrot.slane %v1719, 4
      %v1747 = vsel %vm211, %v1731, %v1746
      %v1749 = vunpack.c.l.s4 1934713408
      %v1750 = vunpack.c.0.s8 %v1749
      %v1751 = vperm.slane %v1745, %v1750
      %v1753 = vunpack.c.l.s4 1934713408
      %v1754 = vunpack.c.0.s8 %v1753
      %v1755 = vperm.slane %v1747, %v1754
      %v1756 = vrot.slane %v1739, 4
      %v1757 = vsel %vm211, 0.0, %v1756
      %v1758 = vrot.slane %v1743, 4
      %v1759 = vsel %vm211, 0.0, %v1758
      %v1760 = vrot.slane %v1751, 4
      %v1761 = vsel %vm211, 0.0, %v1760
      %v1762 = vrot.slane %v1755, 4
      %v1763 = vsel %vm211, 0.0, %v1762
      %v1764 = vrot.slane %v1695, 4
      %v1765 = vsel %vm211, %v1764, %v1687
      %v1766 = vrot.slane %v1687, 4
      %v1767 = vsel %vm211, %v1695, %v1766
      %v1769 = vunpack.c.l.s4 1983009808
      %v1770 = vunpack.c.0.s8 %v1769
      %v1771 = vperm.slane %v1765, %v1770
      %v1773 = vunpack.c.l.s4 1983009808
      %v1774 = vunpack.c.0.s8 %v1773
      %v1775 = vperm.slane %v1767, %v1774
      %v1776 = vrot.slane %v1699, 4
      %v1777 = vsel %vm211, %v1776, %v1691
      %v1778 = vrot.slane %v1691, 4
      %v1779 = vsel %vm211, %v1699, %v1778
      %v1781 = vunpack.c.l.s4 1983009808
      %v1782 = vunpack.c.0.s8 %v1781
      %v1783 = vperm.slane %v1777, %v1782
      %v1785 = vunpack.c.l.s4 1983009808
      %v1786 = vunpack.c.0.s8 %v1785
      %v1787 = vperm.slane %v1779, %v1786
      %v1788 = vrot.slane %v1783, 4
      %v1789 = vsel %vm211, %v1788, %v1771
      %v1790 = vrot.slane %v1771, 4
      %v1791 = vsel %vm211, %v1783, %v1790
      %v1793 = vunpack.c.l.s4 1934713408
      %v1794 = vunpack.c.0.s8 %v1793
      %v1795 = vperm.slane %v1789, %v1794
      %v1797 = vunpack.c.l.s4 1934713408
      %v1798 = vunpack.c.0.s8 %v1797
      %v1799 = vperm.slane %v1791, %v1798
      %v1800 = vrot.slane %v1787, 4
      %v1801 = vsel %vm211, %v1800, %v1775
      %v1802 = vrot.slane %v1775, 4
      %v1803 = vsel %vm211, %v1787, %v1802
      %v1805 = vunpack.c.l.s4 1934713408
      %v1806 = vunpack.c.0.s8 %v1805
      %v1807 = vperm.slane %v1801, %v1806
      %v1809 = vunpack.c.l.s4 1934713408
      %v1810 = vunpack.c.0.s8 %v1809
      %v1811 = vperm.slane %v1803, %v1810
      %v1812 = vrot.slane %v1795, 4
      %v1813 = vsel %vm211, 0.0, %v1812
      %v1814 = vrot.slane %v1799, 4
      %v1815 = vsel %vm211, 0.0, %v1814
      %v1816 = vrot.slane %v1807, 4
      %v1817 = vsel %vm211, 0.0, %v1816
      %v1818 = vrot.slane %v1811, 4
      %v1819 = vsel %vm211, 0.0, %v1818
      %1821 = vrot.lane.b32.xlu0 %v1757, 16
      %v1822 = vpop.permute.xlu0 %1821
      %1825 = vrot.lane.b32.xlu0 %v1743, 32
      %v1826 = vpop.permute.xlu0 %1825
      %1829 = vrot.lane.b32.xlu0 %v1759, 48
      %v1830 = vpop.permute.xlu0 %1829
      %1833 = vrot.lane.b32.xlu0 %v1751, 64
      %v1834 = vpop.permute.xlu0 %1833
      %1837 = vrot.lane.b32.xlu0 %v1761, 80
      %v1838 = vpop.permute.xlu0 %1837
      %1841 = vrot.lane.b32.xlu0 %v1755, 96
      %v1842 = vpop.permute.xlu0 %1841
      %1845 = vrot.lane.b32.xlu0 %v1763, 112
      %v1846 = vpop.permute.xlu0 %1845
      %1849 = vrot.lane.b32.xlu0 %v1813, 16
      %v1850 = vpop.permute.xlu0 %1849
      %1853 = vrot.lane.b32.xlu0 %v1799, 32
      %v1854 = vpop.permute.xlu0 %1853
      %1857 = vrot.lane.b32.xlu0 %v1815, 48
      %v1858 = vpop.permute.xlu0 %1857
      %1861 = vrot.lane.b32.xlu0 %v1807, 64
      %v1862 = vpop.permute.xlu0 %1861
      %1865 = vrot.lane.b32.xlu0 %v1817, 80
      %v1866 = vpop.permute.xlu0 %1865
      %1869 = vrot.lane.b32.xlu0 %v1811, 96
      %v1870 = vpop.permute.xlu0 %1869
      %1873 = vrot.lane.b32.xlu0 %v1819, 112
      %v1874 = vpop.permute.xlu0 %1873
      %v1876 = vsel %vm769, %v1739, %v1822
      %v1877 = vsel %vm771, %v1876, %v1826
      %v1878 = vsel %vm773, %v1877, %v1830
      %v1879 = vsel %vm775, %v1878, %v1834
      %v1880 = vsel %vm777, %v1879, %v1838
      %v1881 = vsel %vm779, %v1880, %v1842
      %v1882 = vsel %vm781, %v1881, %v1846
      %v1883 = vsel %vm769, %v1795, %v1850
      %v1884 = vsel %vm771, %v1883, %v1854
      %v1885 = vsel %vm773, %v1884, %v1858
      %v1886 = vsel %vm775, %v1885, %v1862
      %v1887 = vsel %vm777, %v1886, %v1866
      %v1888 = vsel %vm779, %v1887, %v1870
      %v1889 = vsel %vm781, %v1888, %v1874
      %v1892 = vrot.slane %v1882, 4
      %v1893 = vrot.slane %v1889, 4
      %1896 = vst [vmem:[#allocation3 + $0x20] sm:$0xf0] %v1892
      %1897 = vst [vmem:[#allocation3 + $0x28] sm:$0xf0] %v1893
      %v1898 = vld [vmem:[#allocation2 + $0x2] sm:$0xff]
      %v1899 = vld [vmem:[#allocation2 + $0xa] sm:$0xff]
      %v1900 = vld [vmem:[#allocation2 + $0x1a] sm:$0xff]
      %v1901 = vld [vmem:[#allocation2 + $0x22] sm:$0xff]
      %v1902 = vld [vmem:[#allocation2 + $0x32] sm:$0xff]
      %v1903 = vld [vmem:[#allocation2 + $0x3a] sm:$0xff]
      %v1904 = vld [vmem:[#allocation2 + $0x4a] sm:$0xff]
      %v1905 = vld [vmem:[#allocation2 + $0x52] sm:$0xff]
      %v1906 = vrot.slane %v1902, 4
      %v1907 = vsel %vm211, %v1906, %v1898
      %v1908 = vrot.slane %v1898, 4
      %v1909 = vsel %vm211, %v1902, %v1908
      %v1911 = vunpack.c.l.s4 1983009808
      %v1912 = vunpack.c.0.s8 %v1911
      %v1913 = vperm.slane %v1907, %v1912
      %v1915 = vunpack.c.l.s4 1983009808
      %v1916 = vunpack.c.0.s8 %v1915
      %v1917 = vperm.slane %v1909, %v1916
      %v1918 = vrot.slane %v1904, 4
      %v1919 = vsel %vm211, %v1918, %v1900
      %v1920 = vrot.slane %v1900, 4
      %v1921 = vsel %vm211, %v1904, %v1920
      %v1923 = vunpack.c.l.s4 1983009808
      %v1924 = vunpack.c.0.s8 %v1923
      %v1925 = vperm.slane %v1919, %v1924
      %v1927 = vunpack.c.l.s4 1983009808
      %v1928 = vunpack.c.0.s8 %v1927
      %v1929 = vperm.slane %v1921, %v1928
      %v1930 = vrot.slane %v1925, 4
      %v1931 = vsel %vm211, %v1930, %v1913
      %v1932 = vrot.slane %v1913, 4
      %v1933 = vsel %vm211, %v1925, %v1932
      %v1935 = vunpack.c.l.s4 1934713408
      %v1936 = vunpack.c.0.s8 %v1935
      %v1937 = vperm.slane %v1931, %v1936
      %v1939 = vunpack.c.l.s4 1934713408
      %v1940 = vunpack.c.0.s8 %v1939
      %v1941 = vperm.slane %v1933, %v1940
      %v1942 = vrot.slane %v1929, 4
      %v1943 = vsel %vm211, %v1942, %v1917
      %v1944 = vrot.slane %v1917, 4
      %v1945 = vsel %vm211, %v1929, %v1944
      %v1947 = vunpack.c.l.s4 1934713408
      %v1948 = vunpack.c.0.s8 %v1947
      %v1949 = vperm.slane %v1943, %v1948
      %v1951 = vunpack.c.l.s4 1934713408
      %v1952 = vunpack.c.0.s8 %v1951
      %v1953 = vperm.slane %v1945, %v1952
      %v1954 = vrot.slane %v1937, 4
      %v1955 = vsel %vm211, 0.0, %v1954
      %v1956 = vrot.slane %v1941, 4
      %v1957 = vsel %vm211, 0.0, %v1956
      %v1958 = vrot.slane %v1949, 4
      %v1959 = vsel %vm211, 0.0, %v1958
      %v1960 = vrot.slane %v1953, 4
      %v1961 = vsel %vm211, 0.0, %v1960
      %v1962 = vrot.slane %v1903, 4
      %v1963 = vsel %vm211, %v1962, %v1899
      %v1964 = vrot.slane %v1899, 4
      %v1965 = vsel %vm211, %v1903, %v1964
      %v1967 = vunpack.c.l.s4 1983009808
      %v1968 = vunpack.c.0.s8 %v1967
      %v1969 = vperm.slane %v1963, %v1968
      %v1971 = vunpack.c.l.s4 1983009808
      %v1972 = vunpack.c.0.s8 %v1971
      %v1973 = vperm.slane %v1965, %v1972
      %v1974 = vrot.slane %v1905, 4
      %v1975 = vsel %vm211, %v1974, %v1901
      %v1976 = vrot.slane %v1901, 4
      %v1977 = vsel %vm211, %v1905, %v1976
      %v1979 = vunpack.c.l.s4 1983009808
      %v1980 = vunpack.c.0.s8 %v1979
      %v1981 = vperm.slane %v1975, %v1980
      %v1983 = vunpack.c.l.s4 1983009808
      %v1984 = vunpack.c.0.s8 %v1983
      %v1985 = vperm.slane %v1977, %v1984
      %v1986 = vrot.slane %v1981, 4
      %v1987 = vsel %vm211, %v1986, %v1969
      %v1988 = vrot.slane %v1969, 4
      %v1989 = vsel %vm211, %v1981, %v1988
      %v1991 = vunpack.c.l.s4 1934713408
      %v1992 = vunpack.c.0.s8 %v1991
      %v1993 = vperm.slane %v1987, %v1992
      %v1995 = vunpack.c.l.s4 1934713408
      %v1996 = vunpack.c.0.s8 %v1995
      %v1997 = vperm.slane %v1989, %v1996
      %v1998 = vrot.slane %v1985, 4
      %v1999 = vsel %vm211, %v1998, %v1973
      %v2000 = vrot.slane %v1973, 4
      %v2001 = vsel %vm211, %v1985, %v2000
      %v2003 = vunpack.c.l.s4 1934713408
      %v2004 = vunpack.c.0.s8 %v2003
      %v2005 = vperm.slane %v1999, %v2004
      %v2007 = vunpack.c.l.s4 1934713408
      %v2008 = vunpack.c.0.s8 %v2007
      %v2009 = vperm.slane %v2001, %v2008
      %v2010 = vrot.slane %v1993, 4
      %v2011 = vsel %vm211, 0.0, %v2010
      %v2012 = vrot.slane %v1997, 4
      %v2013 = vsel %vm211, 0.0, %v2012
      %v2014 = vrot.slane %v2005, 4
      %v2015 = vsel %vm211, 0.0, %v2014
      %v2016 = vrot.slane %v2009, 4
      %v2017 = vsel %vm211, 0.0, %v2016
      %2019 = vrot.lane.b32.xlu0 %v1955, 16
      %v2020 = vpop.permute.xlu0 %2019
      %2023 = vrot.lane.b32.xlu0 %v1941, 32
      %v2024 = vpop.permute.xlu0 %2023
      %2027 = vrot.lane.b32.xlu0 %v1957, 48
      %v2028 = vpop.permute.xlu0 %2027
      %2031 = vrot.lane.b32.xlu0 %v1949, 64
      %v2032 = vpop.permute.xlu0 %2031
      %2035 = vrot.lane.b32.xlu0 %v1959, 80
      %v2036 = vpop.permute.xlu0 %2035
      %2039 = vrot.lane.b32.xlu0 %v1953, 96
      %v2040 = vpop.permute.xlu0 %2039
      %2043 = vrot.lane.b32.xlu0 %v1961, 112
      %v2044 = vpop.permute.xlu0 %2043
      %2047 = vrot.lane.b32.xlu0 %v2011, 16
      %v2048 = vpop.permute.xlu0 %2047
      %2051 = vrot.lane.b32.xlu0 %v1997, 32
      %v2052 = vpop.permute.xlu0 %2051
      %2055 = vrot.lane.b32.xlu0 %v2013, 48
      %v2056 = vpop.permute.xlu0 %2055
      %2059 = vrot.lane.b32.xlu0 %v2005, 64
      %v2060 = vpop.permute.xlu0 %2059
      %2063 = vrot.lane.b32.xlu0 %v2015, 80
      %v2064 = vpop.permute.xlu0 %2063
      %2067 = vrot.lane.b32.xlu0 %v2009, 96
      %v2068 = vpop.permute.xlu0 %2067
      %2071 = vrot.lane.b32.xlu0 %v2017, 112
      %v2072 = vpop.permute.xlu0 %2071
      %v2074 = vsel %vm769, %v1937, %v2020
      %v2075 = vsel %vm771, %v2074, %v2024
      %v2076 = vsel %vm773, %v2075, %v2028
      %v2077 = vsel %vm775, %v2076, %v2032
      %v2078 = vsel %vm777, %v2077, %v2036
      %v2079 = vsel %vm779, %v2078, %v2040
      %v2080 = vsel %vm781, %v2079, %v2044
      %v2081 = vsel %vm769, %v1993, %v2048
      %v2082 = vsel %vm771, %v2081, %v2052
      %v2083 = vsel %vm773, %v2082, %v2056
      %v2084 = vsel %vm775, %v2083, %v2060
      %v2085 = vsel %vm777, %v2084, %v2064
      %v2086 = vsel %vm779, %v2085, %v2068
      %v2087 = vsel %vm781, %v2086, %v2072
      %2088 = vst [vmem:[#allocation3 + $0x30] sm:$0xf] %v2080
      %2089 = vst [vmem:[#allocation3 + $0x38] sm:$0xf] %v2087
      %v2090 = vld [vmem:[#allocation2 + $0x2] sm:$0xff]
      %v2091 = vld [vmem:[#allocation2 + $0xa] sm:$0xff]
      %v2092 = vld [vmem:[#allocation2 + $0x1a] sm:$0xff]
      %v2093 = vld [vmem:[#allocation2 + $0x22] sm:$0xff]
      %v2094 = vld [vmem:[#allocation2 + $0x32] sm:$0xff]
      %v2095 = vld [vmem:[#allocation2 + $0x3a] sm:$0xff]
      %v2096 = vld [vmem:[#allocation2 + $0x4a] sm:$0xff]
      %v2097 = vld [vmem:[#allocation2 + $0x52] sm:$0xff]
      %2106 = vrot.lane.b32.xlu0 %v2090, 127
      %v2107 = vpop.permute.xlu0 %2106
      %2108 = vrot.lane.b32.xlu0 %v2091, 127
      %v2109 = vpop.permute.xlu0 %2108
      %2110 = vrot.lane.b32.xlu0 %v2092, 127
      %v2111 = vpop.permute.xlu0 %2110
      %2112 = vrot.lane.b32.xlu0 %v2093, 127
      %v2113 = vpop.permute.xlu0 %2112
      %2114 = vrot.lane.b32.xlu0 %v2094, 127
      %v2115 = vpop.permute.xlu0 %2114
      %2116 = vrot.lane.b32.xlu0 %v2095, 127
      %v2117 = vpop.permute.xlu0 %2116
      %2118 = vrot.lane.b32.xlu0 %v2096, 127
      %v2119 = vpop.permute.xlu0 %2118
      %2120 = vrot.lane.b32.xlu0 %v2097, 127
      %v2121 = vpop.permute.xlu0 %2120
      %v2130 = vrot.slane %v2115, 4
      %v2131 = vsel %vm211, %v2130, %v2107
      %v2132 = vrot.slane %v2107, 4
      %v2133 = vsel %vm211, %v2115, %v2132
      %v2135 = vunpack.c.l.s4 1983009808
      %v2136 = vunpack.c.0.s8 %v2135
      %v2137 = vperm.slane %v2131, %v2136
      %v2139 = vunpack.c.l.s4 1983009808
      %v2140 = vunpack.c.0.s8 %v2139
      %v2141 = vperm.slane %v2133, %v2140
      %v2142 = vrot.slane %v2119, 4
      %v2143 = vsel %vm211, %v2142, %v2111
      %v2144 = vrot.slane %v2111, 4
      %v2145 = vsel %vm211, %v2119, %v2144
      %v2147 = vunpack.c.l.s4 1983009808
      %v2148 = vunpack.c.0.s8 %v2147
      %v2149 = vperm.slane %v2143, %v2148
      %v2151 = vunpack.c.l.s4 1983009808
      %v2152 = vunpack.c.0.s8 %v2151
      %v2153 = vperm.slane %v2145, %v2152
      %v2154 = vrot.slane %v2149, 4
      %v2155 = vsel %vm211, %v2154, %v2137
      %v2156 = vrot.slane %v2137, 4
      %v2157 = vsel %vm211, %v2149, %v2156
      %v2159 = vunpack.c.l.s4 1934713408
      %v2160 = vunpack.c.0.s8 %v2159
      %v2161 = vperm.slane %v2155, %v2160
      %v2163 = vunpack.c.l.s4 1934713408
      %v2164 = vunpack.c.0.s8 %v2163
      %v2165 = vperm.slane %v2157, %v2164
      %v2166 = vrot.slane %v2153, 4
      %v2167 = vsel %vm211, %v2166, %v2141
      %v2168 = vrot.slane %v2141, 4
      %v2169 = vsel %vm211, %v2153, %v2168
      %v2171 = vunpack.c.l.s4 1934713408
      %v2172 = vunpack.c.0.s8 %v2171
      %v2173 = vperm.slane %v2167, %v2172
      %v2175 = vunpack.c.l.s4 1934713408
      %v2176 = vunpack.c.0.s8 %v2175
      %v2177 = vperm.slane %v2169, %v2176
      %v2178 = vrot.slane %v2161, 4
      %v2179 = vsel %vm211, 0.0, %v2178
      %v2180 = vrot.slane %v2165, 4
      %v2181 = vsel %vm211, 0.0, %v2180
      %v2182 = vrot.slane %v2173, 4
      %v2183 = vsel %vm211, 0.0, %v2182
      %v2184 = vrot.slane %v2177, 4
      %v2185 = vsel %vm211, 0.0, %v2184
      %v2186 = vrot.slane %v2117, 4
      %v2187 = vsel %vm211, %v2186, %v2109
      %v2188 = vrot.slane %v2109, 4
      %v2189 = vsel %vm211, %v2117, %v2188
      %v2191 = vunpack.c.l.s4 1983009808
      %v2192 = vunpack.c.0.s8 %v2191
      %v2193 = vperm.slane %v2187, %v2192
      %v2195 = vunpack.c.l.s4 1983009808
      %v2196 = vunpack.c.0.s8 %v2195
      %v2197 = vperm.slane %v2189, %v2196
      %v2198 = vrot.slane %v2121, 4
      %v2199 = vsel %vm211, %v2198, %v2113
      %v2200 = vrot.slane %v2113, 4
      %v2201 = vsel %vm211, %v2121, %v2200
      %v2203 = vunpack.c.l.s4 1983009808
      %v2204 = vunpack.c.0.s8 %v2203
      %v2205 = vperm.slane %v2199, %v2204
      %v2207 = vunpack.c.l.s4 1983009808
      %v2208 = vunpack.c.0.s8 %v2207
      %v2209 = vperm.slane %v2201, %v2208
      %v2210 = vrot.slane %v2205, 4
      %v2211 = vsel %vm211, %v2210, %v2193
      %v2212 = vrot.slane %v2193, 4
      %v2213 = vsel %vm211, %v2205, %v2212
      %v2215 = vunpack.c.l.s4 1934713408
      %v2216 = vunpack.c.0.s8 %v2215
      %v2217 = vperm.slane %v2211, %v2216
      %v2219 = vunpack.c.l.s4 1934713408
      %v2220 = vunpack.c.0.s8 %v2219
      %v2221 = vperm.slane %v2213, %v2220
      %v2222 = vrot.slane %v2209, 4
      %v2223 = vsel %vm211, %v2222, %v2197
      %v2224 = vrot.slane %v2197, 4
      %v2225 = vsel %vm211, %v2209, %v2224
      %v2227 = vunpack.c.l.s4 1934713408
      %v2228 = vunpack.c.0.s8 %v2227
      %v2229 = vperm.slane %v2223, %v2228
      %v2231 = vunpack.c.l.s4 1934713408
      %v2232 = vunpack.c.0.s8 %v2231
      %v2233 = vperm.slane %v2225, %v2232
      %v2234 = vrot.slane %v2217, 4
      %v2235 = vsel %vm211, 0.0, %v2234
      %v2236 = vrot.slane %v2221, 4
      %v2237 = vsel %vm211, 0.0, %v2236
      %v2238 = vrot.slane %v2229, 4
      %v2239 = vsel %vm211, 0.0, %v2238
      %v2240 = vrot.slane %v2233, 4
      %v2241 = vsel %vm211, 0.0, %v2240
      %2243 = vrot.lane.b32.xlu0 %v2179, 16
      %v2244 = vpop.permute.xlu0 %2243
      %2247 = vrot.lane.b32.xlu0 %v2165, 32
      %v2248 = vpop.permute.xlu0 %2247
      %2251 = vrot.lane.b32.xlu0 %v2181, 48
      %v2252 = vpop.permute.xlu0 %2251
      %2255 = vrot.lane.b32.xlu0 %v2173, 64
      %v2256 = vpop.permute.xlu0 %2255
      %2259 = vrot.lane.b32.xlu0 %v2183, 80
      %v2260 = vpop.permute.xlu0 %2259
      %2263 = vrot.lane.b32.xlu0 %v2177, 96
      %v2264 = vpop.permute.xlu0 %2263
      %2267 = vrot.lane.b32.xlu0 %v2185, 112
      %v2268 = vpop.permute.xlu0 %2267
      %2271 = vrot.lane.b32.xlu0 %v2235, 16
      %v2272 = vpop.permute.xlu0 %2271
      %2275 = vrot.lane.b32.xlu0 %v2221, 32
      %v2276 = vpop.permute.xlu0 %2275
      %2279 = vrot.lane.b32.xlu0 %v2237, 48
      %v2280 = vpop.permute.xlu0 %2279
      %2283 = vrot.lane.b32.xlu0 %v2229, 64
      %v2284 = vpop.permute.xlu0 %2283
      %2287 = vrot.lane.b32.xlu0 %v2239, 80
      %v2288 = vpop.permute.xlu0 %2287
      %2291 = vrot.lane.b32.xlu0 %v2233, 96
      %v2292 = vpop.permute.xlu0 %2291
      %2295 = vrot.lane.b32.xlu0 %v2241, 112
      %v2296 = vpop.permute.xlu0 %2295
      %v2298 = vsel %vm769, %v2161, %v2244
      %v2299 = vsel %vm771, %v2298, %v2248
      %v2300 = vsel %vm773, %v2299, %v2252
      %v2301 = vsel %vm775, %v2300, %v2256
      %v2302 = vsel %vm777, %v2301, %v2260
      %v2303 = vsel %vm779, %v2302, %v2264
      %v2304 = vsel %vm781, %v2303, %v2268
      %v2305 = vsel %vm769, %v2217, %v2272
      %v2306 = vsel %vm771, %v2305, %v2276
      %v2307 = vsel %vm773, %v2306, %v2280
      %v2308 = vsel %vm775, %v2307, %v2284
      %v2309 = vsel %vm777, %v2308, %v2288
      %v2310 = vsel %vm779, %v2309, %v2292
      %v2311 = vsel %vm781, %v2310, %v2296
      %v2314 = vrot.slane %v2304, 4
      %v2315 = vrot.slane %v2311, 4
      %2318 = vst [vmem:[#allocation3 + $0x30] sm:$0xf0] %v2314
      %2319 = vst [vmem:[#allocation3 + $0x38] sm:$0xf0] %v2315
      %v2320 = vld [vmem:[#allocation2 + $0x2] sm:$0xff]
      %v2321 = vld [vmem:[#allocation2 + $0xa] sm:$0xff]
      %v2322 = vld [vmem:[#allocation2 + $0x1a] sm:$0xff]
      %v2323 = vld [vmem:[#allocation2 + $0x22] sm:$0xff]
      %v2324 = vld [vmem:[#allocation2 + $0x32] sm:$0xff]
      %v2325 = vld [vmem:[#allocation2 + $0x3a] sm:$0xff]
      %v2326 = vld [vmem:[#allocation2 + $0x4a] sm:$0xff]
      %v2327 = vld [vmem:[#allocation2 + $0x52] sm:$0xff]
      %2336 = vrot.lane.b32.xlu0 %v2320, 126
      %v2337 = vpop.permute.xlu0 %2336
      %2338 = vrot.lane.b32.xlu0 %v2321, 126
      %v2339 = vpop.permute.xlu0 %2338
      %2340 = vrot.lane.b32.xlu0 %v2322, 126
      %v2341 = vpop.permute.xlu0 %2340
      %2342 = vrot.lane.b32.xlu0 %v2323, 126
      %v2343 = vpop.permute.xlu0 %2342
      %2344 = vrot.lane.b32.xlu0 %v2324, 126
      %v2345 = vpop.permute.xlu0 %2344
      %2346 = vrot.lane.b32.xlu0 %v2325, 126
      %v2347 = vpop.permute.xlu0 %2346
      %2348 = vrot.lane.b32.xlu0 %v2326, 126
      %v2349 = vpop.permute.xlu0 %2348
      %2350 = vrot.lane.b32.xlu0 %v2327, 126
      %v2351 = vpop.permute.xlu0 %2350
      %v2360 = vrot.slane %v2345, 4
      %v2361 = vsel %vm211, %v2360, %v2337
      %v2362 = vrot.slane %v2337, 4
      %v2363 = vsel %vm211, %v2345, %v2362
      %v2365 = vunpack.c.l.s4 1983009808
      %v2366 = vunpack.c.0.s8 %v2365
      %v2367 = vperm.slane %v2361, %v2366
      %v2369 = vunpack.c.l.s4 1983009808
      %v2370 = vunpack.c.0.s8 %v2369
      %v2371 = vperm.slane %v2363, %v2370
      %v2372 = vrot.slane %v2349, 4
      %v2373 = vsel %vm211, %v2372, %v2341
      %v2374 = vrot.slane %v2341, 4
      %v2375 = vsel %vm211, %v2349, %v2374
      %v2377 = vunpack.c.l.s4 1983009808
      %v2378 = vunpack.c.0.s8 %v2377
      %v2379 = vperm.slane %v2373, %v2378
      %v2381 = vunpack.c.l.s4 1983009808
      %v2382 = vunpack.c.0.s8 %v2381
      %v2383 = vperm.slane %v2375, %v2382
      %v2384 = vrot.slane %v2379, 4
      %v2385 = vsel %vm211, %v2384, %v2367
      %v2386 = vrot.slane %v2367, 4
      %v2387 = vsel %vm211, %v2379, %v2386
      %v2389 = vunpack.c.l.s4 1934713408
      %v2390 = vunpack.c.0.s8 %v2389
      %v2391 = vperm.slane %v2385, %v2390
      %v2393 = vunpack.c.l.s4 1934713408
      %v2394 = vunpack.c.0.s8 %v2393
      %v2395 = vperm.slane %v2387, %v2394
      %v2396 = vrot.slane %v2383, 4
      %v2397 = vsel %vm211, %v2396, %v2371
      %v2398 = vrot.slane %v2371, 4
      %v2399 = vsel %vm211, %v2383, %v2398
      %v2401 = vunpack.c.l.s4 1934713408
      %v2402 = vunpack.c.0.s8 %v2401
      %v2403 = vperm.slane %v2397, %v2402
      %v2405 = vunpack.c.l.s4 1934713408
      %v2406 = vunpack.c.0.s8 %v2405
      %v2407 = vperm.slane %v2399, %v2406
      %v2408 = vrot.slane %v2391, 4
      %v2409 = vsel %vm211, 0.0, %v2408
      %v2410 = vrot.slane %v2395, 4
      %v2411 = vsel %vm211, 0.0, %v2410
      %v2412 = vrot.slane %v2403, 4
      %v2413 = vsel %vm211, 0.0, %v2412
      %v2414 = vrot.slane %v2407, 4
      %v2415 = vsel %vm211, 0.0, %v2414
      %v2416 = vrot.slane %v2347, 4
      %v2417 = vsel %vm211, %v2416, %v2339
      %v2418 = vrot.slane %v2339, 4
      %v2419 = vsel %vm211, %v2347, %v2418
      %v2421 = vunpack.c.l.s4 1983009808
      %v2422 = vunpack.c.0.s8 %v2421
      %v2423 = vperm.slane %v2417, %v2422
      %v2425 = vunpack.c.l.s4 1983009808
      %v2426 = vunpack.c.0.s8 %v2425
      %v2427 = vperm.slane %v2419, %v2426
      %v2428 = vrot.slane %v2351, 4
      %v2429 = vsel %vm211, %v2428, %v2343
      %v2430 = vrot.slane %v2343, 4
      %v2431 = vsel %vm211, %v2351, %v2430
      %v2433 = vunpack.c.l.s4 1983009808
      %v2434 = vunpack.c.0.s8 %v2433
      %v2435 = vperm.slane %v2429, %v2434
      %v2437 = vunpack.c.l.s4 1983009808
      %v2438 = vunpack.c.0.s8 %v2437
      %v2439 = vperm.slane %v2431, %v2438
      %v2440 = vrot.slane %v2435, 4
      %v2441 = vsel %vm211, %v2440, %v2423
      %v2442 = vrot.slane %v2423, 4
      %v2443 = vsel %vm211, %v2435, %v2442
      %v2445 = vunpack.c.l.s4 1934713408
      %v2446 = vunpack.c.0.s8 %v2445
      %v2447 = vperm.slane %v2441, %v2446
      %v2449 = vunpack.c.l.s4 1934713408
      %v2450 = vunpack.c.0.s8 %v2449
      %v2451 = vperm.slane %v2443, %v2450
      %v2452 = vrot.slane %v2439, 4
      %v2453 = vsel %vm211, %v2452, %v2427
      %v2454 = vrot.slane %v2427, 4
      %v2455 = vsel %vm211, %v2439, %v2454
      %v2457 = vunpack.c.l.s4 1934713408
      %v2458 = vunpack.c.0.s8 %v2457
      %v2459 = vperm.slane %v2453, %v2458
      %v2461 = vunpack.c.l.s4 1934713408
      %v2462 = vunpack.c.0.s8 %v2461
      %v2463 = vperm.slane %v2455, %v2462
      %v2464 = vrot.slane %v2447, 4
      %v2465 = vsel %vm211, 0.0, %v2464
      %v2466 = vrot.slane %v2451, 4
      %v2467 = vsel %vm211, 0.0, %v2466
      %v2468 = vrot.slane %v2459, 4
      %v2469 = vsel %vm211, 0.0, %v2468
      %v2470 = vrot.slane %v2463, 4
      %v2471 = vsel %vm211, 0.0, %v2470
      %2473 = vrot.lane.b32.xlu0 %v2409, 16
      %v2474 = vpop.permute.xlu0 %2473
      %2477 = vrot.lane.b32.xlu0 %v2395, 32
      %v2478 = vpop.permute.xlu0 %2477
      %2481 = vrot.lane.b32.xlu0 %v2411, 48
      %v2482 = vpop.permute.xlu0 %2481
      %2485 = vrot.lane.b32.xlu0 %v2403, 64
      %v2486 = vpop.permute.xlu0 %2485
      %2489 = vrot.lane.b32.xlu0 %v2413, 80
      %v2490 = vpop.permute.xlu0 %2489
      %2493 = vrot.lane.b32.xlu0 %v2407, 96
      %v2494 = vpop.permute.xlu0 %2493
      %2497 = vrot.lane.b32.xlu0 %v2415, 112
      %v2498 = vpop.permute.xlu0 %2497
      %2501 = vrot.lane.b32.xlu0 %v2465, 16
      %v2502 = vpop.permute.xlu0 %2501
      %2505 = vrot.lane.b32.xlu0 %v2451, 32
      %v2506 = vpop.permute.xlu0 %2505
      %2509 = vrot.lane.b32.xlu0 %v2467, 48
      %v2510 = vpop.permute.xlu0 %2509
      %2513 = vrot.lane.b32.xlu0 %v2459, 64
      %v2514 = vpop.permute.xlu0 %2513
      %2517 = vrot.lane.b32.xlu0 %v2469, 80
      %v2518 = vpop.permute.xlu0 %2517
      %2521 = vrot.lane.b32.xlu0 %v2463, 96
      %v2522 = vpop.permute.xlu0 %2521
      %2525 = vrot.lane.b32.xlu0 %v2471, 112
      %v2526 = vpop.permute.xlu0 %2525
      %v2528 = vsel %vm769, %v2391, %v2474
      %v2529 = vsel %vm771, %v2528, %v2478
      %v2530 = vsel %vm773, %v2529, %v2482
      %v2531 = vsel %vm775, %v2530, %v2486
      %v2532 = vsel %vm777, %v2531, %v2490
      %v2533 = vsel %vm779, %v2532, %v2494
      %v2534 = vsel %vm781, %v2533, %v2498
      %v2535 = vsel %vm769, %v2447, %v2502
      %v2536 = vsel %vm771, %v2535, %v2506
      %v2537 = vsel %vm773, %v2536, %v2510
      %v2538 = vsel %vm775, %v2537, %v2514
      %v2539 = vsel %vm777, %v2538, %v2518
      %v2540 = vsel %vm779, %v2539, %v2522
      %v2541 = vsel %vm781, %v2540, %v2526
      %2542 = vst [vmem:[#allocation3 + $0x40] sm:$0xf] %v2534
      %2543 = vst [vmem:[#allocation3 + $0x48] sm:$0xf] %v2541
      %v2544 = vld [vmem:[%s1] sm:$0xf]
      %v2545 = vld [vmem:[#allocation3] sm:$0xff]
      %v2546 = vld [vmem:[#allocation3 + $0x8] sm:$0xff]
      %v2547 = vld [vmem:[#allocation3 + $0x10] sm:$0xff]
      %v2548 = vld [vmem:[#allocation3 + $0x18] sm:$0xff]
      %v2549 = vld [vmem:[#allocation3 + $0x20] sm:$0xff]
      %v2550 = vld [vmem:[#allocation3 + $0x28] sm:$0xff]
      %v2551 = vld [vmem:[#allocation3 + $0x30] sm:$0xff]
      %v2552 = vld [vmem:[#allocation3 + $0x38] sm:$0xff]
      %v2553 = vld [vmem:[#allocation3 + $0x40] sm:$0xf]
      %v2554 = vld [vmem:[#allocation3 + $0x48] sm:$0xf]
      %vm2555 = vcmask 293888
      %v2557 = vsel %vm2555, %v2544, 0
      %vm2559 = vcmask 1043456
      %v2561 = vsel %vm2559, %v2553, 0
      %v2564 = vsel %vm2559, %v2554, 0
      %2566 = vmatpush.msra.mxu0 0.0
      %2567 = vmatpush.msra.mxu0 0.0
      %2568 = vmatpush.msra.mxu0 0.0
      %2569 = vmatpush.msra.mxu0 0.0
      %2570 = vmatpush.msra.mxu0 0.0
      %2571 = vmatpush.msra.mxu0 0.0
      %2572 = vmatpush.msra.mxu0 0.0
      %2573 = vmatpush.msra.mxu0 0.0
      %2574 = vmatpush.msra.mxu0 0.0
      %2575 = vmatpush.msra.mxu0 0.0
      %2576 = vmatpush.msra.mxu0 0.0
      %2577 = vmatpush.msra.mxu0 %v2561
      %2578 = vmatpush.msra.mxu0 %v2551
      %2579 = vmatpush.msra.mxu0 %v2549
      %2580 = vmatpush.msra.mxu0 %v2547
      %2581 = vmatpush.msra.mxu0 %v2545
      %2582 = vmatmul.f32.gmra.mxu0 %v2557
      %v2583 = vpop.f32.mrf.mxu0
      %v2584 = vadd.f32 0.0, %v2583
      %2585 = vdwg.mxu0
      %2586 = vmatpush.msra.mxu0 0.0
      %2587 = vmatpush.msra.mxu0 0.0
      %2588 = vmatpush.msra.mxu0 0.0
      %2589 = vmatpush.msra.mxu0 0.0
      %2590 = vmatpush.msra.mxu0 0.0
      %2591 = vmatpush.msra.mxu0 0.0
      %2592 = vmatpush.msra.mxu0 0.0
      %2593 = vmatpush.msra.mxu0 0.0
      %2594 = vmatpush.msra.mxu0 0.0
      %2595 = vmatpush.msra.mxu0 0.0
      %2596 = vmatpush.msra.mxu0 0.0
      %2597 = vmatpush.msra.mxu0 %v2564
      %2598 = vmatpush.msra.mxu0 %v2552
      %2599 = vmatpush.msra.mxu0 %v2550
      %2600 = vmatpush.msra.mxu0 %v2548
      %2601 = vmatpush.msra.mxu0 %v2546
      %2602 = vmatmul.f32.gmra.mxu0 %v2557
      %v2603 = vpop.f32.mrf.mxu0
      %v2604 = vadd.f32 0.0, %v2603
      %2605 = vdwg.mxu0
      %v2606 = vsel %vm2559, %v2584, 0.0
      %v2607 = vsel %vm2559, %v2604, 0.0
      %v2608 = vadd.f32 %v2606, %v2607
      %2609 = vadd.xlane.f32.xlu0 %v2608
      %v2610 = vpop.xlane.xlu0 %2609
      %v2611 = vrcp.pop 256.0
      %v2612 = vmul.f32 256.0, %v2611
      %v2613 = vsub.f32 1.0, %v2612
      %v2614 = vmul.f32 %v2611, %v2613
      %v2615 = vadd.f32 %v2611, %v2614
      %vm2616 = vweird.f32 %v2611
      %v2617 = vsel %vm2616, %v2611, %v2615
      %v2618 = vmul.f32 %v2610, %v2617
      %v2619 = vsub.f32 %v2584, %v2618
      %v2620 = vsub.f32 %v2604, %v2618
      %v2621 = vmul.f32 %v2619, %v2619
      %v2622 = vmul.f32 %v2620, %v2620
      %v2623 = vsel %vm2559, %v2621, 0.0
      %v2624 = vsel %vm2559, %v2622, 0.0
      %v2625 = vadd.f32 %v2623, %v2624
      %2626 = vadd.xlane.f32.xlu0 %v2625
      %v2627 = vpop.xlane.xlu0 %2626
      %v2628 = vmul.f32 %v2627, %v2617
      %v2629 = vadd.f32 %v2628, 1e-05
      %v2630 = vrsqrt.pop %v2629
      %v2631 = vmul.f32 %v2630, %v2629
      %v2632 = vmul.f32 %v2631, %v2630
      %v2633 = vmul.f32 0.5, %v2632
      %v2634 = vsub.f32 1.5, %v2633
      %v2635 = vmul.f32 %v2630, %v2634
      %vm2636 = vweird.f32 %v2629
      %vm2637 = vweird.f32 %v2630
      %vm2638 = vmor %vm2636, %vm2637
      %v2639 = vsel %vm2638, %v2630, %v2635
      %v2640 = vmul.f32 %v2619, %v2639
      %v2641 = vmul.f32 %v2620, %v2639
      %v2642 = vmax.f32 %v2640, 0.0
      %v2643 = vmax.f32 %v2641, 0.0
      %2645 = vrot.lane.b32.xlu0 %v2642, 112
      %v2646 = vpop.permute.xlu0 %2645
      %2648 = vrot.lane.b32.xlu0 %v2642, 96
      %v2649 = vpop.permute.xlu0 %2648
      %2651 = vrot.lane.b32.xlu0 %v2642, 80
      %v2652 = vpop.permute.xlu0 %2651
      %2654 = vrot.lane.b32.xlu0 %v2642, 64
      %v2655 = vpop.permute.xlu0 %2654
      %2657 = vrot.lane.b32.xlu0 %v2642, 48
      %v2658 = vpop.permute.xlu0 %2657
      %2660 = vrot.lane.b32.xlu0 %v2642, 32
      %v2661 = vpop.permute.xlu0 %2660
      %2663 = vrot.lane.b32.xlu0 %v2642, 16
      %v2664 = vpop.permute.xlu0 %2663
      %2667 = vrot.lane.b32.xlu0 %v2643, 112
      %v2668 = vpop.permute.xlu0 %2667
      %2670 = vrot.lane.b32.xlu0 %v2643, 96
      %v2671 = vpop.permute.xlu0 %2670
      %2673 = vrot.lane.b32.xlu0 %v2643, 80
      %v2674 = vpop.permute.xlu0 %2673
      %2676 = vrot.lane.b32.xlu0 %v2643, 64
      %v2677 = vpop.permute.xlu0 %2676
      %2679 = vrot.lane.b32.xlu0 %v2643, 48
      %v2680 = vpop.permute.xlu0 %2679
      %2682 = vrot.lane.b32.xlu0 %v2643, 32
      %v2683 = vpop.permute.xlu0 %2682
      %2685 = vrot.lane.b32.xlu0 %v2643, 16
      %v2686 = vpop.permute.xlu0 %2685
      %v2688 = vrot.slane %v2649, 4
      %v2689 = vsel %vm211, %v2688, %v2642
      %v2691 = vunpack.c.l.s4 1983009808
      %v2692 = vunpack.c.0.s8 %v2691
      %v2693 = vperm.slane %v2689, %v2692
      %v2694 = vrot.slane %v2652, 4
      %v2695 = vsel %vm211, %v2694, %v2646
      %v2697 = vunpack.c.l.s4 1983009808
      %v2698 = vunpack.c.0.s8 %v2697
      %v2699 = vperm.slane %v2695, %v2698
      %v2700 = vrot.slane %v2661, 4
      %v2701 = vsel %vm211, %v2700, %v2655
      %v2703 = vunpack.c.l.s4 1983009808
      %v2704 = vunpack.c.0.s8 %v2703
      %v2705 = vperm.slane %v2701, %v2704
      %v2706 = vrot.slane %v2664, 4
      %v2707 = vsel %vm211, %v2706, %v2658
      %v2709 = vunpack.c.l.s4 1983009808
      %v2710 = vunpack.c.0.s8 %v2709
      %v2711 = vperm.slane %v2707, %v2710
      %v2712 = vrot.slane %v2699, 4
      %v2713 = vsel %vm211, %v2712, %v2693
      %v2714 = vrot.slane %v2693, 4
      %v2715 = vsel %vm211, %v2699, %v2714
      %v2717 = vunpack.c.l.s4 1934713408
      %v2718 = vunpack.c.0.s8 %v2717
      %v2719 = vperm.slane %v2713, %v2718
      %v2721 = vunpack.c.l.s4 1934713408
      %v2722 = vunpack.c.0.s8 %v2721
      %v2723 = vperm.slane %v2715, %v2722
      %v2724 = vrot.slane %v2711, 4
      %v2725 = vsel %vm211, %v2724, %v2705
      %v2726 = vrot.slane %v2705, 4
      %v2727 = vsel %vm211, %v2711, %v2726
      %v2729 = vunpack.c.l.s4 1934713408
      %v2730 = vunpack.c.0.s8 %v2729
      %v2731 = vperm.slane %v2725, %v2730
      %v2733 = vunpack.c.l.s4 1934713408
      %v2734 = vunpack.c.0.s8 %v2733
      %v2735 = vperm.slane %v2727, %v2734
      %v2736 = vrot.slane %v2731, 4
      %v2737 = vsel %vm211, %v2736, %v2719
      %v2738 = vrot.slane %v2719, 4
      %v2739 = vsel %vm211, %v2731, %v2738
      %v2740 = vrot.slane %v2735, 4
      %v2741 = vsel %vm211, %v2740, %v2723
      %v2742 = vrot.slane %v2723, 4
      %v2743 = vsel %vm211, %v2735, %v2742
      %v2744 = vrot.slane %v2671, 4
      %v2745 = vsel %vm211, %v2744, %v2643
      %v2747 = vunpack.c.l.s4 1983009808
      %v2748 = vunpack.c.0.s8 %v2747
      %v2749 = vperm.slane %v2745, %v2748
      %v2750 = vrot.slane %v2674, 4
      %v2751 = vsel %vm211, %v2750, %v2668
      %v2753 = vunpack.c.l.s4 1983009808
      %v2754 = vunpack.c.0.s8 %v2753
      %v2755 = vperm.slane %v2751, %v2754
      %v2756 = vrot.slane %v2683, 4
      %v2757 = vsel %vm211, %v2756, %v2677
      %v2759 = vunpack.c.l.s4 1983009808
      %v2760 = vunpack.c.0.s8 %v2759
      %v2761 = vperm.slane %v2757, %v2760
      %v2762 = vrot.slane %v2686, 4
      %v2763 = vsel %vm211, %v2762, %v2680
      %v2765 = vunpack.c.l.s4 1983009808
      %v2766 = vunpack.c.0.s8 %v2765
      %v2767 = vperm.slane %v2763, %v2766
      %v2768 = vrot.slane %v2755, 4
      %v2769 = vsel %vm211, %v2768, %v2749
      %v2770 = vrot.slane %v2749, 4
      %v2771 = vsel %vm211, %v2755, %v2770
      %v2773 = vunpack.c.l.s4 1934713408
      %v2774 = vunpack.c.0.s8 %v2773
      %v2775 = vperm.slane %v2769, %v2774
      %v2777 = vunpack.c.l.s4 1934713408
      %v2778 = vunpack.c.0.s8 %v2777
      %v2779 = vperm.slane %v2771, %v2778
      %v2780 = vrot.slane %v2767, 4
      %v2781 = vsel %vm211, %v2780, %v2761
      %v2782 = vrot.slane %v2761, 4
      %v2783 = vsel %vm211, %v2767, %v2782
      %v2785 = vunpack.c.l.s4 1934713408
      %v2786 = vunpack.c.0.s8 %v2785
      %v2787 = vperm.slane %v2781, %v2786
      %v2789 = vunpack.c.l.s4 1934713408
      %v2790 = vunpack.c.0.s8 %v2789
      %v2791 = vperm.slane %v2783, %v2790
      %v2792 = vrot.slane %v2787, 4
      %v2793 = vsel %vm211, %v2792, %v2775
      %v2794 = vrot.slane %v2775, 4
      %v2795 = vsel %vm211, %v2787, %v2794
      %v2796 = vrot.slane %v2791, 4
      %v2797 = vsel %vm211, %v2796, %v2779
      %v2798 = vrot.slane %v2779, 4
      %v2799 = vsel %vm211, %v2791, %v2798
      %2808 = vrot.lane.b32.xlu0 %v2737, 1
      %v2809 = vpop.permute.xlu0 %2808
      %2810 = vrot.lane.b32.xlu0 %v2793, 1
      %v2811 = vpop.permute.xlu0 %2810
      %2812 = vrot.lane.b32.xlu0 %v2739, 1
      %v2813 = vpop.permute.xlu0 %2812
      %2814 = vrot.lane.b32.xlu0 %v2795, 1
      %v2815 = vpop.permute.xlu0 %2814
      %2816 = vrot.lane.b32.xlu0 %v2741, 1
      %v2817 = vpop.permute.xlu0 %2816
      %2818 = vrot.lane.b32.xlu0 %v2797, 1
      %v2819 = vpop.permute.xlu0 %2818
      %2820 = vrot.lane.b32.xlu0 %v2743, 1
      %v2821 = vpop.permute.xlu0 %2820
      %2822 = vrot.lane.b32.xlu0 %v2799, 1
      %v2823 = vpop.permute.xlu0 %2822
      %2832 = vst.msk [vmem:[#allocation2 + $0x1] sm:$0xff] %vm394, %v2809
      %2833 = vst.msk [vmem:[#allocation2 + $0x9] sm:$0xff] %vm394, %v2811
      %2834 = vst.msk [vmem:[#allocation2 + $0x19] sm:$0xff] %vm394, %v2813
      %2835 = vst.msk [vmem:[#allocation2 + $0x21] sm:$0xff] %vm394, %v2815
      %2836 = vst.msk [vmem:[#allocation2 + $0x31] sm:$0xff] %vm394, %v2817
      %2837 = vst.msk [vmem:[#allocation2 + $0x39] sm:$0xff] %vm394, %v2819
      %2838 = vst.msk [vmem:[#allocation2 + $0x49] sm:$0xff] %vm394, %v2821
      %2839 = vst.msk [vmem:[#allocation2 + $0x51] sm:$0xff] %vm394, %v2823
      %2840 = vst.msk [vmem:[#allocation2 - $0x1] sm:$0x2] %vm419, %v2809
      %2841 = vst.msk [vmem:[#allocation2 + $0x17] sm:$0x2] %vm419, %v2813
      %2842 = vst.msk [vmem:[#allocation2 + $0x2f] sm:$0x2] %vm419, %v2817
      %2843 = vst.msk [vmem:[#allocation2 + $0x47] sm:$0x2] %vm419, %v2821
      %vm2844 = vcmask 137230
      %2845 = vst.msk [vmem:[#allocation2 + $0xb] sm:$0x40] %vm2844, %v2811
      %2846 = vst.msk [vmem:[#allocation2 + $0x23] sm:$0x40] %vm2844, %v2815
      %2847 = vst.msk [vmem:[#allocation2 + $0x3b] sm:$0x40] %vm2844, %v2819
      %2848 = vst.msk [vmem:[#allocation2 + $0x53] sm:$0x40] %vm2844, %v2823
      %v2849 = vld [vmem:[#allocation2] sm:$0xff]
      %v2850 = vld [vmem:[#allocation2 + $0x8] sm:$0xff]
      %v2851 = vld [vmem:[#allocation2 + $0x10] sm:$0x3]
      %v2852 = vld [vmem:[#allocation2 + $0x18] sm:$0xff]
      %v2853 = vld [vmem:[#allocation2 + $0x20] sm:$0xff]
      %v2854 = vld [vmem:[#allocation2 + $0x28] sm:$0x3]
      %v2855 = vld [vmem:[#allocation2 + $0x30] sm:$0xff]
      %v2856 = vld [vmem:[#allocation2 + $0x38] sm:$0xff]
      %v2857 = vld [vmem:[#allocation2 + $0x40] sm:$0x3]
      %v2858 = vld [vmem:[#allocation2 + $0x48] sm:$0xff]
      %v2859 = vld [vmem:[#allocation2 + $0x50] sm:$0xff]
      %v2860 = vld [vmem:[#allocation2 + $0x58] sm:$0x3]
      %2873 = vrot.lane.b32.xlu0 %v2849, 126
      %v2874 = vpop.permute.xlu0 %2873
      %2875 = vrot.lane.b32.xlu0 %v2850, 126
      %v2876 = vpop.permute.xlu0 %2875
      %2877 = vrot.lane.b32.xlu0 %v2851, 126
      %v2878 = vpop.permute.xlu0 %2877
      %2879 = vrot.lane.b32.xlu0 %v2852, 126
      %v2880 = vpop.permute.xlu0 %2879
      %2881 = vrot.lane.b32.xlu0 %v2853, 126
      %v2882 = vpop.permute.xlu0 %2881
      %2883 = vrot.lane.b32.xlu0 %v2854, 126
      %v2884 = vpop.permute.xlu0 %2883
      %2885 = vrot.lane.b32.xlu0 %v2855, 126
      %v2886 = vpop.permute.xlu0 %2885
      %2887 = vrot.lane.b32.xlu0 %v2856, 126
      %v2888 = vpop.permute.xlu0 %2887
      %2889 = vrot.lane.b32.xlu0 %v2857, 126
      %v2890 = vpop.permute.xlu0 %2889
      %2891 = vrot.lane.b32.xlu0 %v2858, 126
      %v2892 = vpop.permute.xlu0 %2891
      %2893 = vrot.lane.b32.xlu0 %v2859, 126
      %v2894 = vpop.permute.xlu0 %2893
      %2895 = vrot.lane.b32.xlu0 %v2860, 126
      %v2896 = vpop.permute.xlu0 %2895
      %2909 = vst.msk [vmem:[#allocation2] sm:$0xff] %vm505, %v2874
      %2910 = vst.msk [vmem:[#allocation2 + $0x8] sm:$0xff] %vm505, %v2876
      %2911 = vst.msk [vmem:[#allocation2 + $0x10] sm:$0x3] %vm508, %v2878
      %2912 = vst.msk [vmem:[#allocation2 + $0x18] sm:$0xff] %vm505, %v2880
      %2913 = vst.msk [vmem:[#allocation2 + $0x20] sm:$0xff] %vm505, %v2882
      %2914 = vst.msk [vmem:[#allocation2 + $0x28] sm:$0x3] %vm508, %v2884
      %2915 = vst.msk [vmem:[#allocation2 + $0x30] sm:$0xff] %vm505, %v2886
      %2916 = vst.msk [vmem:[#allocation2 + $0x38] sm:$0xff] %vm505, %v2888
      %2917 = vst.msk [vmem:[#allocation2 + $0x40] sm:$0x3] %vm508, %v2890
      %2918 = vst.msk [vmem:[#allocation2 + $0x48] sm:$0xff] %vm505, %v2892
      %2919 = vst.msk [vmem:[#allocation2 + $0x50] sm:$0xff] %vm505, %v2894
      %2920 = vst.msk [vmem:[#allocation2 + $0x58] sm:$0x3] %vm508, %v2896
      %v2921 = vld [vmem:[#allocation2] sm:$0xff]
      %v2922 = vld [vmem:[#allocation2 + $0x8] sm:$0xff]
      %v2923 = vld [vmem:[#allocation2 + $0x10] sm:$0x3]
      %v2924 = vld [vmem:[#allocation2 + $0x18] sm:$0xff]
      %v2925 = vld [vmem:[#allocation2 + $0x20] sm:$0xff]
      %v2926 = vld [vmem:[#allocation2 + $0x28] sm:$0x3]
      %v2927 = vld [vmem:[#allocation2 + $0x30] sm:$0xff]
      %v2928 = vld [vmem:[#allocation2 + $0x38] sm:$0xff]
      %v2929 = vld [vmem:[#allocation2 + $0x40] sm:$0x3]
      %v2930 = vld [vmem:[#allocation2 + $0x48] sm:$0xff]
      %v2931 = vld [vmem:[#allocation2 + $0x50] sm:$0xff]
      %v2932 = vld [vmem:[#allocation2 + $0x58] sm:$0x3]
      %2945 = vrot.lane.b32.xlu0 %v2921, 2
      %v2946 = vpop.permute.xlu0 %2945
      %2947 = vrot.lane.b32.xlu0 %v2922, 2
      %v2948 = vpop.permute.xlu0 %2947
      %2949 = vrot.lane.b32.xlu0 %v2923, 2
      %v2950 = vpop.permute.xlu0 %2949
      %2951 = vrot.lane.b32.xlu0 %v2924, 2
      %v2952 = vpop.permute.xlu0 %2951
      %2953 = vrot.lane.b32.xlu0 %v2925, 2
      %v2954 = vpop.permute.xlu0 %2953
      %2955 = vrot.lane.b32.xlu0 %v2926, 2
      %v2956 = vpop.permute.xlu0 %2955
      %2957 = vrot.lane.b32.xlu0 %v2927, 2
      %v2958 = vpop.permute.xlu0 %2957
      %2959 = vrot.lane.b32.xlu0 %v2928, 2
      %v2960 = vpop.permute.xlu0 %2959
      %2961 = vrot.lane.b32.xlu0 %v2929, 2
      %v2962 = vpop.permute.xlu0 %2961
      %2963 = vrot.lane.b32.xlu0 %v2930, 2
      %v2964 = vpop.permute.xlu0 %2963
      %2965 = vrot.lane.b32.xlu0 %v2931, 2
      %v2966 = vpop.permute.xlu0 %2965
      %2967 = vrot.lane.b32.xlu0 %v2932, 2
      %v2968 = vpop.permute.xlu0 %2967
      %2981 = vst.msk [vmem:[#allocation2] sm:$0xff] %vm579, %v2946
      %2982 = vst.msk [vmem:[#allocation2 + $0x8] sm:$0xff] %vm579, %v2948
      %2983 = vst.msk [vmem:[#allocation2 + $0x10] sm:$0x3] %vm582, %v2950
      %2984 = vst.msk [vmem:[#allocation2 + $0x18] sm:$0xff] %vm579, %v2952
      %2985 = vst.msk [vmem:[#allocation2 + $0x20] sm:$0xff] %vm579, %v2954
      %2986 = vst.msk [vmem:[#allocation2 + $0x28] sm:$0x3] %vm582, %v2956
      %2987 = vst.msk [vmem:[#allocation2 + $0x30] sm:$0xff] %vm579, %v2958
      %2988 = vst.msk [vmem:[#allocation2 + $0x38] sm:$0xff] %vm579, %v2960
      %2989 = vst.msk [vmem:[#allocation2 + $0x40] sm:$0x3] %vm582, %v2962
      %2990 = vst.msk [vmem:[#allocation2 + $0x48] sm:$0xff] %vm579, %v2964
      %2991 = vst.msk [vmem:[#allocation2 + $0x50] sm:$0xff] %vm579, %v2966
      %2992 = vst.msk [vmem:[#allocation2 + $0x58] sm:$0x3] %vm582, %v2968
      %v2993 = vld [vmem:[#allocation2] sm:$0xff]
      %v2994 = vld [vmem:[#allocation2 + $0x8] sm:$0xff]
      %v2995 = vld [vmem:[#allocation2 + $0x18] sm:$0xff]
      %v2996 = vld [vmem:[#allocation2 + $0x20] sm:$0xff]
      %v2997 = vld [vmem:[#allocation2 + $0x30] sm:$0xff]
      %v2998 = vld [vmem:[#allocation2 + $0x38] sm:$0xff]
      %v2999 = vld [vmem:[#allocation2 + $0x48] sm:$0xff]
      %v3000 = vld [vmem:[#allocation2 + $0x50] sm:$0xff]
      %v3001 = vrot.slane %v2997, 4
      %v3002 = vsel %vm211, %v3001, %v2993
      %v3003 = vrot.slane %v2993, 4
      %v3004 = vsel %vm211, %v2997, %v3003
      %v3006 = vunpack.c.l.s4 1983009808
      %v3007 = vunpack.c.0.s8 %v3006
      %v3008 = vperm.slane %v3002, %v3007
      %v3010 = vunpack.c.l.s4 1983009808
      %v3011 = vunpack.c.0.s8 %v3010
      %v3012 = vperm.slane %v3004, %v3011
      %v3013 = vrot.slane %v2999, 4
      %v3014 = vsel %vm211, %v3013, %v2995
      %v3015 = vrot.slane %v2995, 4
      %v3016 = vsel %vm211, %v2999, %v3015
      %v3018 = vunpack.c.l.s4 1983009808
      %v3019 = vunpack.c.0.s8 %v3018
      %v3020 = vperm.slane %v3014, %v3019
      %v3022 = vunpack.c.l.s4 1983009808
      %v3023 = vunpack.c.0.s8 %v3022
      %v3024 = vperm.slane %v3016, %v3023
      %v3025 = vrot.slane %v3020, 4
      %v3026 = vsel %vm211, %v3025, %v3008
      %v3027 = vrot.slane %v3008, 4
      %v3028 = vsel %vm211, %v3020, %v3027
      %v3030 = vunpack.c.l.s4 1934713408
      %v3031 = vunpack.c.0.s8 %v3030
      %v3032 = vperm.slane %v3026, %v3031
      %v3034 = vunpack.c.l.s4 1934713408
      %v3035 = vunpack.c.0.s8 %v3034
      %v3036 = vperm.slane %v3028, %v3035
      %v3037 = vrot.slane %v3024, 4
      %v3038 = vsel %vm211, %v3037, %v3012
      %v3039 = vrot.slane %v3012, 4
      %v3040 = vsel %vm211, %v3024, %v3039
      %v3042 = vunpack.c.l.s4 1934713408
      %v3043 = vunpack.c.0.s8 %v3042
      %v3044 = vperm.slane %v3038, %v3043
      %v3046 = vunpack.c.l.s4 1934713408
      %v3047 = vunpack.c.0.s8 %v3046
      %v3048 = vperm.slane %v3040, %v3047
      %v3049 = vrot.slane %v3032, 4
      %v3050 = vsel %vm211, 0.0, %v3049
      %v3051 = vrot.slane %v3036, 4
      %v3052 = vsel %vm211, 0.0, %v3051
      %v3053 = vrot.slane %v3044, 4
      %v3054 = vsel %vm211, 0.0, %v3053
      %v3055 = vrot.slane %v3048, 4
      %v3056 = vsel %vm211, 0.0, %v3055
      %v3057 = vrot.slane %v2998, 4
      %v3058 = vsel %vm211, %v3057, %v2994
      %v3059 = vrot.slane %v2994, 4
      %v3060 = vsel %vm211, %v2998, %v3059
      %v3062 = vunpack.c.l.s4 1983009808
      %v3063 = vunpack.c.0.s8 %v3062
      %v3064 = vperm.slane %v3058, %v3063
      %v3066 = vunpack.c.l.s4 1983009808
      %v3067 = vunpack.c.0.s8 %v3066
      %v3068 = vperm.slane %v3060, %v3067
      %v3069 = vrot.slane %v3000, 4
      %v3070 = vsel %vm211, %v3069, %v2996
      %v3071 = vrot.slane %v2996, 4
      %v3072 = vsel %vm211, %v3000, %v3071
      %v3074 = vunpack.c.l.s4 1983009808
      %v3075 = vunpack.c.0.s8 %v3074
      %v3076 = vperm.slane %v3070, %v3075
      %v3078 = vunpack.c.l.s4 1983009808
      %v3079 = vunpack.c.0.s8 %v3078
      %v3080 = vperm.slane %v3072, %v3079
      %v3081 = vrot.slane %v3076, 4
      %v3082 = vsel %vm211, %v3081, %v3064
      %v3083 = vrot.slane %v3064, 4
      %v3084 = vsel %vm211, %v3076, %v3083
      %v3086 = vunpack.c.l.s4 1934713408
      %v3087 = vunpack.c.0.s8 %v3086
      %v3088 = vperm.slane %v3082, %v3087
      %v3090 = vunpack.c.l.s4 1934713408
      %v3091 = vunpack.c.0.s8 %v3090
      %v3092 = vperm.slane %v3084, %v3091
      %v3093 = vrot.slane %v3080, 4
      %v3094 = vsel %vm211, %v3093, %v3068
      %v3095 = vrot.slane %v3068, 4
      %v3096 = vsel %vm211, %v3080, %v3095
      %v3098 = vunpack.c.l.s4 1934713408
      %v3099 = vunpack.c.0.s8 %v3098
      %v3100 = vperm.slane %v3094, %v3099
      %v3102 = vunpack.c.l.s4 1934713408
      %v3103 = vunpack.c.0.s8 %v3102
      %v3104 = vperm.slane %v3096, %v3103
      %v3105 = vrot.slane %v3088, 4
      %v3106 = vsel %vm211, 0.0, %v3105
      %v3107 = vrot.slane %v3092, 4
      %v3108 = vsel %vm211, 0.0, %v3107
      %v3109 = vrot.slane %v3100, 4
      %v3110 = vsel %vm211, 0.0, %v3109
      %v3111 = vrot.slane %v3104, 4
      %v3112 = vsel %vm211, 0.0, %v3111
      %3114 = vrot.lane.b32.xlu0 %v3050, 16
      %v3115 = vpop.permute.xlu0 %3114
      %3118 = vrot.lane.b32.xlu0 %v3036, 32
      %v3119 = vpop.permute.xlu0 %3118
      %3122 = vrot.lane.b32.xlu0 %v3052, 48
      %v3123 = vpop.permute.xlu0 %3122
      %3126 = vrot.lane.b32.xlu0 %v3044, 64
      %v3127 = vpop.permute.xlu0 %3126
      %3130 = vrot.lane.b32.xlu0 %v3054, 80
      %v3131 = vpop.permute.xlu0 %3130
      %3134 = vrot.lane.b32.xlu0 %v3048, 96
      %v3135 = vpop.permute.xlu0 %3134
      %3138 = vrot.lane.b32.xlu0 %v3056, 112
      %v3139 = vpop.permute.xlu0 %3138
      %3142 = vrot.lane.b32.xlu0 %v3106, 16
      %v3143 = vpop.permute.xlu0 %3142
      %3146 = vrot.lane.b32.xlu0 %v3092, 32
      %v3147 = vpop.permute.xlu0 %3146
      %3150 = vrot.lane.b32.xlu0 %v3108, 48
      %v3151 = vpop.permute.xlu0 %3150
      %3154 = vrot.lane.b32.xlu0 %v3100, 64
      %v3155 = vpop.permute.xlu0 %3154
      %3158 = vrot.lane.b32.xlu0 %v3110, 80
      %v3159 = vpop.permute.xlu0 %3158
      %3162 = vrot.lane.b32.xlu0 %v3104, 96
      %v3163 = vpop.permute.xlu0 %3162
      %3166 = vrot.lane.b32.xlu0 %v3112, 112
      %v3167 = vpop.permute.xlu0 %3166
      %v3169 = vsel %vm769, %v3032, %v3115
      %v3170 = vsel %vm771, %v3169, %v3119
      %v3171 = vsel %vm773, %v3170, %v3123
      %v3172 = vsel %vm775, %v3171, %v3127
      %v3173 = vsel %vm777, %v3172, %v3131
      %v3174 = vsel %vm779, %v3173, %v3135
      %v3175 = vsel %vm781, %v3174, %v3139
      %v3176 = vsel %vm769, %v3088, %v3143
      %v3177 = vsel %vm771, %v3176, %v3147
      %v3178 = vsel %vm773, %v3177, %v3151
      %v3179 = vsel %vm775, %v3178, %v3155
      %v3180 = vsel %vm777, %v3179, %v3159
      %v3181 = vsel %vm779, %v3180, %v3163
      %v3182 = vsel %vm781, %v3181, %v3167
      %3183 = vst [vmem:[#allocation3] sm:$0xf] %v3175
      %3184 = vst [vmem:[#allocation3 + $0x8] sm:$0xf] %v3182
      %v3185 = vld [vmem:[#allocation2] sm:$0xff]
      %v3186 = vld [vmem:[#allocation2 + $0x8] sm:$0xff]
      %v3187 = vld [vmem:[#allocation2 + $0x18] sm:$0xff]
      %v3188 = vld [vmem:[#allocation2 + $0x20] sm:$0xff]
      %v3189 = vld [vmem:[#allocation2 + $0x30] sm:$0xff]
      %v3190 = vld [vmem:[#allocation2 + $0x38] sm:$0xff]
      %v3191 = vld [vmem:[#allocation2 + $0x48] sm:$0xff]
      %v3192 = vld [vmem:[#allocation2 + $0x50] sm:$0xff]
      %3201 = vrot.lane.b32.xlu0 %v3185, 127
      %v3202 = vpop.permute.xlu0 %3201
      %3203 = vrot.lane.b32.xlu0 %v3186, 127
      %v3204 = vpop.permute.xlu0 %3203
      %3205 = vrot.lane.b32.xlu0 %v3187, 127
      %v3206 = vpop.permute.xlu0 %3205
      %3207 = vrot.lane.b32.xlu0 %v3188, 127
      %v3208 = vpop.permute.xlu0 %3207
      %3209 = vrot.lane.b32.xlu0 %v3189, 127
      %v3210 = vpop.permute.xlu0 %3209
      %3211 = vrot.lane.b32.xlu0 %v3190, 127
      %v3212 = vpop.permute.xlu0 %3211
      %3213 = vrot.lane.b32.xlu0 %v3191, 127
      %v3214 = vpop.permute.xlu0 %3213
      %3215 = vrot.lane.b32.xlu0 %v3192, 127
      %v3216 = vpop.permute.xlu0 %3215
      %v3225 = vrot.slane %v3210, 4
      %v3226 = vsel %vm211, %v3225, %v3202
      %v3227 = vrot.slane %v3202, 4
      %v3228 = vsel %vm211, %v3210, %v3227
      %v3230 = vunpack.c.l.s4 1983009808
      %v3231 = vunpack.c.0.s8 %v3230
      %v3232 = vperm.slane %v3226, %v3231
      %v3234 = vunpack.c.l.s4 1983009808
      %v3235 = vunpack.c.0.s8 %v3234
      %v3236 = vperm.slane %v3228, %v3235
      %v3237 = vrot.slane %v3214, 4
      %v3238 = vsel %vm211, %v3237, %v3206
      %v3239 = vrot.slane %v3206, 4
      %v3240 = vsel %vm211, %v3214, %v3239
      %v3242 = vunpack.c.l.s4 1983009808
      %v3243 = vunpack.c.0.s8 %v3242
      %v3244 = vperm.slane %v3238, %v3243
      %v3246 = vunpack.c.l.s4 1983009808
      %v3247 = vunpack.c.0.s8 %v3246
      %v3248 = vperm.slane %v3240, %v3247
      %v3249 = vrot.slane %v3244, 4
      %v3250 = vsel %vm211, %v3249, %v3232
      %v3251 = vrot.slane %v3232, 4
      %v3252 = vsel %vm211, %v3244, %v3251
      %v3254 = vunpack.c.l.s4 1934713408
      %v3255 = vunpack.c.0.s8 %v3254
      %v3256 = vperm.slane %v3250, %v3255
      %v3258 = vunpack.c.l.s4 1934713408
      %v3259 = vunpack.c.0.s8 %v3258
      %v3260 = vperm.slane %v3252, %v3259
      %v3261 = vrot.slane %v3248, 4
      %v3262 = vsel %vm211, %v3261, %v3236
      %v3263 = vrot.slane %v3236, 4
      %v3264 = vsel %vm211, %v3248, %v3263
      %v3266 = vunpack.c.l.s4 1934713408
      %v3267 = vunpack.c.0.s8 %v3266
      %v3268 = vperm.slane %v3262, %v3267
      %v3270 = vunpack.c.l.s4 1934713408
      %v3271 = vunpack.c.0.s8 %v3270
      %v3272 = vperm.slane %v3264, %v3271
      %v3273 = vrot.slane %v3256, 4
      %v3274 = vsel %vm211, 0.0, %v3273
      %v3275 = vrot.slane %v3260, 4
      %v3276 = vsel %vm211, 0.0, %v3275
      %v3277 = vrot.slane %v3268, 4
      %v3278 = vsel %vm211, 0.0, %v3277
      %v3279 = vrot.slane %v3272, 4
      %v3280 = vsel %vm211, 0.0, %v3279
      %v3281 = vrot.slane %v3212, 4
      %v3282 = vsel %vm211, %v3281, %v3204
      %v3283 = vrot.slane %v3204, 4
      %v3284 = vsel %vm211, %v3212, %v3283
      %v3286 = vunpack.c.l.s4 1983009808
      %v3287 = vunpack.c.0.s8 %v3286
      %v3288 = vperm.slane %v3282, %v3287
      %v3290 = vunpack.c.l.s4 1983009808
      %v3291 = vunpack.c.0.s8 %v3290
      %v3292 = vperm.slane %v3284, %v3291
      %v3293 = vrot.slane %v3216, 4
      %v3294 = vsel %vm211, %v3293, %v3208
      %v3295 = vrot.slane %v3208, 4
      %v3296 = vsel %vm211, %v3216, %v3295
      %v3298 = vunpack.c.l.s4 1983009808
      %v3299 = vunpack.c.0.s8 %v3298
      %v3300 = vperm.slane %v3294, %v3299
      %v3302 = vunpack.c.l.s4 1983009808
      %v3303 = vunpack.c.0.s8 %v3302
      %v3304 = vperm.slane %v3296, %v3303
      %v3305 = vrot.slane %v3300, 4
      %v3306 = vsel %vm211, %v3305, %v3288
      %v3307 = vrot.slane %v3288, 4
      %v3308 = vsel %vm211, %v3300, %v3307
      %v3310 = vunpack.c.l.s4 1934713408
      %v3311 = vunpack.c.0.s8 %v3310
      %v3312 = vperm.slane %v3306, %v3311
      %v3314 = vunpack.c.l.s4 1934713408
      %v3315 = vunpack.c.0.s8 %v3314
      %v3316 = vperm.slane %v3308, %v3315
      %v3317 = vrot.slane %v3304, 4
      %v3318 = vsel %vm211, %v3317, %v3292
      %v3319 = vrot.slane %v3292, 4
      %v3320 = vsel %vm211, %v3304, %v3319
      %v3322 = vunpack.c.l.s4 1934713408
      %v3323 = vunpack.c.0.s8 %v3322
      %v3324 = vperm.slane %v3318, %v3323
      %v3326 = vunpack.c.l.s4 1934713408
      %v3327 = vunpack.c.0.s8 %v3326
      %v3328 = vperm.slane %v3320, %v3327
      %v3329 = vrot.slane %v3312, 4
      %v3330 = vsel %vm211, 0.0, %v3329
      %v3331 = vrot.slane %v3316, 4
      %v3332 = vsel %vm211, 0.0, %v3331
      %v3333 = vrot.slane %v3324, 4
      %v3334 = vsel %vm211, 0.0, %v3333
      %v3335 = vrot.slane %v3328, 4
      %v3336 = vsel %vm211, 0.0, %v3335
      %3338 = vrot.lane.b32.xlu0 %v3274, 16
      %v3339 = vpop.permute.xlu0 %3338
      %3342 = vrot.lane.b32.xlu0 %v3260, 32
      %v3343 = vpop.permute.xlu0 %3342
      %3346 = vrot.lane.b32.xlu0 %v3276, 48
      %v3347 = vpop.permute.xlu0 %3346
      %3350 = vrot.lane.b32.xlu0 %v3268, 64
      %v3351 = vpop.permute.xlu0 %3350
      %3354 = vrot.lane.b32.xlu0 %v3278, 80
      %v3355 = vpop.permute.xlu0 %3354
      %3358 = vrot.lane.b32.xlu0 %v3272, 96
      %v3359 = vpop.permute.xlu0 %3358
      %3362 = vrot.lane.b32.xlu0 %v3280, 112
      %v3363 = vpop.permute.xlu0 %3362
      %3366 = vrot.lane.b32.xlu0 %v3330, 16
      %v3367 = vpop.permute.xlu0 %3366
      %3370 = vrot.lane.b32.xlu0 %v3316, 32
      %v3371 = vpop.permute.xlu0 %3370
      %3374 = vrot.lane.b32.xlu0 %v3332, 48
      %v3375 = vpop.permute.xlu0 %3374
      %3378 = vrot.lane.b32.xlu0 %v3324, 64
      %v3379 = vpop.permute.xlu0 %3378
      %3382 = vrot.lane.b32.xlu0 %v3334, 80
      %v3383 = vpop.permute.xlu0 %3382
      %3386 = vrot.lane.b32.xlu0 %v3328, 96
      %v3387 = vpop.permute.xlu0 %3386
      %3390 = vrot.lane.b32.xlu0 %v3336, 112
      %v3391 = vpop.permute.xlu0 %3390
      %v3393 = vsel %vm769, %v3256, %v3339
      %v3394 = vsel %vm771, %v3393, %v3343
      %v3395 = vsel %vm773, %v3394, %v3347
      %v3396 = vsel %vm775, %v3395, %v3351
      %v3397 = vsel %vm777, %v3396, %v3355
      %v3398 = vsel %vm779, %v3397, %v3359
      %v3399 = vsel %vm781, %v3398, %v3363
      %v3400 = vsel %vm769, %v3312, %v3367
      %v3401 = vsel %vm771, %v3400, %v3371
      %v3402 = vsel %vm773, %v3401, %v3375
      %v3403 = vsel %vm775, %v3402, %v3379
      %v3404 = vsel %vm777, %v3403, %v3383
      %v3405 = vsel %vm779, %v3404, %v3387
      %v3406 = vsel %vm781, %v3405, %v3391
      %v3409 = vrot.slane %v3399, 4
      %v3410 = vrot.slane %v3406, 4
      %3413 = vst [vmem:[#allocation3] sm:$0xf0] %v3409
      %3414 = vst [vmem:[#allocation3 + $0x8] sm:$0xf0] %v3410
      %v3415 = vld [vmem:[#allocation2] sm:$0xff]
      %v3416 = vld [vmem:[#allocation2 + $0x8] sm:$0xff]
      %v3417 = vld [vmem:[#allocation2 + $0x18] sm:$0xff]
      %v3418 = vld [vmem:[#allocation2 + $0x20] sm:$0xff]
      %v3419 = vld [vmem:[#allocation2 + $0x30] sm:$0xff]
      %v3420 = vld [vmem:[#allocation2 + $0x38] sm:$0xff]
      %v3421 = vld [vmem:[#allocation2 + $0x48] sm:$0xff]
      %v3422 = vld [vmem:[#allocation2 + $0x50] sm:$0xff]
      %3431 = vrot.lane.b32.xlu0 %v3415, 126
      %v3432 = vpop.permute.xlu0 %3431
      %3433 = vrot.lane.b32.xlu0 %v3416, 126
      %v3434 = vpop.permute.xlu0 %3433
      %3435 = vrot.lane.b32.xlu0 %v3417, 126
      %v3436 = vpop.permute.xlu0 %3435
      %3437 = vrot.lane.b32.xlu0 %v3418, 126
      %v3438 = vpop.permute.xlu0 %3437
      %3439 = vrot.lane.b32.xlu0 %v3419, 126
      %v3440 = vpop.permute.xlu0 %3439
      %3441 = vrot.lane.b32.xlu0 %v3420, 126
      %v3442 = vpop.permute.xlu0 %3441
      %3443 = vrot.lane.b32.xlu0 %v3421, 126
      %v3444 = vpop.permute.xlu0 %3443
      %3445 = vrot.lane.b32.xlu0 %v3422, 126
      %v3446 = vpop.permute.xlu0 %3445
      %v3455 = vrot.slane %v3440, 4
      %v3456 = vsel %vm211, %v3455, %v3432
      %v3457 = vrot.slane %v3432, 4
      %v3458 = vsel %vm211, %v3440, %v3457
      %v3460 = vunpack.c.l.s4 1983009808
      %v3461 = vunpack.c.0.s8 %v3460
      %v3462 = vperm.slane %v3456, %v3461
      %v3464 = vunpack.c.l.s4 1983009808
      %v3465 = vunpack.c.0.s8 %v3464
      %v3466 = vperm.slane %v3458, %v3465
      %v3467 = vrot.slane %v3444, 4
      %v3468 = vsel %vm211, %v3467, %v3436
      %v3469 = vrot.slane %v3436, 4
      %v3470 = vsel %vm211, %v3444, %v3469
      %v3472 = vunpack.c.l.s4 1983009808
      %v3473 = vunpack.c.0.s8 %v3472
      %v3474 = vperm.slane %v3468, %v3473
      %v3476 = vunpack.c.l.s4 1983009808
      %v3477 = vunpack.c.0.s8 %v3476
      %v3478 = vperm.slane %v3470, %v3477
      %v3479 = vrot.slane %v3474, 4
      %v3480 = vsel %vm211, %v3479, %v3462
      %v3481 = vrot.slane %v3462, 4
      %v3482 = vsel %vm211, %v3474, %v3481
      %v3484 = vunpack.c.l.s4 1934713408
      %v3485 = vunpack.c.0.s8 %v3484
      %v3486 = vperm.slane %v3480, %v3485
      %v3488 = vunpack.c.l.s4 1934713408
      %v3489 = vunpack.c.0.s8 %v3488
      %v3490 = vperm.slane %v3482, %v3489
      %v3491 = vrot.slane %v3478, 4
      %v3492 = vsel %vm211, %v3491, %v3466
      %v3493 = vrot.slane %v3466, 4
      %v3494 = vsel %vm211, %v3478, %v3493
      %v3496 = vunpack.c.l.s4 1934713408
      %v3497 = vunpack.c.0.s8 %v3496
      %v3498 = vperm.slane %v3492, %v3497
      %v3500 = vunpack.c.l.s4 1934713408
      %v3501 = vunpack.c.0.s8 %v3500
      %v3502 = vperm.slane %v3494, %v3501
      %v3503 = vrot.slane %v3486, 4
      %v3504 = vsel %vm211, 0.0, %v3503
      %v3505 = vrot.slane %v3490, 4
      %v3506 = vsel %vm211, 0.0, %v3505
      %v3507 = vrot.slane %v3498, 4
      %v3508 = vsel %vm211, 0.0, %v3507
      %v3509 = vrot.slane %v3502, 4
      %v3510 = vsel %vm211, 0.0, %v3509
      %v3511 = vrot.slane %v3442, 4
      %v3512 = vsel %vm211, %v3511, %v3434
      %v3513 = vrot.slane %v3434, 4
      %v3514 = vsel %vm211, %v3442, %v3513
      %v3516 = vunpack.c.l.s4 1983009808
      %v3517 = vunpack.c.0.s8 %v3516
      %v3518 = vperm.slane %v3512, %v3517
      %v3520 = vunpack.c.l.s4 1983009808
      %v3521 = vunpack.c.0.s8 %v3520
      %v3522 = vperm.slane %v3514, %v3521
      %v3523 = vrot.slane %v3446, 4
      %v3524 = vsel %vm211, %v3523, %v3438
      %v3525 = vrot.slane %v3438, 4
      %v3526 = vsel %vm211, %v3446, %v3525
      %v3528 = vunpack.c.l.s4 1983009808
      %v3529 = vunpack.c.0.s8 %v3528
      %v3530 = vperm.slane %v3524, %v3529
      %v3532 = vunpack.c.l.s4 1983009808
      %v3533 = vunpack.c.0.s8 %v3532
      %v3534 = vperm.slane %v3526, %v3533
      %v3535 = vrot.slane %v3530, 4
      %v3536 = vsel %vm211, %v3535, %v3518
      %v3537 = vrot.slane %v3518, 4
      %v3538 = vsel %vm211, %v3530, %v3537
      %v3540 = vunpack.c.l.s4 1934713408
      %v3541 = vunpack.c.0.s8 %v3540
      %v3542 = vperm.slane %v3536, %v3541
      %v3544 = vunpack.c.l.s4 1934713408
      %v3545 = vunpack.c.0.s8 %v3544
      %v3546 = vperm.slane %v3538, %v3545
      %v3547 = vrot.slane %v3534, 4
      %v3548 = vsel %vm211, %v3547, %v3522
      %v3549 = vrot.slane %v3522, 4
      %v3550 = vsel %vm211, %v3534, %v3549
      %v3552 = vunpack.c.l.s4 1934713408
      %v3553 = vunpack.c.0.s8 %v3552
      %v3554 = vperm.slane %v3548, %v3553
      %v3556 = vunpack.c.l.s4 1934713408
      %v3557 = vunpack.c.0.s8 %v3556
      %v3558 = vperm.slane %v3550, %v3557
      %v3559 = vrot.slane %v3542, 4
      %v3560 = vsel %vm211, 0.0, %v3559
      %v3561 = vrot.slane %v3546, 4
      %v3562 = vsel %vm211, 0.0, %v3561
      %v3563 = vrot.slane %v3554, 4
      %v3564 = vsel %vm211, 0.0, %v3563
      %v3565 = vrot.slane %v3558, 4
      %v3566 = vsel %vm211, 0.0, %v3565
      %3568 = vrot.lane.b32.xlu0 %v3504, 16
      %v3569 = vpop.permute.xlu0 %3568
      %3572 = vrot.lane.b32.xlu0 %v3490, 32
      %v3573 = vpop.permute.xlu0 %3572
      %3576 = vrot.lane.b32.xlu0 %v3506, 48
      %v3577 = vpop.permute.xlu0 %3576
      %3580 = vrot.lane.b32.xlu0 %v3498, 64
      %v3581 = vpop.permute.xlu0 %3580
      %3584 = vrot.lane.b32.xlu0 %v3508, 80
      %v3585 = vpop.permute.xlu0 %3584
      %3588 = vrot.lane.b32.xlu0 %v3502, 96
      %v3589 = vpop.permute.xlu0 %3588
      %3592 = vrot.lane.b32.xlu0 %v3510, 112
      %v3593 = vpop.permute.xlu0 %3592
      %3596 = vrot.lane.b32.xlu0 %v3560, 16
      %v3597 = vpop.permute.xlu0 %3596
      %3600 = vrot.lane.b32.xlu0 %v3546, 32
      %v3601 = vpop.permute.xlu0 %3600
      %3604 = vrot.lane.b32.xlu0 %v3562, 48
      %v3605 = vpop.permute.xlu0 %3604
      %3608 = vrot.lane.b32.xlu0 %v3554, 64
      %v3609 = vpop.permute.xlu0 %3608
      %3612 = vrot.lane.b32.xlu0 %v3564, 80
      %v3613 = vpop.permute.xlu0 %3612
      %3616 = vrot.lane.b32.xlu0 %v3558, 96
      %v3617 = vpop.permute.xlu0 %3616
      %3620 = vrot.lane.b32.xlu0 %v3566, 112
      %v3621 = vpop.permute.xlu0 %3620
      %v3623 = vsel %vm769, %v3486, %v3569
      %v3624 = vsel %vm771, %v3623, %v3573
      %v3625 = vsel %vm773, %v3624, %v3577
      %v3626 = vsel %vm775, %v3625, %v3581
      %v3627 = vsel %vm777, %v3626, %v3585
      %v3628 = vsel %vm779, %v3627, %v3589
      %v3629 = vsel %vm781, %v3628, %v3593
      %v3630 = vsel %vm769, %v3542, %v3597
      %v3631 = vsel %vm771, %v3630, %v3601
      %v3632 = vsel %vm773, %v3631, %v3605
      %v3633 = vsel %vm775, %v3632, %v3609
      %v3634 = vsel %vm777, %v3633, %v3613
      %v3635 = vsel %vm779, %v3634, %v3617
      %v3636 = vsel %vm781, %v3635, %v3621
      %3637 = vst [vmem:[#allocation3 + $0x10] sm:$0xf] %v3629
      %3638 = vst [vmem:[#allocation3 + $0x18] sm:$0xf] %v3636
      %v3639 = vld [vmem:[#allocation2 + $0x1] sm:$0xff]
      %v3640 = vld [vmem:[#allocation2 + $0x9] sm:$0xff]
      %v3641 = vld [vmem:[#allocation2 + $0x19] sm:$0xff]
      %v3642 = vld [vmem:[#allocation2 + $0x21] sm:$0xff]
      %v3643 = vld [vmem:[#allocation2 + $0x31] sm:$0xff]
      %v3644 = vld [vmem:[#allocation2 + $0x39] sm:$0xff]
      %v3645 = vld [vmem:[#allocation2 + $0x49] sm:$0xff]
      %v3646 = vld [vmem:[#allocation2 + $0x51] sm:$0xff]
      %v3647 = vrot.slane %v3643, 4
      %v3648 = vsel %vm211, %v3647, %v3639
      %v3649 = vrot.slane %v3639, 4
      %v3650 = vsel %vm211, %v3643, %v3649
      %v3652 = vunpack.c.l.s4 1983009808
      %v3653 = vunpack.c.0.s8 %v3652
      %v3654 = vperm.slane %v3648, %v3653
      %v3656 = vunpack.c.l.s4 1983009808
      %v3657 = vunpack.c.0.s8 %v3656
      %v3658 = vperm.slane %v3650, %v3657
      %v3659 = vrot.slane %v3645, 4
      %v3660 = vsel %vm211, %v3659, %v3641
      %v3661 = vrot.slane %v3641, 4
      %v3662 = vsel %vm211, %v3645, %v3661
      %v3664 = vunpack.c.l.s4 1983009808
      %v3665 = vunpack.c.0.s8 %v3664
      %v3666 = vperm.slane %v3660, %v3665
      %v3668 = vunpack.c.l.s4 1983009808
      %v3669 = vunpack.c.0.s8 %v3668
      %v3670 = vperm.slane %v3662, %v3669
      %v3671 = vrot.slane %v3666, 4
      %v3672 = vsel %vm211, %v3671, %v3654
      %v3673 = vrot.slane %v3654, 4
      %v3674 = vsel %vm211, %v3666, %v3673
      %v3676 = vunpack.c.l.s4 1934713408
      %v3677 = vunpack.c.0.s8 %v3676
      %v3678 = vperm.slane %v3672, %v3677
      %v3680 = vunpack.c.l.s4 1934713408
      %v3681 = vunpack.c.0.s8 %v3680
      %v3682 = vperm.slane %v3674, %v3681
      %v3683 = vrot.slane %v3670, 4
      %v3684 = vsel %vm211, %v3683, %v3658
      %v3685 = vrot.slane %v3658, 4
      %v3686 = vsel %vm211, %v3670, %v3685
      %v3688 = vunpack.c.l.s4 1934713408
      %v3689 = vunpack.c.0.s8 %v3688
      %v3690 = vperm.slane %v3684, %v3689
      %v3692 = vunpack.c.l.s4 1934713408
      %v3693 = vunpack.c.0.s8 %v3692
      %v3694 = vperm.slane %v3686, %v3693
      %v3695 = vrot.slane %v3678, 4
      %v3696 = vsel %vm211, 0.0, %v3695
      %v3697 = vrot.slane %v3682, 4
      %v3698 = vsel %vm211, 0.0, %v3697
      %v3699 = vrot.slane %v3690, 4
      %v3700 = vsel %vm211, 0.0, %v3699
      %v3701 = vrot.slane %v3694, 4
      %v3702 = vsel %vm211, 0.0, %v3701
      %v3703 = vrot.slane %v3644, 4
      %v3704 = vsel %vm211, %v3703, %v3640
      %v3705 = vrot.slane %v3640, 4
      %v3706 = vsel %vm211, %v3644, %v3705
      %v3708 = vunpack.c.l.s4 1983009808
      %v3709 = vunpack.c.0.s8 %v3708
      %v3710 = vperm.slane %v3704, %v3709
      %v3712 = vunpack.c.l.s4 1983009808
      %v3713 = vunpack.c.0.s8 %v3712
      %v3714 = vperm.slane %v3706, %v3713
      %v3715 = vrot.slane %v3646, 4
      %v3716 = vsel %vm211, %v3715, %v3642
      %v3717 = vrot.slane %v3642, 4
      %v3718 = vsel %vm211, %v3646, %v3717
      %v3720 = vunpack.c.l.s4 1983009808
      %v3721 = vunpack.c.0.s8 %v3720
      %v3722 = vperm.slane %v3716, %v3721
      %v3724 = vunpack.c.l.s4 1983009808
      %v3725 = vunpack.c.0.s8 %v3724
      %v3726 = vperm.slane %v3718, %v3725
      %v3727 = vrot.slane %v3722, 4
      %v3728 = vsel %vm211, %v3727, %v3710
      %v3729 = vrot.slane %v3710, 4
      %v3730 = vsel %vm211, %v3722, %v3729
      %v3732 = vunpack.c.l.s4 1934713408
      %v3733 = vunpack.c.0.s8 %v3732
      %v3734 = vperm.slane %v3728, %v3733
      %v3736 = vunpack.c.l.s4 1934713408
      %v3737 = vunpack.c.0.s8 %v3736
      %v3738 = vperm.slane %v3730, %v3737
      %v3739 = vrot.slane %v3726, 4
      %v3740 = vsel %vm211, %v3739, %v3714
      %v3741 = vrot.slane %v3714, 4
      %v3742 = vsel %vm211, %v3726, %v3741
      %v3744 = vunpack.c.l.s4 1934713408
      %v3745 = vunpack.c.0.s8 %v3744
      %v3746 = vperm.slane %v3740, %v3745
      %v3748 = vunpack.c.l.s4 1934713408
      %v3749 = vunpack.c.0.s8 %v3748
      %v3750 = vperm.slane %v3742, %v3749
      %v3751 = vrot.slane %v3734, 4
      %v3752 = vsel %vm211, 0.0, %v3751
      %v3753 = vrot.slane %v3738, 4
      %v3754 = vsel %vm211, 0.0, %v3753
      %v3755 = vrot.slane %v3746, 4
      %v3756 = vsel %vm211, 0.0, %v3755
      %v3757 = vrot.slane %v3750, 4
      %v3758 = vsel %vm211, 0.0, %v3757
      %3760 = vrot.lane.b32.xlu0 %v3696, 16
      %v3761 = vpop.permute.xlu0 %3760
      %3764 = vrot.lane.b32.xlu0 %v3682, 32
      %v3765 = vpop.permute.xlu0 %3764
      %3768 = vrot.lane.b32.xlu0 %v3698, 48
      %v3769 = vpop.permute.xlu0 %3768
      %3772 = vrot.lane.b32.xlu0 %v3690, 64
      %v3773 = vpop.permute.xlu0 %3772
      %3776 = vrot.lane.b32.xlu0 %v3700, 80
      %v3777 = vpop.permute.xlu0 %3776
      %3780 = vrot.lane.b32.xlu0 %v3694, 96
      %v3781 = vpop.permute.xlu0 %3780
      %3784 = vrot.lane.b32.xlu0 %v3702, 112
      %v3785 = vpop.permute.xlu0 %3784
      %3788 = vrot.lane.b32.xlu0 %v3752, 16
      %v3789 = vpop.permute.xlu0 %3788
      %3792 = vrot.lane.b32.xlu0 %v3738, 32
      %v3793 = vpop.permute.xlu0 %3792
      %3796 = vrot.lane.b32.xlu0 %v3754, 48
      %v3797 = vpop.permute.xlu0 %3796
      %3800 = vrot.lane.b32.xlu0 %v3746, 64
      %v3801 = vpop.permute.xlu0 %3800
      %3804 = vrot.lane.b32.xlu0 %v3756, 80
      %v3805 = vpop.permute.xlu0 %3804
      %3808 = vrot.lane.b32.xlu0 %v3750, 96
      %v3809 = vpop.permute.xlu0 %3808
      %3812 = vrot.lane.b32.xlu0 %v3758, 112
      %v3813 = vpop.permute.xlu0 %3812
      %v3815 = vsel %vm769, %v3678, %v3761
      %v3816 = vsel %vm771, %v3815, %v3765
      %v3817 = vsel %vm773, %v3816, %v3769
      %v3818 = vsel %vm775, %v3817, %v3773
      %v3819 = vsel %vm777, %v3818, %v3777
      %v3820 = vsel %vm779, %v3819, %v3781
      %v3821 = vsel %vm781, %v3820, %v3785
      %v3822 = vsel %vm769, %v3734, %v3789
      %v3823 = vsel %vm771, %v3822, %v3793
      %v3824 = vsel %vm773, %v3823, %v3797
      %v3825 = vsel %vm775, %v3824, %v3801
      %v3826 = vsel %vm777, %v3825, %v3805
      %v3827 = vsel %vm779, %v3826, %v3809
      %v3828 = vsel %vm781, %v3827, %v3813
      %v3831 = vrot.slane %v3821, 4
      %v3832 = vrot.slane %v3828, 4
      %3835 = vst [vmem:[#allocation3 + $0x10] sm:$0xf0] %v3831
      %3836 = vst [vmem:[#allocation3 + $0x18] sm:$0xf0] %v3832
      %v3837 = vld [vmem:[#allocation2 + $0x1] sm:$0xff]
      %v3838 = vld [vmem:[#allocation2 + $0x9] sm:$0xff]
      %v3839 = vld [vmem:[#allocation2 + $0x19] sm:$0xff]
      %v3840 = vld [vmem:[#allocation2 + $0x21] sm:$0xff]
      %v3841 = vld [vmem:[#allocation2 + $0x31] sm:$0xff]
      %v3842 = vld [vmem:[#allocation2 + $0x39] sm:$0xff]
      %v3843 = vld [vmem:[#allocation2 + $0x49] sm:$0xff]
      %v3844 = vld [vmem:[#allocation2 + $0x51] sm:$0xff]
      %3853 = vrot.lane.b32.xlu0 %v3837, 127
      %v3854 = vpop.permute.xlu0 %3853
      %3855 = vrot.lane.b32.xlu0 %v3838, 127
      %v3856 = vpop.permute.xlu0 %3855
      %3857 = vrot.lane.b32.xlu0 %v3839, 127
      %v3858 = vpop.permute.xlu0 %3857
      %3859 = vrot.lane.b32.xlu0 %v3840, 127
      %v3860 = vpop.permute.xlu0 %3859
      %3861 = vrot.lane.b32.xlu0 %v3841, 127
      %v3862 = vpop.permute.xlu0 %3861
      %3863 = vrot.lane.b32.xlu0 %v3842, 127
      %v3864 = vpop.permute.xlu0 %3863
      %3865 = vrot.lane.b32.xlu0 %v3843, 127
      %v3866 = vpop.permute.xlu0 %3865
      %3867 = vrot.lane.b32.xlu0 %v3844, 127
      %v3868 = vpop.permute.xlu0 %3867
      %v3877 = vrot.slane %v3862, 4
      %v3878 = vsel %vm211, %v3877, %v3854
      %v3879 = vrot.slane %v3854, 4
      %v3880 = vsel %vm211, %v3862, %v3879
      %v3882 = vunpack.c.l.s4 1983009808
      %v3883 = vunpack.c.0.s8 %v3882
      %v3884 = vperm.slane %v3878, %v3883
      %v3886 = vunpack.c.l.s4 1983009808
      %v3887 = vunpack.c.0.s8 %v3886
      %v3888 = vperm.slane %v3880, %v3887
      %v3889 = vrot.slane %v3866, 4
      %v3890 = vsel %vm211, %v3889, %v3858
      %v3891 = vrot.slane %v3858, 4
      %v3892 = vsel %vm211, %v3866, %v3891
      %v3894 = vunpack.c.l.s4 1983009808
      %v3895 = vunpack.c.0.s8 %v3894
      %v3896 = vperm.slane %v3890, %v3895
      %v3898 = vunpack.c.l.s4 1983009808
      %v3899 = vunpack.c.0.s8 %v3898
      %v3900 = vperm.slane %v3892, %v3899
      %v3901 = vrot.slane %v3896, 4
      %v3902 = vsel %vm211, %v3901, %v3884
      %v3903 = vrot.slane %v3884, 4
      %v3904 = vsel %vm211, %v3896, %v3903
      %v3906 = vunpack.c.l.s4 1934713408
      %v3907 = vunpack.c.0.s8 %v3906
      %v3908 = vperm.slane %v3902, %v3907
      %v3910 = vunpack.c.l.s4 1934713408
      %v3911 = vunpack.c.0.s8 %v3910
      %v3912 = vperm.slane %v3904, %v3911
      %v3913 = vrot.slane %v3900, 4
      %v3914 = vsel %vm211, %v3913, %v3888
      %v3915 = vrot.slane %v3888, 4
      %v3916 = vsel %vm211, %v3900, %v3915
      %v3918 = vunpack.c.l.s4 1934713408
      %v3919 = vunpack.c.0.s8 %v3918
      %v3920 = vperm.slane %v3914, %v3919
      %v3922 = vunpack.c.l.s4 1934713408
      %v3923 = vunpack.c.0.s8 %v3922
      %v3924 = vperm.slane %v3916, %v3923
      %v3925 = vrot.slane %v3908, 4
      %v3926 = vsel %vm211, 0.0, %v3925
      %v3927 = vrot.slane %v3912, 4
      %v3928 = vsel %vm211, 0.0, %v3927
      %v3929 = vrot.slane %v3920, 4
      %v3930 = vsel %vm211, 0.0, %v3929
      %v3931 = vrot.slane %v3924, 4
      %v3932 = vsel %vm211, 0.0, %v3931
      %v3933 = vrot.slane %v3864, 4
      %v3934 = vsel %vm211, %v3933, %v3856
      %v3935 = vrot.slane %v3856, 4
      %v3936 = vsel %vm211, %v3864, %v3935
      %v3938 = vunpack.c.l.s4 1983009808
      %v3939 = vunpack.c.0.s8 %v3938
      %v3940 = vperm.slane %v3934, %v3939
      %v3942 = vunpack.c.l.s4 1983009808
      %v3943 = vunpack.c.0.s8 %v3942
      %v3944 = vperm.slane %v3936, %v3943
      %v3945 = vrot.slane %v3868, 4
      %v3946 = vsel %vm211, %v3945, %v3860
      %v3947 = vrot.slane %v3860, 4
      %v3948 = vsel %vm211, %v3868, %v3947
      %v3950 = vunpack.c.l.s4 1983009808
      %v3951 = vunpack.c.0.s8 %v3950
      %v3952 = vperm.slane %v3946, %v3951
      %v3954 = vunpack.c.l.s4 1983009808
      %v3955 = vunpack.c.0.s8 %v3954
      %v3956 = vperm.slane %v3948, %v3955
      %v3957 = vrot.slane %v3952, 4
      %v3958 = vsel %vm211, %v3957, %v3940
      %v3959 = vrot.slane %v3940, 4
      %v3960 = vsel %vm211, %v3952, %v3959
      %v3962 = vunpack.c.l.s4 1934713408
      %v3963 = vunpack.c.0.s8 %v3962
      %v3964 = vperm.slane %v3958, %v3963
      %v3966 = vunpack.c.l.s4 1934713408
      %v3967 = vunpack.c.0.s8 %v3966
      %v3968 = vperm.slane %v3960, %v3967
      %v3969 = vrot.slane %v3956, 4
      %v3970 = vsel %vm211, %v3969, %v3944
      %v3971 = vrot.slane %v3944, 4
      %v3972 = vsel %vm211, %v3956, %v3971
      %v3974 = vunpack.c.l.s4 1934713408
      %v3975 = vunpack.c.0.s8 %v3974
      %v3976 = vperm.slane %v3970, %v3975
      %v3978 = vunpack.c.l.s4 1934713408
      %v3979 = vunpack.c.0.s8 %v3978
      %v3980 = vperm.slane %v3972, %v3979
      %v3981 = vrot.slane %v3964, 4
      %v3982 = vsel %vm211, 0.0, %v3981
      %v3983 = vrot.slane %v3968, 4
      %v3984 = vsel %vm211, 0.0, %v3983
      %v3985 = vrot.slane %v3976, 4
      %v3986 = vsel %vm211, 0.0, %v3985
      %v3987 = vrot.slane %v3980, 4
      %v3988 = vsel %vm211, 0.0, %v3987
      %3990 = vrot.lane.b32.xlu0 %v3926, 16
      %v3991 = vpop.permute.xlu0 %3990
      %3994 = vrot.lane.b32.xlu0 %v3912, 32
      %v3995 = vpop.permute.xlu0 %3994
      %3998 = vrot.lane.b32.xlu0 %v3928, 48
      %v3999 = vpop.permute.xlu0 %3998
      %4002 = vrot.lane.b32.xlu0 %v3920, 64
      %v4003 = vpop.permute.xlu0 %4002
      %4006 = vrot.lane.b32.xlu0 %v3930, 80
      %v4007 = vpop.permute.xlu0 %4006
      %4010 = vrot.lane.b32.xlu0 %v3924, 96
      %v4011 = vpop.permute.xlu0 %4010
      %4014 = vrot.lane.b32.xlu0 %v3932, 112
      %v4015 = vpop.permute.xlu0 %4014
      %4018 = vrot.lane.b32.xlu0 %v3982, 16
      %v4019 = vpop.permute.xlu0 %4018
      %4022 = vrot.lane.b32.xlu0 %v3968, 32
      %v4023 = vpop.permute.xlu0 %4022
      %4026 = vrot.lane.b32.xlu0 %v3984, 48
      %v4027 = vpop.permute.xlu0 %4026
      %4030 = vrot.lane.b32.xlu0 %v3976, 64
      %v4031 = vpop.permute.xlu0 %4030
      %4034 = vrot.lane.b32.xlu0 %v3986, 80
      %v4035 = vpop.permute.xlu0 %4034
      %4038 = vrot.lane.b32.xlu0 %v3980, 96
      %v4039 = vpop.permute.xlu0 %4038
      %4042 = vrot.lane.b32.xlu0 %v3988, 112
      %v4043 = vpop.permute.xlu0 %4042
      %v4045 = vsel %vm769, %v3908, %v3991
      %v4046 = vsel %vm771, %v4045, %v3995
      %v4047 = vsel %vm773, %v4046, %v3999
      %v4048 = vsel %vm775, %v4047, %v4003
      %v4049 = vsel %vm777, %v4048, %v4007
      %v4050 = vsel %vm779, %v4049, %v4011
      %v4051 = vsel %vm781, %v4050, %v4015
      %v4052 = vsel %vm769, %v3964, %v4019
      %v4053 = vsel %vm771, %v4052, %v4023
      %v4054 = vsel %vm773, %v4053, %v4027
      %v4055 = vsel %vm775, %v4054, %v4031
      %v4056 = vsel %vm777, %v4055, %v4035
      %v4057 = vsel %vm779, %v4056, %v4039
      %v4058 = vsel %vm781, %v4057, %v4043
      %4059 = vst [vmem:[#allocation3 + $0x20] sm:$0xf] %v4051
      %4060 = vst [vmem:[#allocation3 + $0x28] sm:$0xf] %v4058
      %v4061 = vld [vmem:[#allocation2 + $0x1] sm:$0xff]
      %v4062 = vld [vmem:[#allocation2 + $0x9] sm:$0xff]
      %v4063 = vld [vmem:[#allocation2 + $0x19] sm:$0xff]
      %v4064 = vld [vmem:[#allocation2 + $0x21] sm:$0xff]
      %v4065 = vld [vmem:[#allocation2 + $0x31] sm:$0xff]
      %v4066 = vld [vmem:[#allocation2 + $0x39] sm:$0xff]
      %v4067 = vld [vmem:[#allocation2 + $0x49] sm:$0xff]
      %v4068 = vld [vmem:[#allocation2 + $0x51] sm:$0xff]
      %4077 = vrot.lane.b32.xlu0 %v4061, 126
      %v4078 = vpop.permute.xlu0 %4077
      %4079 = vrot.lane.b32.xlu0 %v4062, 126
      %v4080 = vpop.permute.xlu0 %4079
      %4081 = vrot.lane.b32.xlu0 %v4063, 126
      %v4082 = vpop.permute.xlu0 %4081
      %4083 = vrot.lane.b32.xlu0 %v4064, 126
      %v4084 = vpop.permute.xlu0 %4083
      %4085 = vrot.lane.b32.xlu0 %v4065, 126
      %v4086 = vpop.permute.xlu0 %4085
      %4087 = vrot.lane.b32.xlu0 %v4066, 126
      %v4088 = vpop.permute.xlu0 %4087
      %4089 = vrot.lane.b32.xlu0 %v4067, 126
      %v4090 = vpop.permute.xlu0 %4089
      %4091 = vrot.lane.b32.xlu0 %v4068, 126
      %v4092 = vpop.permute.xlu0 %4091
      %v4101 = vrot.slane %v4086, 4
      %v4102 = vsel %vm211, %v4101, %v4078
      %v4103 = vrot.slane %v4078, 4
      %v4104 = vsel %vm211, %v4086, %v4103
      %v4106 = vunpack.c.l.s4 1983009808
      %v4107 = vunpack.c.0.s8 %v4106
      %v4108 = vperm.slane %v4102, %v4107
      %v4110 = vunpack.c.l.s4 1983009808
      %v4111 = vunpack.c.0.s8 %v4110
      %v4112 = vperm.slane %v4104, %v4111
      %v4113 = vrot.slane %v4090, 4
      %v4114 = vsel %vm211, %v4113, %v4082
      %v4115 = vrot.slane %v4082, 4
      %v4116 = vsel %vm211, %v4090, %v4115
      %v4118 = vunpack.c.l.s4 1983009808
      %v4119 = vunpack.c.0.s8 %v4118
      %v4120 = vperm.slane %v4114, %v4119
      %v4122 = vunpack.c.l.s4 1983009808
      %v4123 = vunpack.c.0.s8 %v4122
      %v4124 = vperm.slane %v4116, %v4123
      %v4125 = vrot.slane %v4120, 4
      %v4126 = vsel %vm211, %v4125, %v4108
      %v4127 = vrot.slane %v4108, 4
      %v4128 = vsel %vm211, %v4120, %v4127
      %v4130 = vunpack.c.l.s4 1934713408
      %v4131 = vunpack.c.0.s8 %v4130
      %v4132 = vperm.slane %v4126, %v4131
      %v4134 = vunpack.c.l.s4 1934713408
      %v4135 = vunpack.c.0.s8 %v4134
      %v4136 = vperm.slane %v4128, %v4135
      %v4137 = vrot.slane %v4124, 4
      %v4138 = vsel %vm211, %v4137, %v4112
      %v4139 = vrot.slane %v4112, 4
      %v4140 = vsel %vm211, %v4124, %v4139
      %v4142 = vunpack.c.l.s4 1934713408
      %v4143 = vunpack.c.0.s8 %v4142
      %v4144 = vperm.slane %v4138, %v4143
      %v4146 = vunpack.c.l.s4 1934713408
      %v4147 = vunpack.c.0.s8 %v4146
      %v4148 = vperm.slane %v4140, %v4147
      %v4149 = vrot.slane %v4132, 4
      %v4150 = vsel %vm211, 0.0, %v4149
      %v4151 = vrot.slane %v4136, 4
      %v4152 = vsel %vm211, 0.0, %v4151
      %v4153 = vrot.slane %v4144, 4
      %v4154 = vsel %vm211, 0.0, %v4153
      %v4155 = vrot.slane %v4148, 4
      %v4156 = vsel %vm211, 0.0, %v4155
      %v4157 = vrot.slane %v4088, 4
      %v4158 = vsel %vm211, %v4157, %v4080
      %v4159 = vrot.slane %v4080, 4
      %v4160 = vsel %vm211, %v4088, %v4159
      %v4162 = vunpack.c.l.s4 1983009808
      %v4163 = vunpack.c.0.s8 %v4162
      %v4164 = vperm.slane %v4158, %v4163
      %v4166 = vunpack.c.l.s4 1983009808
      %v4167 = vunpack.c.0.s8 %v4166
      %v4168 = vperm.slane %v4160, %v4167
      %v4169 = vrot.slane %v4092, 4
      %v4170 = vsel %vm211, %v4169, %v4084
      %v4171 = vrot.slane %v4084, 4
      %v4172 = vsel %vm211, %v4092, %v4171
      %v4174 = vunpack.c.l.s4 1983009808
      %v4175 = vunpack.c.0.s8 %v4174
      %v4176 = vperm.slane %v4170, %v4175
      %v4178 = vunpack.c.l.s4 1983009808
      %v4179 = vunpack.c.0.s8 %v4178
      %v4180 = vperm.slane %v4172, %v4179
      %v4181 = vrot.slane %v4176, 4
      %v4182 = vsel %vm211, %v4181, %v4164
      %v4183 = vrot.slane %v4164, 4
      %v4184 = vsel %vm211, %v4176, %v4183
      %v4186 = vunpack.c.l.s4 1934713408
      %v4187 = vunpack.c.0.s8 %v4186
      %v4188 = vperm.slane %v4182, %v4187
      %v4190 = vunpack.c.l.s4 1934713408
      %v4191 = vunpack.c.0.s8 %v4190
      %v4192 = vperm.slane %v4184, %v4191
      %v4193 = vrot.slane %v4180, 4
      %v4194 = vsel %vm211, %v4193, %v4168
      %v4195 = vrot.slane %v4168, 4
      %v4196 = vsel %vm211, %v4180, %v4195
      %v4198 = vunpack.c.l.s4 1934713408
      %v4199 = vunpack.c.0.s8 %v4198
      %v4200 = vperm.slane %v4194, %v4199
      %v4202 = vunpack.c.l.s4 1934713408
      %v4203 = vunpack.c.0.s8 %v4202
      %v4204 = vperm.slane %v4196, %v4203
      %v4205 = vrot.slane %v4188, 4
      %v4206 = vsel %vm211, 0.0, %v4205
      %v4207 = vrot.slane %v4192, 4
      %v4208 = vsel %vm211, 0.0, %v4207
      %v4209 = vrot.slane %v4200, 4
      %v4210 = vsel %vm211, 0.0, %v4209
      %v4211 = vrot.slane %v4204, 4
      %v4212 = vsel %vm211, 0.0, %v4211
      %4214 = vrot.lane.b32.xlu0 %v4150, 16
      %v4215 = vpop.permute.xlu0 %4214
      %4218 = vrot.lane.b32.xlu0 %v4136, 32
      %v4219 = vpop.permute.xlu0 %4218
      %4222 = vrot.lane.b32.xlu0 %v4152, 48
      %v4223 = vpop.permute.xlu0 %4222
      %4226 = vrot.lane.b32.xlu0 %v4144, 64
      %v4227 = vpop.permute.xlu0 %4226
      %4230 = vrot.lane.b32.xlu0 %v4154, 80
      %v4231 = vpop.permute.xlu0 %4230
      %4234 = vrot.lane.b32.xlu0 %v4148, 96
      %v4235 = vpop.permute.xlu0 %4234
      %4238 = vrot.lane.b32.xlu0 %v4156, 112
      %v4239 = vpop.permute.xlu0 %4238
      %4242 = vrot.lane.b32.xlu0 %v4206, 16
      %v4243 = vpop.permute.xlu0 %4242
      %4246 = vrot.lane.b32.xlu0 %v4192, 32
      %v4247 = vpop.permute.xlu0 %4246
      %4250 = vrot.lane.b32.xlu0 %v4208, 48
      %v4251 = vpop.permute.xlu0 %4250
      %4254 = vrot.lane.b32.xlu0 %v4200, 64
      %v4255 = vpop.permute.xlu0 %4254
      %4258 = vrot.lane.b32.xlu0 %v4210, 80
      %v4259 = vpop.permute.xlu0 %4258
      %4262 = vrot.lane.b32.xlu0 %v4204, 96
      %v4263 = vpop.permute.xlu0 %4262
      %4266 = vrot.lane.b32.xlu0 %v4212, 112
      %v4267 = vpop.permute.xlu0 %4266
      %v4269 = vsel %vm769, %v4132, %v4215
      %v4270 = vsel %vm771, %v4269, %v4219
      %v4271 = vsel %vm773, %v4270, %v4223
      %v4272 = vsel %vm775, %v4271, %v4227
      %v4273 = vsel %vm777, %v4272, %v4231
      %v4274 = vsel %vm779, %v4273, %v4235
      %v4275 = vsel %vm781, %v4274, %v4239
      %v4276 = vsel %vm769, %v4188, %v4243
      %v4277 = vsel %vm771, %v4276, %v4247
      %v4278 = vsel %vm773, %v4277, %v4251
      %v4279 = vsel %vm775, %v4278, %v4255
      %v4280 = vsel %vm777, %v4279, %v4259
      %v4281 = vsel %vm779, %v4280, %v4263
      %v4282 = vsel %vm781, %v4281, %v4267
      %v4285 = vrot.slane %v4275, 4
      %v4286 = vrot.slane %v4282, 4
      %4289 = vst [vmem:[#allocation3 + $0x20] sm:$0xf0] %v4285
      %4290 = vst [vmem:[#allocation3 + $0x28] sm:$0xf0] %v4286
      %v4291 = vld [vmem:[#allocation2 + $0x2] sm:$0xff]
      %v4292 = vld [vmem:[#allocation2 + $0xa] sm:$0xff]
      %v4293 = vld [vmem:[#allocation2 + $0x1a] sm:$0xff]
      %v4294 = vld [vmem:[#allocation2 + $0x22] sm:$0xff]
      %v4295 = vld [vmem:[#allocation2 + $0x32] sm:$0xff]
      %v4296 = vld [vmem:[#allocation2 + $0x3a] sm:$0xff]
      %v4297 = vld [vmem:[#allocation2 + $0x4a] sm:$0xff]
      %v4298 = vld [vmem:[#allocation2 + $0x52] sm:$0xff]
      %v4299 = vrot.slane %v4295, 4
      %v4300 = vsel %vm211, %v4299, %v4291
      %v4301 = vrot.slane %v4291, 4
      %v4302 = vsel %vm211, %v4295, %v4301
      %v4304 = vunpack.c.l.s4 1983009808
      %v4305 = vunpack.c.0.s8 %v4304
      %v4306 = vperm.slane %v4300, %v4305
      %v4308 = vunpack.c.l.s4 1983009808
      %v4309 = vunpack.c.0.s8 %v4308
      %v4310 = vperm.slane %v4302, %v4309
      %v4311 = vrot.slane %v4297, 4
      %v4312 = vsel %vm211, %v4311, %v4293
      %v4313 = vrot.slane %v4293, 4
      %v4314 = vsel %vm211, %v4297, %v4313
      %v4316 = vunpack.c.l.s4 1983009808
      %v4317 = vunpack.c.0.s8 %v4316
      %v4318 = vperm.slane %v4312, %v4317
      %v4320 = vunpack.c.l.s4 1983009808
      %v4321 = vunpack.c.0.s8 %v4320
      %v4322 = vperm.slane %v4314, %v4321
      %v4323 = vrot.slane %v4318, 4
      %v4324 = vsel %vm211, %v4323, %v4306
      %v4325 = vrot.slane %v4306, 4
      %v4326 = vsel %vm211, %v4318, %v4325
      %v4328 = vunpack.c.l.s4 1934713408
      %v4329 = vunpack.c.0.s8 %v4328
      %v4330 = vperm.slane %v4324, %v4329
      %v4332 = vunpack.c.l.s4 1934713408
      %v4333 = vunpack.c.0.s8 %v4332
      %v4334 = vperm.slane %v4326, %v4333
      %v4335 = vrot.slane %v4322, 4
      %v4336 = vsel %vm211, %v4335, %v4310
      %v4337 = vrot.slane %v4310, 4
      %v4338 = vsel %vm211, %v4322, %v4337
      %v4340 = vunpack.c.l.s4 1934713408
      %v4341 = vunpack.c.0.s8 %v4340
      %v4342 = vperm.slane %v4336, %v4341
      %v4344 = vunpack.c.l.s4 1934713408
      %v4345 = vunpack.c.0.s8 %v4344
      %v4346 = vperm.slane %v4338, %v4345
      %v4347 = vrot.slane %v4330, 4
      %v4348 = vsel %vm211, 0.0, %v4347
      %v4349 = vrot.slane %v4334, 4
      %v4350 = vsel %vm211, 0.0, %v4349
      %v4351 = vrot.slane %v4342, 4
      %v4352 = vsel %vm211, 0.0, %v4351
      %v4353 = vrot.slane %v4346, 4
      %v4354 = vsel %vm211, 0.0, %v4353
      %v4355 = vrot.slane %v4296, 4
      %v4356 = vsel %vm211, %v4355, %v4292
      %v4357 = vrot.slane %v4292, 4
      %v4358 = vsel %vm211, %v4296, %v4357
      %v4360 = vunpack.c.l.s4 1983009808
      %v4361 = vunpack.c.0.s8 %v4360
      %v4362 = vperm.slane %v4356, %v4361
      %v4364 = vunpack.c.l.s4 1983009808
      %v4365 = vunpack.c.0.s8 %v4364
      %v4366 = vperm.slane %v4358, %v4365
      %v4367 = vrot.slane %v4298, 4
      %v4368 = vsel %vm211, %v4367, %v4294
      %v4369 = vrot.slane %v4294, 4
      %v4370 = vsel %vm211, %v4298, %v4369
      %v4372 = vunpack.c.l.s4 1983009808
      %v4373 = vunpack.c.0.s8 %v4372
      %v4374 = vperm.slane %v4368, %v4373
      %v4376 = vunpack.c.l.s4 1983009808
      %v4377 = vunpack.c.0.s8 %v4376
      %v4378 = vperm.slane %v4370, %v4377
      %v4379 = vrot.slane %v4374, 4
      %v4380 = vsel %vm211, %v4379, %v4362
      %v4381 = vrot.slane %v4362, 4
      %v4382 = vsel %vm211, %v4374, %v4381
      %v4384 = vunpack.c.l.s4 1934713408
      %v4385 = vunpack.c.0.s8 %v4384
      %v4386 = vperm.slane %v4380, %v4385
      %v4388 = vunpack.c.l.s4 1934713408
      %v4389 = vunpack.c.0.s8 %v4388
      %v4390 = vperm.slane %v4382, %v4389
      %v4391 = vrot.slane %v4378, 4
      %v4392 = vsel %vm211, %v4391, %v4366
      %v4393 = vrot.slane %v4366, 4
      %v4394 = vsel %vm211, %v4378, %v4393
      %v4396 = vunpack.c.l.s4 1934713408
      %v4397 = vunpack.c.0.s8 %v4396
      %v4398 = vperm.slane %v4392, %v4397
      %v4400 = vunpack.c.l.s4 1934713408
      %v4401 = vunpack.c.0.s8 %v4400
      %v4402 = vperm.slane %v4394, %v4401
      %v4403 = vrot.slane %v4386, 4
      %v4404 = vsel %vm211, 0.0, %v4403
      %v4405 = vrot.slane %v4390, 4
      %v4406 = vsel %vm211, 0.0, %v4405
      %v4407 = vrot.slane %v4398, 4
      %v4408 = vsel %vm211, 0.0, %v4407
      %v4409 = vrot.slane %v4402, 4
      %v4410 = vsel %vm211, 0.0, %v4409
      %4412 = vrot.lane.b32.xlu0 %v4348, 16
      %v4413 = vpop.permute.xlu0 %4412
      %4416 = vrot.lane.b32.xlu0 %v4334, 32
      %v4417 = vpop.permute.xlu0 %4416
      %4420 = vrot.lane.b32.xlu0 %v4350, 48
      %v4421 = vpop.permute.xlu0 %4420
      %4424 = vrot.lane.b32.xlu0 %v4342, 64
      %v4425 = vpop.permute.xlu0 %4424
      %4428 = vrot.lane.b32.xlu0 %v4352, 80
      %v4429 = vpop.permute.xlu0 %4428
      %4432 = vrot.lane.b32.xlu0 %v4346, 96
      %v4433 = vpop.permute.xlu0 %4432
      %4436 = vrot.lane.b32.xlu0 %v4354, 112
      %v4437 = vpop.permute.xlu0 %4436
      %4440 = vrot.lane.b32.xlu0 %v4404, 16
      %v4441 = vpop.permute.xlu0 %4440
      %4444 = vrot.lane.b32.xlu0 %v4390, 32
      %v4445 = vpop.permute.xlu0 %4444
      %4448 = vrot.lane.b32.xlu0 %v4406, 48
      %v4449 = vpop.permute.xlu0 %4448
      %4452 = vrot.lane.b32.xlu0 %v4398, 64
      %v4453 = vpop.permute.xlu0 %4452
      %4456 = vrot.lane.b32.xlu0 %v4408, 80
      %v4457 = vpop.permute.xlu0 %4456
      %4460 = vrot.lane.b32.xlu0 %v4402, 96
      %v4461 = vpop.permute.xlu0 %4460
      %4464 = vrot.lane.b32.xlu0 %v4410, 112
      %v4465 = vpop.permute.xlu0 %4464
      %v4467 = vsel %vm769, %v4330, %v4413
      %v4468 = vsel %vm771, %v4467, %v4417
      %v4469 = vsel %vm773, %v4468, %v4421
      %v4470 = vsel %vm775, %v4469, %v4425
      %v4471 = vsel %vm777, %v4470, %v4429
      %v4472 = vsel %vm779, %v4471, %v4433
      %v4473 = vsel %vm781, %v4472, %v4437
      %v4474 = vsel %vm769, %v4386, %v4441
      %v4475 = vsel %vm771, %v4474, %v4445
      %v4476 = vsel %vm773, %v4475, %v4449
      %v4477 = vsel %vm775, %v4476, %v4453
      %v4478 = vsel %vm777, %v4477, %v4457
      %v4479 = vsel %vm779, %v4478, %v4461
      %v4480 = vsel %vm781, %v4479, %v4465
      %4481 = vst [vmem:[#allocation3 + $0x30] sm:$0xf] %v4473
      %4482 = vst [vmem:[#allocation3 + $0x38] sm:$0xf] %v4480
      %v4483 = vld [vmem:[#allocation2 + $0x2] sm:$0xff]
      %v4484 = vld [vmem:[#allocation2 + $0xa] sm:$0xff]
      %v4485 = vld [vmem:[#allocation2 + $0x1a] sm:$0xff]
      %v4486 = vld [vmem:[#allocation2 + $0x22] sm:$0xff]
      %v4487 = vld [vmem:[#allocation2 + $0x32] sm:$0xff]
      %v4488 = vld [vmem:[#allocation2 + $0x3a] sm:$0xff]
      %v4489 = vld [vmem:[#allocation2 + $0x4a] sm:$0xff]
      %v4490 = vld [vmem:[#allocation2 + $0x52] sm:$0xff]
      %4499 = vrot.lane.b32.xlu0 %v4483, 127
      %v4500 = vpop.permute.xlu0 %4499
      %4501 = vrot.lane.b32.xlu0 %v4484, 127
      %v4502 = vpop.permute.xlu0 %4501
      %4503 = vrot.lane.b32.xlu0 %v4485, 127
      %v4504 = vpop.permute.xlu0 %4503
      %4505 = vrot.lane.b32.xlu0 %v4486, 127
      %v4506 = vpop.permute.xlu0 %4505
      %4507 = vrot.lane.b32.xlu0 %v4487, 127
      %v4508 = vpop.permute.xlu0 %4507
      %4509 = vrot.lane.b32.xlu0 %v4488, 127
      %v4510 = vpop.permute.xlu0 %4509
      %4511 = vrot.lane.b32.xlu0 %v4489, 127
      %v4512 = vpop.permute.xlu0 %4511
      %4513 = vrot.lane.b32.xlu0 %v4490, 127
      %v4514 = vpop.permute.xlu0 %4513
      %v4523 = vrot.slane %v4508, 4
      %v4524 = vsel %vm211, %v4523, %v4500
      %v4525 = vrot.slane %v4500, 4
      %v4526 = vsel %vm211, %v4508, %v4525
      %v4528 = vunpack.c.l.s4 1983009808
      %v4529 = vunpack.c.0.s8 %v4528
      %v4530 = vperm.slane %v4524, %v4529
      %v4532 = vunpack.c.l.s4 1983009808
      %v4533 = vunpack.c.0.s8 %v4532
      %v4534 = vperm.slane %v4526, %v4533
      %v4535 = vrot.slane %v4512, 4
      %v4536 = vsel %vm211, %v4535, %v4504
      %v4537 = vrot.slane %v4504, 4
      %v4538 = vsel %vm211, %v4512, %v4537
      %v4540 = vunpack.c.l.s4 1983009808
      %v4541 = vunpack.c.0.s8 %v4540
      %v4542 = vperm.slane %v4536, %v4541
      %v4544 = vunpack.c.l.s4 1983009808
      %v4545 = vunpack.c.0.s8 %v4544
      %v4546 = vperm.slane %v4538, %v4545
      %v4547 = vrot.slane %v4542, 4
      %v4548 = vsel %vm211, %v4547, %v4530
      %v4549 = vrot.slane %v4530, 4
      %v4550 = vsel %vm211, %v4542, %v4549
      %v4552 = vunpack.c.l.s4 1934713408
      %v4553 = vunpack.c.0.s8 %v4552
      %v4554 = vperm.slane %v4548, %v4553
      %v4556 = vunpack.c.l.s4 1934713408
      %v4557 = vunpack.c.0.s8 %v4556
      %v4558 = vperm.slane %v4550, %v4557
      %v4559 = vrot.slane %v4546, 4
      %v4560 = vsel %vm211, %v4559, %v4534
      %v4561 = vrot.slane %v4534, 4
      %v4562 = vsel %vm211, %v4546, %v4561
      %v4564 = vunpack.c.l.s4 1934713408
      %v4565 = vunpack.c.0.s8 %v4564
      %v4566 = vperm.slane %v4560, %v4565
      %v4568 = vunpack.c.l.s4 1934713408
      %v4569 = vunpack.c.0.s8 %v4568
      %v4570 = vperm.slane %v4562, %v4569
      %v4571 = vrot.slane %v4554, 4
      %v4572 = vsel %vm211, 0.0, %v4571
      %v4573 = vrot.slane %v4558, 4
      %v4574 = vsel %vm211, 0.0, %v4573
      %v4575 = vrot.slane %v4566, 4
      %v4576 = vsel %vm211, 0.0, %v4575
      %v4577 = vrot.slane %v4570, 4
      %v4578 = vsel %vm211, 0.0, %v4577
      %v4579 = vrot.slane %v4510, 4
      %v4580 = vsel %vm211, %v4579, %v4502
      %v4581 = vrot.slane %v4502, 4
      %v4582 = vsel %vm211, %v4510, %v4581
      %v4584 = vunpack.c.l.s4 1983009808
      %v4585 = vunpack.c.0.s8 %v4584
      %v4586 = vperm.slane %v4580, %v4585
      %v4588 = vunpack.c.l.s4 1983009808
      %v4589 = vunpack.c.0.s8 %v4588
      %v4590 = vperm.slane %v4582, %v4589
      %v4591 = vrot.slane %v4514, 4
      %v4592 = vsel %vm211, %v4591, %v4506
      %v4593 = vrot.slane %v4506, 4
      %v4594 = vsel %vm211, %v4514, %v4593
      %v4596 = vunpack.c.l.s4 1983009808
      %v4597 = vunpack.c.0.s8 %v4596
      %v4598 = vperm.slane %v4592, %v4597
      %v4600 = vunpack.c.l.s4 1983009808
      %v4601 = vunpack.c.0.s8 %v4600
      %v4602 = vperm.slane %v4594, %v4601
      %v4603 = vrot.slane %v4598, 4
      %v4604 = vsel %vm211, %v4603, %v4586
      %v4605 = vrot.slane %v4586, 4
      %v4606 = vsel %vm211, %v4598, %v4605
      %v4608 = vunpack.c.l.s4 1934713408
      %v4609 = vunpack.c.0.s8 %v4608
      %v4610 = vperm.slane %v4604, %v4609
      %v4612 = vunpack.c.l.s4 1934713408
      %v4613 = vunpack.c.0.s8 %v4612
      %v4614 = vperm.slane %v4606, %v4613
      %v4615 = vrot.slane %v4602, 4
      %v4616 = vsel %vm211, %v4615, %v4590
      %v4617 = vrot.slane %v4590, 4
      %v4618 = vsel %vm211, %v4602, %v4617
      %v4620 = vunpack.c.l.s4 1934713408
      %v4621 = vunpack.c.0.s8 %v4620
      %v4622 = vperm.slane %v4616, %v4621
      %v4624 = vunpack.c.l.s4 1934713408
      %v4625 = vunpack.c.0.s8 %v4624
      %v4626 = vperm.slane %v4618, %v4625
      %v4627 = vrot.slane %v4610, 4
      %v4628 = vsel %vm211, 0.0, %v4627
      %v4629 = vrot.slane %v4614, 4
      %v4630 = vsel %vm211, 0.0, %v4629
      %v4631 = vrot.slane %v4622, 4
      %v4632 = vsel %vm211, 0.0, %v4631
      %v4633 = vrot.slane %v4626, 4
      %v4634 = vsel %vm211, 0.0, %v4633
      %4636 = vrot.lane.b32.xlu0 %v4572, 16
      %v4637 = vpop.permute.xlu0 %4636
      %4640 = vrot.lane.b32.xlu0 %v4558, 32
      %v4641 = vpop.permute.xlu0 %4640
      %4644 = vrot.lane.b32.xlu0 %v4574, 48
      %v4645 = vpop.permute.xlu0 %4644
      %4648 = vrot.lane.b32.xlu0 %v4566, 64
      %v4649 = vpop.permute.xlu0 %4648
      %4652 = vrot.lane.b32.xlu0 %v4576, 80
      %v4653 = vpop.permute.xlu0 %4652
      %4656 = vrot.lane.b32.xlu0 %v4570, 96
      %v4657 = vpop.permute.xlu0 %4656
      %4660 = vrot.lane.b32.xlu0 %v4578, 112
      %v4661 = vpop.permute.xlu0 %4660
      %4664 = vrot.lane.b32.xlu0 %v4628, 16
      %v4665 = vpop.permute.xlu0 %4664
      %4668 = vrot.lane.b32.xlu0 %v4614, 32
      %v4669 = vpop.permute.xlu0 %4668
      %4672 = vrot.lane.b32.xlu0 %v4630, 48
      %v4673 = vpop.permute.xlu0 %4672
      %4676 = vrot.lane.b32.xlu0 %v4622, 64
      %v4677 = vpop.permute.xlu0 %4676
      %4680 = vrot.lane.b32.xlu0 %v4632, 80
      %v4681 = vpop.permute.xlu0 %4680
      %4684 = vrot.lane.b32.xlu0 %v4626, 96
      %v4685 = vpop.permute.xlu0 %4684
      %4688 = vrot.lane.b32.xlu0 %v4634, 112
      %v4689 = vpop.permute.xlu0 %4688
      %v4691 = vsel %vm769, %v4554, %v4637
      %v4692 = vsel %vm771, %v4691, %v4641
      %v4693 = vsel %vm773, %v4692, %v4645
      %v4694 = vsel %vm775, %v4693, %v4649
      %v4695 = vsel %vm777, %v4694, %v4653
      %v4696 = vsel %vm779, %v4695, %v4657
      %v4697 = vsel %vm781, %v4696, %v4661
      %v4698 = vsel %vm769, %v4610, %v4665
      %v4699 = vsel %vm771, %v4698, %v4669
      %v4700 = vsel %vm773, %v4699, %v4673
      %v4701 = vsel %vm775, %v4700, %v4677
      %v4702 = vsel %vm777, %v4701, %v4681
      %v4703 = vsel %vm779, %v4702, %v4685
      %v4704 = vsel %vm781, %v4703, %v4689
      %v4707 = vrot.slane %v4697, 4
      %v4708 = vrot.slane %v4704, 4
      %4711 = vst [vmem:[#allocation3 + $0x30] sm:$0xf0] %v4707
      %4712 = vst [vmem:[#allocation3 + $0x38] sm:$0xf0] %v4708
      %v4713 = vld [vmem:[#allocation2 + $0x2] sm:$0xff]
      %v4714 = vld [vmem:[#allocation2 + $0xa] sm:$0xff]
      %v4715 = vld [vmem:[#allocation2 + $0x1a] sm:$0xff]
      %v4716 = vld [vmem:[#allocation2 + $0x22] sm:$0xff]
      %v4717 = vld [vmem:[#allocation2 + $0x32] sm:$0xff]
      %v4718 = vld [vmem:[#allocation2 + $0x3a] sm:$0xff]
      %v4719 = vld [vmem:[#allocation2 + $0x4a] sm:$0xff]
      %v4720 = vld [vmem:[#allocation2 + $0x52] sm:$0xff]
      %4729 = vrot.lane.b32.xlu0 %v4713, 126
      %v4730 = vpop.permute.xlu0 %4729
      %4731 = vrot.lane.b32.xlu0 %v4714, 126
      %v4732 = vpop.permute.xlu0 %4731
      %4733 = vrot.lane.b32.xlu0 %v4715, 126
      %v4734 = vpop.permute.xlu0 %4733
      %4735 = vrot.lane.b32.xlu0 %v4716, 126
      %v4736 = vpop.permute.xlu0 %4735
      %4737 = vrot.lane.b32.xlu0 %v4717, 126
      %v4738 = vpop.permute.xlu0 %4737
      %4739 = vrot.lane.b32.xlu0 %v4718, 126
      %v4740 = vpop.permute.xlu0 %4739
      %4741 = vrot.lane.b32.xlu0 %v4719, 126
      %v4742 = vpop.permute.xlu0 %4741
      %4743 = vrot.lane.b32.xlu0 %v4720, 126
      %v4744 = vpop.permute.xlu0 %4743
      %v4753 = vrot.slane %v4738, 4
      %v4754 = vsel %vm211, %v4753, %v4730
      %v4755 = vrot.slane %v4730, 4
      %v4756 = vsel %vm211, %v4738, %v4755
      %v4758 = vunpack.c.l.s4 1983009808
      %v4759 = vunpack.c.0.s8 %v4758
      %v4760 = vperm.slane %v4754, %v4759
      %v4762 = vunpack.c.l.s4 1983009808
      %v4763 = vunpack.c.0.s8 %v4762
      %v4764 = vperm.slane %v4756, %v4763
      %v4765 = vrot.slane %v4742, 4
      %v4766 = vsel %vm211, %v4765, %v4734
      %v4767 = vrot.slane %v4734, 4
      %v4768 = vsel %vm211, %v4742, %v4767
      %v4770 = vunpack.c.l.s4 1983009808
      %v4771 = vunpack.c.0.s8 %v4770
      %v4772 = vperm.slane %v4766, %v4771
      %v4774 = vunpack.c.l.s4 1983009808
      %v4775 = vunpack.c.0.s8 %v4774
      %v4776 = vperm.slane %v4768, %v4775
      %v4777 = vrot.slane %v4772, 4
      %v4778 = vsel %vm211, %v4777, %v4760
      %v4779 = vrot.slane %v4760, 4
      %v4780 = vsel %vm211, %v4772, %v4779
      %v4782 = vunpack.c.l.s4 1934713408
      %v4783 = vunpack.c.0.s8 %v4782
      %v4784 = vperm.slane %v4778, %v4783
      %v4786 = vunpack.c.l.s4 1934713408
      %v4787 = vunpack.c.0.s8 %v4786
      %v4788 = vperm.slane %v4780, %v4787
      %v4789 = vrot.slane %v4776, 4
      %v4790 = vsel %vm211, %v4789, %v4764
      %v4791 = vrot.slane %v4764, 4
      %v4792 = vsel %vm211, %v4776, %v4791
      %v4794 = vunpack.c.l.s4 1934713408
      %v4795 = vunpack.c.0.s8 %v4794
      %v4796 = vperm.slane %v4790, %v4795
      %v4798 = vunpack.c.l.s4 1934713408
      %v4799 = vunpack.c.0.s8 %v4798
      %v4800 = vperm.slane %v4792, %v4799
      %v4801 = vrot.slane %v4784, 4
      %v4802 = vsel %vm211, 0.0, %v4801
      %v4803 = vrot.slane %v4788, 4
      %v4804 = vsel %vm211, 0.0, %v4803
      %v4805 = vrot.slane %v4796, 4
      %v4806 = vsel %vm211, 0.0, %v4805
      %v4807 = vrot.slane %v4800, 4
      %v4808 = vsel %vm211, 0.0, %v4807
      %v4809 = vrot.slane %v4740, 4
      %v4810 = vsel %vm211, %v4809, %v4732
      %v4811 = vrot.slane %v4732, 4
      %v4812 = vsel %vm211, %v4740, %v4811
      %v4814 = vunpack.c.l.s4 1983009808
      %v4815 = vunpack.c.0.s8 %v4814
      %v4816 = vperm.slane %v4810, %v4815
      %v4818 = vunpack.c.l.s4 1983009808
      %v4819 = vunpack.c.0.s8 %v4818
      %v4820 = vperm.slane %v4812, %v4819
      %v4821 = vrot.slane %v4744, 4
      %v4822 = vsel %vm211, %v4821, %v4736
      %v4823 = vrot.slane %v4736, 4
      %v4824 = vsel %vm211, %v4744, %v4823
      %v4826 = vunpack.c.l.s4 1983009808
      %v4827 = vunpack.c.0.s8 %v4826
      %v4828 = vperm.slane %v4822, %v4827
      %v4830 = vunpack.c.l.s4 1983009808
      %v4831 = vunpack.c.0.s8 %v4830
      %v4832 = vperm.slane %v4824, %v4831
      %v4833 = vrot.slane %v4828, 4
      %v4834 = vsel %vm211, %v4833, %v4816
      %v4835 = vrot.slane %v4816, 4
      %v4836 = vsel %vm211, %v4828, %v4835
      %v4838 = vunpack.c.l.s4 1934713408
      %v4839 = vunpack.c.0.s8 %v4838
      %v4840 = vperm.slane %v4834, %v4839
      %v4842 = vunpack.c.l.s4 1934713408
      %v4843 = vunpack.c.0.s8 %v4842
      %v4844 = vperm.slane %v4836, %v4843
      %v4845 = vrot.slane %v4832, 4
      %v4846 = vsel %vm211, %v4845, %v4820
      %v4847 = vrot.slane %v4820, 4
      %v4848 = vsel %vm211, %v4832, %v4847
      %v4850 = vunpack.c.l.s4 1934713408
      %v4851 = vunpack.c.0.s8 %v4850
      %v4852 = vperm.slane %v4846, %v4851
      %v4854 = vunpack.c.l.s4 1934713408
      %v4855 = vunpack.c.0.s8 %v4854
      %v4856 = vperm.slane %v4848, %v4855
      %v4857 = vrot.slane %v4840, 4
      %v4858 = vsel %vm211, 0.0, %v4857
      %v4859 = vrot.slane %v4844, 4
      %v4860 = vsel %vm211, 0.0, %v4859
      %v4861 = vrot.slane %v4852, 4
      %v4862 = vsel %vm211, 0.0, %v4861
      %v4863 = vrot.slane %v4856, 4
      %v4864 = vsel %vm211, 0.0, %v4863
      %4866 = vrot.lane.b32.xlu0 %v4802, 16
      %v4867 = vpop.permute.xlu0 %4866
      %4870 = vrot.lane.b32.xlu0 %v4788, 32
      %v4871 = vpop.permute.xlu0 %4870
      %4874 = vrot.lane.b32.xlu0 %v4804, 48
      %v4875 = vpop.permute.xlu0 %4874
      %4878 = vrot.lane.b32.xlu0 %v4796, 64
      %v4879 = vpop.permute.xlu0 %4878
      %4882 = vrot.lane.b32.xlu0 %v4806, 80
      %v4883 = vpop.permute.xlu0 %4882
      %4886 = vrot.lane.b32.xlu0 %v4800, 96
      %v4887 = vpop.permute.xlu0 %4886
      %4890 = vrot.lane.b32.xlu0 %v4808, 112
      %v4891 = vpop.permute.xlu0 %4890
      %4894 = vrot.lane.b32.xlu0 %v4858, 16
      %v4895 = vpop.permute.xlu0 %4894
      %4898 = vrot.lane.b32.xlu0 %v4844, 32
      %v4899 = vpop.permute.xlu0 %4898
      %4902 = vrot.lane.b32.xlu0 %v4860, 48
      %v4903 = vpop.permute.xlu0 %4902
      %4906 = vrot.lane.b32.xlu0 %v4852, 64
      %v4907 = vpop.permute.xlu0 %4906
      %4910 = vrot.lane.b32.xlu0 %v4862, 80
      %v4911 = vpop.permute.xlu0 %4910
      %4914 = vrot.lane.b32.xlu0 %v4856, 96
      %v4915 = vpop.permute.xlu0 %4914
      %4918 = vrot.lane.b32.xlu0 %v4864, 112
      %v4919 = vpop.permute.xlu0 %4918
      %v4921 = vsel %vm769, %v4784, %v4867
      %v4922 = vsel %vm771, %v4921, %v4871
      %v4923 = vsel %vm773, %v4922, %v4875
      %v4924 = vsel %vm775, %v4923, %v4879
      %v4925 = vsel %vm777, %v4924, %v4883
      %v4926 = vsel %vm779, %v4925, %v4887
      %v4927 = vsel %vm781, %v4926, %v4891
      %v4928 = vsel %vm769, %v4840, %v4895
      %v4929 = vsel %vm771, %v4928, %v4899
      %v4930 = vsel %vm773, %v4929, %v4903
      %v4931 = vsel %vm775, %v4930, %v4907
      %v4932 = vsel %vm777, %v4931, %v4911
      %v4933 = vsel %vm779, %v4932, %v4915
      %v4934 = vsel %vm781, %v4933, %v4919
      %4935 = vst [vmem:[#allocation3 + $0x40] sm:$0xf] %v4927
      %4936 = vst [vmem:[#allocation3 + $0x48] sm:$0xf] %v4934
      %v4937 = vld [vmem:[%s2] sm:$0xf]
      %v4938 = vld [vmem:[#allocation3] sm:$0xff]
      %v4939 = vld [vmem:[#allocation3 + $0x8] sm:$0xff]
      %v4940 = vld [vmem:[#allocation3 + $0x10] sm:$0xff]
      %v4941 = vld [vmem:[#allocation3 + $0x18] sm:$0xff]
      %v4942 = vld [vmem:[#allocation3 + $0x20] sm:$0xff]
      %v4943 = vld [vmem:[#allocation3 + $0x28] sm:$0xff]
      %v4944 = vld [vmem:[#allocation3 + $0x30] sm:$0xff]
      %v4945 = vld [vmem:[#allocation3 + $0x38] sm:$0xff]
      %v4946 = vld [vmem:[#allocation3 + $0x40] sm:$0xf]
      %v4947 = vld [vmem:[#allocation3 + $0x48] sm:$0xf]
      %v4949 = vsel %vm2555, %v4937, 0
      %v4952 = vsel %vm2559, %v4946, 0
      %v4955 = vsel %vm2559, %v4947, 0
      %4957 = vmatpush.msra.mxu0 0.0
      %4958 = vmatpush.msra.mxu0 0.0
      %4959 = vmatpush.msra.mxu0 0.0
      %4960 = vmatpush.msra.mxu0 0.0
      %4961 = vmatpush.msra.mxu0 0.0
      %4962 = vmatpush.msra.mxu0 0.0
      %4963 = vmatpush.msra.mxu0 0.0
      %4964 = vmatpush.msra.mxu0 0.0
      %4965 = vmatpush.msra.mxu0 0.0
      %4966 = vmatpush.msra.mxu0 0.0
      %4967 = vmatpush.msra.mxu0 0.0
      %4968 = vmatpush.msra.mxu0 %v4952
      %4969 = vmatpush.msra.mxu0 %v4944
      %4970 = vmatpush.msra.mxu0 %v4942
      %4971 = vmatpush.msra.mxu0 %v4940
      %4972 = vmatpush.msra.mxu0 %v4938
      %4973 = vmatmul.f32.gmra.mxu0 %v4949
      %v4974 = vpop.f32.mrf.mxu0
      %v4975 = vadd.f32 0.0, %v4974
      %4976 = vdwg.mxu0
      %4977 = vmatpush.msra.mxu0 0.0
      %4978 = vmatpush.msra.mxu0 0.0
      %4979 = vmatpush.msra.mxu0 0.0
      %4980 = vmatpush.msra.mxu0 0.0
      %4981 = vmatpush.msra.mxu0 0.0
      %4982 = vmatpush.msra.mxu0 0.0
      %4983 = vmatpush.msra.mxu0 0.0
      %4984 = vmatpush.msra.mxu0 0.0
      %4985 = vmatpush.msra.mxu0 0.0
      %4986 = vmatpush.msra.mxu0 0.0
      %4987 = vmatpush.msra.mxu0 0.0
      %4988 = vmatpush.msra.mxu0 %v4955
      %4989 = vmatpush.msra.mxu0 %v4945
      %4990 = vmatpush.msra.mxu0 %v4943
      %4991 = vmatpush.msra.mxu0 %v4941
      %4992 = vmatpush.msra.mxu0 %v4939
      %4993 = vmatmul.f32.gmra.mxu0 %v4949
      %v4994 = vpop.f32.mrf.mxu0
      %v4995 = vadd.f32 0.0, %v4994
      %4996 = vdwg.mxu0
      %v4997 = vsel %vm2559, %v4975, 0.0
      %v4998 = vsel %vm2559, %v4995, 0.0
      %v4999 = vadd.f32 %v4997, %v4998
      %5000 = vadd.xlane.f32.xlu0 %v4999
      %v5001 = vpop.xlane.xlu0 %5000
      %v5002 = vmul.f32 %v5001, %v2617
      %v5003 = vsub.f32 %v4975, %v5002
      %v5004 = vsub.f32 %v4995, %v5002
      %v5005 = vmul.f32 %v5003, %v5003
      %v5006 = vmul.f32 %v5004, %v5004
      %v5007 = vsel %vm2559, %v5005, 0.0
      %v5008 = vsel %vm2559, %v5006, 0.0
      %v5009 = vadd.f32 %v5007, %v5008
      %5010 = vadd.xlane.f32.xlu0 %v5009
      %v5011 = vpop.xlane.xlu0 %5010
      %v5012 = vmul.f32 %v5011, %v2617
      %v5013 = vadd.f32 %v5012, 1e-05
      %v5014 = vrsqrt.pop %v5013
      %v5015 = vmul.f32 %v5014, %v5013
      %v5016 = vmul.f32 %v5015, %v5014
      %v5017 = vmul.f32 0.5, %v5016
      %v5018 = vsub.f32 1.5, %v5017
      %v5019 = vmul.f32 %v5014, %v5018
      %vm5020 = vweird.f32 %v5013
      %vm5021 = vweird.f32 %v5014
      %vm5022 = vmor %vm5020, %vm5021
      %v5023 = vsel %vm5022, %v5014, %v5019
      %v5024 = vmul.f32 %v5003, %v5023
      %v5025 = vmul.f32 %v5004, %v5023
      %v5028 = vrot.slane %v5025, 4
      %v5029 = vsel %vm2559, %v5024, %v5028
      %v5031 = vadd.f32 %v171, %v5029
      %5032 = vst [vmem:[%s170] sm:$0xff] %v5031
      %p5033 = scmp.lt.s32.totalorder %s14, 1
      %s5034 = scalar_select %p5033, %s14, 1
      %s5035 = smul.addr %s5034, 2
      %s5036 = smul.addr %s5035, 4
      %s5037 = scalar_lea.vmem %s3, %s5036
      // Predicated region
      $region33: #{resnet_block_forward.1} parent=31 // pred_check
        %p5038 = pneg %p100
      $region34: #{resnet_block_forward.1} parent=31 // pred_check_branch
        %5040 = sbr.rel (%p5038) target = $region36
      $region35: #{resnet_block_forward.1} parent=31 // pred_region
        _
      $region36: #{resnet_block_forward.1} parent=31 // pred_fallthru
        _
    $region32: #{resnet_block_forward.1} parent=5 // pred_fallthru
      _
    %p5041 = scmp.le.s32.totalorder 2, %s9
    // Predicated region
    $region37: #{resnet_block_forward.1} parent=5 // pred_check
      %p5042 = pneg %p5041
    $region38: #{resnet_block_forward.1} parent=5 // pred_check_branch
      %5044 = sbr.rel (%p5042) target = $region40
    $region39: #{resnet_block_forward.1} parent=5 // pred_region
      %s5045 = ssub.s32 %s9, 2
      // Predicated region
      $region41: #{resnet_block_forward.1} parent=39 // pred_check
        %p5046 = pneg %p106
      $region42: #{resnet_block_forward.1} parent=39 // pred_check_branch
        %5048 = sbr.rel (%p5046) target = $region44
      $region43: #{resnet_block_forward.1} parent=39 // pred_region
        %p5049 = scmp.lt.s32.totalorder %s15, 1
        %s5050 = scalar_select %p5049, %s15, 1
        %s5051 = smul.addr %s5050, 2
        %s5052 = smul.addr %s5051, 4
        %s5053 = scalar_lea.vmem %s3, %s5052
      $region44: #{resnet_block_forward.1} parent=39 // pred_fallthru
        _
    $region40: #{resnet_block_forward.1} parent=5 // pred_fallthru
      _
  $region6: #{resnet_block_forward.1} parent=0 // loop_footer
    %s13 = sadd.s32 1, %s9
  $region7: #{resnet_block_forward.1} parent=0 // loop_footer_branch
    %8 = sbr.rel target = $region3
  $region8: #{resnet_block_forward.1} parent=0 // loop_exit
    _

</llo_original>
